<compile_context>
chip_gen: v7x
topology: tpu7x:2x2x1
jax: 0.10.0
libtpu: 0.0.40
codegen_flags: <defaults>
</compile_context>

<pallas_src>
import jax
import jax.numpy as jnp
from jax.experimental import pallas as pl
from jax.experimental.pallas import tpu as pltpu

# ---- model hyper-params (small, consistent with the module's forward) ----
BATCH = 2
SEQ_LEN = 8          # "sequence_length"
INPUT_SIZE = 16      # "input_size"
HIDDEN_SIZE = 32     # "hidden_size"
NUM_LAYERS = 2       # "num_layers" (kernel below is specialized to 2, as in the module)
NUM_CLASSES = 10     # "num_classes"
_SUBLANES = 8        # f32 sublane count; batch is padded to a multiple of this


# ---------------------------------------------------------------------------
# Single fused kernel: layer-0 LSTM -> layer-1 LSTM -> FC.
# x_ref is time-major flattened: row t*Bp + b  corresponds to (time t, batch b).
# Gate order matches PyTorch nn.LSTM: i, f, g, o.
# ---------------------------------------------------------------------------
def _fused_rnn_kernel(x_ref, wih0_ref, whh0_ref, b0_ref,
                      wih1_ref, whh1_ref, b1_ref,
                      wfc_ref, bfc_ref,
                      out_ref,
                      gx_scr, hseq_scr, h_scr, c_scr, acc_scr):
    TB = x_ref.shape[0]
    Bp = out_ref.shape[0]
    H = whh0_ref.shape[0]
    T = TB // Bp

    def gate_update(gates, c_prev):
        i_g = jax.nn.sigmoid(gates[:, 0:H])
        f_g = jax.nn.sigmoid(gates[:, H:2 * H])
        g_g = jnp.tanh(gates[:, 2 * H:3 * H])
        o_g = jax.nn.sigmoid(gates[:, 3 * H:4 * H])
        c_new = f_g * c_prev + i_g * g_g
        h_new = o_g * jnp.tanh(c_new)
        return h_new, c_new

    # ----- layer 0: hoisted input projection for ALL time steps (one matmul) ----
    gx_scr[...] = (
        jnp.dot(x_ref[...], wih0_ref[...], preferred_element_type=jnp.float32)
        + b0_ref[...]
    )
    h_scr[...] = jnp.zeros_like(h_scr)
    c_scr[...] = jnp.zeros_like(c_scr)

    @pl.loop(0, T, unroll=True)
    def _(t):
        row = pl.multiple_of(t * Bp, _SUBLANES)
        gates = gx_scr[pl.ds(row, Bp), :] + jnp.dot(
            h_scr[...], whh0_ref[...], preferred_element_type=jnp.float32)
        h_new, c_new = gate_update(gates, c_scr[...])
        h_scr[...] = h_new
        c_scr[...] = c_new
        hseq_scr[pl.ds(row, Bp), :] = h_new          # layer-0 output sequence

    # ----- layer 1: input projection hoisted over the whole layer-0 sequence ----
    gx_scr[...] = (
        jnp.dot(hseq_scr[...], wih1_ref[...], preferred_element_type=jnp.float32)
        + b1_ref[...]
    )
    h_scr[...] = jnp.zeros_like(h_scr)
    c_scr[...] = jnp.zeros_like(c_scr)
    acc_scr[...] = jnp.zeros_like(acc_scr)

    @pl.loop(0, T, unroll=True)
    def _(t):
        row = pl.multiple_of(t * Bp, _SUBLANES)
        gates = gx_scr[pl.ds(row, Bp), :] + jnp.dot(
            h_scr[...], whh1_ref[...], preferred_element_type=jnp.float32)
        h_new, c_new = gate_update(gates, c_scr[...])
        h_scr[...] = h_new
        c_scr[...] = c_new
        # Fused FC: acc += h_t @ W_fc[t]  ==  flatten(B, T*H) @ W_fc  (no reshape/transpose)
        acc_scr[...] += jnp.dot(h_new, wfc_ref[t],
                                preferred_element_type=jnp.float32)

    out_ref[...] = acc_scr[...] + bfc_ref[...]


# ---------------------------------------------------------------------------
# Wrapper: pad batch to a sublane multiple, go time-major, single pallas_call.
# ---------------------------------------------------------------------------
@jax.jit
def rnn_forward(x_btf, params):
    # x_btf: (B, T, In) batch-first, like PyTorch.
    B, T, In = x_btf.shape
    Bp = ((B + _SUBLANES - 1) // _SUBLANES) * _SUBLANES
    p0, p1 = params["lstm"]                       # NUM_LAYERS == 2 (as in the module)
    H = p0["w_hh_t"].shape[0]
    C = params["fc"]["bias"].shape[1]

    x_pad = jnp.pad(x_btf, ((0, Bp - B), (0, 0), (0, 0)))
    x_tb = jnp.transpose(x_pad, (1, 0, 2)).reshape(T * Bp, In)   # time-major rows
    wfc3 = params["fc"]["w_t"].reshape(T, H, C)                  # (T*H, C) -> (T, H, C)

    out_pad = pl.pallas_call(
        _fused_rnn_kernel,
        out_shape=jax.ShapeDtypeStruct((Bp, C), jnp.float32),
        scratch_shapes=[
            pltpu.VMEM((T * Bp, 4 * H), jnp.float32),   # hoisted gate input projections
            pltpu.VMEM((T * Bp, H), jnp.float32),       # layer-0 hidden sequence
            pltpu.VMEM((Bp, H), jnp.float32),           # h carry
            pltpu.VMEM((Bp, H), jnp.float32),           # c carry
            pltpu.VMEM((Bp, C), jnp.float32),           # FC accumulator
        ],
    )(x_tb,
      p0["w_ih_t"], p0["w_hh_t"], p0["bias"],
      p1["w_ih_t"], p1["w_hh_t"], p1["bias"],
      wfc3, params["fc"]["bias"])
    return out_pad[:B]


def init_params(key):
    k = 1.0 / jnp.sqrt(jnp.float32(HIDDEN_SIZE))
    params = {"lstm": []}
    for layer in range(NUM_LAYERS):
        in_dim = INPUT_SIZE if layer == 0 else HIDDEN_SIZE
        key, k1, k2, k3, k4 = jax.random.split(key, 5)
        w_ih = jax.random.uniform(k1, (4 * HIDDEN_SIZE, in_dim), jnp.float32, -k, k)
        w_hh = jax.random.uniform(k2, (4 * HIDDEN_SIZE, HIDDEN_SIZE), jnp.float32, -k, k)
        b_ih = jax.random.uniform(k3, (4 * HIDDEN_SIZE,), jnp.float32, -k, k)
        b_hh = jax.random.uniform(k4, (4 * HIDDEN_SIZE,), jnp.float32, -k, k)
        params["lstm"].append({
            "w_ih_t": w_ih.T,                                   # (In, 4H)
            "w_hh_t": w_hh.T,                                   # (H, 4H)
            "bias": (b_ih + b_hh).reshape(1, 4 * HIDDEN_SIZE),  # (1, 4H)
        })
    key, k5, k6 = jax.random.split(key, 3)
    kf = 1.0 / jnp.sqrt(jnp.float32(HIDDEN_SIZE * SEQ_LEN))
    w_fc = jax.random.uniform(k5, (NUM_CLASSES, HIDDEN_SIZE * SEQ_LEN), jnp.float32, -kf, kf)
    b_fc = jax.random.uniform(k6, (NUM_CLASSES,), jnp.float32, -kf, kf)
    params["fc"] = {"w_t": w_fc.T, "bias": b_fc.reshape(1, NUM_CLASSES)}
    return params


# Pure-JAX reference (lax.scan LSTM) to validate the Pallas path.
def _reference_forward(x_btf, params):
    x_tbf = jnp.transpose(x_btf, (1, 0, 2))
    h_seq = x_tbf
    for layer in range(NUM_LAYERS):
        p = params["lstm"][layer]

        def step(carry, x_t, p=p):
            h_prev, c_prev = carry
            gates = x_t @ p["w_ih_t"] + h_prev @ p["w_hh_t"] + p["bias"]
            H = HIDDEN_SIZE
            i = jax.nn.sigmoid(gates[:, :H])
            f = jax.nn.sigmoid(gates[:, H:2 * H])
            g = jnp.tanh(gates[:, 2 * H:3 * H])
            o = jax.nn.sigmoid(gates[:, 3 * H:])
            c = f * c_prev + i * g
            h = o * jnp.tanh(c)
            return (h, c), h

        init = (jnp.zeros((x_btf.shape[0], HIDDEN_SIZE), jnp.float32),) * 2
        _, h_seq = jax.lax.scan(step, init, h_seq)
    out = jnp.transpose(h_seq, (1, 0, 2)).reshape(x_btf.shape[0], -1)
    return out @ params["fc"]["w_t"] + params["fc"]["bias"]


if __name__ == "__main__":
    key = jax.random.PRNGKey(0)
    key, pkey, xkey = jax.random.split(key, 3)
    params = init_params(pkey)
    x = jax.random.normal(xkey, (BATCH, SEQ_LEN, INPUT_SIZE), jnp.float32)

    out = rnn_forward(x, params)
    out = jax.block_until_ready(out)

    ref = _reference_forward(x, params)
    assert out.shape == (BATCH, NUM_CLASSES)
    assert jnp.allclose(out, ref, rtol=1e-5, atol=1e-5), "mismatch vs JAX reference"

    print("KERNEL_OK")
</pallas_src>

<mosaic_0001>
module attributes {stable_mosaic.version = 11 : i64} {
  func.func @_fused_rnn_kernel(%arg0: memref<64x16xf32, #tpu.memory_space<vmem>>, %arg1: memref<16x128xf32, #tpu.memory_space<vmem>>, %arg2: memref<32x128xf32, #tpu.memory_space<vmem>>, %arg3: memref<1x128xf32, #tpu.memory_space<vmem>>, %arg4: memref<32x128xf32, #tpu.memory_space<vmem>>, %arg5: memref<32x128xf32, #tpu.memory_space<vmem>>, %arg6: memref<1x128xf32, #tpu.memory_space<vmem>>, %arg7: memref<8x32x10xf32, #tpu.memory_space<vmem>>, %arg8: memref<1x10xf32, #tpu.memory_space<vmem>>, %arg9: memref<8x10xf32, #tpu.memory_space<vmem>>, %arg10: memref<64x128xf32, #tpu.memory_space<vmem>>, %arg11: memref<64x32xf32, #tpu.memory_space<vmem>>, %arg12: memref<8x32xf32, #tpu.memory_space<vmem>>, %arg13: memref<8x32xf32, #tpu.memory_space<vmem>>, %arg14: memref<8x10xf32, #tpu.memory_space<vmem>>) attributes {dimension_semantics = [], scalar_prefetch = 0 : i64, scratch_operands = 5 : i64, tpu.core_type = #tpu.core_type<tc>} {
    %c0 = arith.constant 0 : index
    %c0_0 = arith.constant 0 : index
    %0 = vector.load %arg0[%c0, %c0_0] : memref<64x16xf32, #tpu.memory_space<vmem>>, vector<64x16xf32>
    %c0_1 = arith.constant 0 : index
    %c0_2 = arith.constant 0 : index
    %1 = vector.load %arg1[%c0_1, %c0_2] : memref<16x128xf32, #tpu.memory_space<vmem>>, vector<16x128xf32>
    %cst = arith.constant dense<0.000000e+00> : vector<64x128xf32>
    %2 = tpu.matmul %0, %1, %cst {dimension_numbers = #tpu.dot_dimension_numbers<[1], [0], [0], [1], [0, 0, 1, 1], [], []>} : vector<64x16xf32>, vector<16x128xf32>, vector<64x128xf32> -> vector<64x128xf32>
    %c0_3 = arith.constant 0 : index
    %c0_4 = arith.constant 0 : index
    %3 = vector.load %arg3[%c0_3, %c0_4] : memref<1x128xf32, #tpu.memory_space<vmem>>, vector<1x128xf32>
    %4 = vector.broadcast %3 : vector<1x128xf32> to vector<64x128xf32>
    %5 = arith.addf %2, %4 : vector<64x128xf32>
    %c0_5 = arith.constant 0 : index
    %c0_6 = arith.constant 0 : index
    %6 = vector.load %arg10[%c0_5, %c0_6] : memref<64x128xf32, #tpu.memory_space<vmem>>, vector<64x128xf32>
    tpu.vector_store %arg10[%c0_5, %c0_6], %5 {strides = array<i32>} : memref<64x128xf32, #tpu.memory_space<vmem>>, vector<64x128xf32>,
    %cst_7 = arith.constant 0.000000e+00 : f32
    %7 = vector.broadcast %cst_7 : f32 to vector<8x32xf32>
    %c0_8 = arith.constant 0 : index
    %c0_9 = arith.constant 0 : index
    %8 = vector.load %arg12[%c0_8, %c0_9] : memref<8x32xf32, #tpu.memory_space<vmem>>, vector<8x32xf32>
    tpu.vector_store %arg12[%c0_8, %c0_9], %7 {strides = array<i32>} : memref<8x32xf32, #tpu.memory_space<vmem>>, vector<8x32xf32>,
    %cst_10 = arith.constant 0.000000e+00 : f32
    %9 = vector.broadcast %cst_10 : f32 to vector<8x32xf32>
    %c0_11 = arith.constant 0 : index
    %c0_12 = arith.constant 0 : index
    %10 = vector.load %arg13[%c0_11, %c0_12] : memref<8x32xf32, #tpu.memory_space<vmem>>, vector<8x32xf32>
    tpu.vector_store %arg13[%c0_11, %c0_12], %9 {strides = array<i32>} : memref<8x32xf32, #tpu.memory_space<vmem>>, vector<8x32xf32>,
    %c0_i32 = arith.constant 0 : i32
    %c1_i32 = arith.constant 1 : i32
    %11 = arith.muli %c0_i32, %c1_i32 : i32
    %c0_i32_13 = arith.constant 0 : i32
    %12 = arith.addi %c0_i32_13, %11 : i32
    %c8_i32 = arith.constant 8 : i32
    %13 = arith.muli %12, %c8_i32 : i32
    %14 = tpu.assume_multiple %13, 8 : i32
    %15 = arith.index_cast %14 : i32 to index
    %c0_14 = arith.constant 0 : index
    %16 = vector.load %arg10[%15, %c0_14] : memref<64x128xf32, #tpu.memory_space<vmem>>, vector<8x128xf32>
    %c0_15 = arith.constant 0 : index
    %c0_16 = arith.constant 0 : index
    %17 = vector.load %arg12[%c0_15, %c0_16] : memref<8x32xf32, #tpu.memory_space<vmem>>, vector<8x32xf32>
    %c0_17 = arith.constant 0 : index
    %c0_18 = arith.constant 0 : index
    %18 = vector.load %arg2[%c0_17, %c0_18] : memref<32x128xf32, #tpu.memory_space<vmem>>, vector<32x128xf32>
    %cst_19 = arith.constant dense<0.000000e+00> : vector<8x128xf32>
    %19 = tpu.matmul %17, %18, %cst_19 {dimension_numbers = #tpu.dot_dimension_numbers<[1], [0], [0], [1], [0, 0, 1, 1], [], []>} : vector<8x32xf32>, vector<32x128xf32>, vector<8x128xf32> -> vector<8x128xf32>
    %20 = arith.addf %16, %19 : vector<8x128xf32>
    %c0_20 = arith.constant 0 : index
    %c0_21 = arith.constant 0 : index
    %21 = vector.load %arg13[%c0_20, %c0_21] : memref<8x32xf32, #tpu.memory_space<vmem>>, vector<8x32xf32>
    %22 = vector.extract_strided_slice %20 {offsets = [0, 0], sizes = [8, 32], strides = [1, 1]} : vector<8x128xf32> to vector<8x32xf32>
    %23 = arith.negf %22 : vector<8x32xf32>
    %24 = math.exp %23 : vector<8x32xf32>
    %cst_22 = arith.constant 1.000000e+00 : f32
    %25 = vector.broadcast %cst_22 : f32 to vector<8x32xf32>
    %26 = arith.addf %25, %24 : vector<8x32xf32>
    %27 = arith.divf %25, %26 : vector<8x32xf32>
    %28 = vector.extract_strided_slice %20 {offsets = [0, 32], sizes = [8, 32], strides = [1, 1]} : vector<8x128xf32> to vector<8x32xf32>
    %29 = arith.negf %28 : vector<8x32xf32>
    %30 = math.exp %29 : vector<8x32xf32>
    %cst_23 = arith.constant 1.000000e+00 : f32
    %31 = vector.broadcast %cst_23 : f32 to vector<8x32xf32>
    %32 = arith.addf %31, %30 : vector<8x32xf32>
    %33 = arith.divf %31, %32 : vector<8x32xf32>
    %34 = vector.extract_strided_slice %20 {offsets = [0, 64], sizes = [8, 32], strides = [1, 1]} : vector<8x128xf32> to vector<8x32xf32>
    %35 = math.tanh %34 : vector<8x32xf32>
    %36 = vector.extract_strided_slice %20 {offsets = [0, 96], sizes = [8, 32], strides = [1, 1]} : vector<8x128xf32> to vector<8x32xf32>
    %37 = arith.negf %36 : vector<8x32xf32>
    %38 = math.exp %37 : vector<8x32xf32>
    %cst_24 = arith.constant 1.000000e+00 : f32
    %39 = vector.broadcast %cst_24 : f32 to vector<8x32xf32>
    %40 = arith.addf %39, %38 : vector<8x32xf32>
    %41 = arith.divf %39, %40 : vector<8x32xf32>
    %42 = arith.mulf %33, %21 : vector<8x32xf32>
    %43 = arith.mulf %27, %35 : vector<8x32xf32>
    %44 = arith.addf %42, %43 : vector<8x32xf32>
    %45 = math.tanh %44 : vector<8x32xf32>
    %46 = arith.mulf %41, %45 : vector<8x32xf32>
    %c0_25 = arith.constant 0 : index
    %c0_26 = arith.constant 0 : index
    %47 = vector.load %arg12[%c0_25, %c0_26] : memref<8x32xf32, #tpu.memory_space<vmem>>, vector<8x32xf32>
    tpu.vector_store %arg12[%c0_25, %c0_26], %46 {strides = array<i32>} : memref<8x32xf32, #tpu.memory_space<vmem>>, vector<8x32xf32>,
    %c0_27 = arith.constant 0 : index
    %c0_28 = arith.constant 0 : index
    %48 = vector.load %arg13[%c0_27, %c0_28] : memref<8x32xf32, #tpu.memory_space<vmem>>, vector<8x32xf32>
    tpu.vector_store %arg13[%c0_27, %c0_28], %44 {strides = array<i32>} : memref<8x32xf32, #tpu.memory_space<vmem>>, vector<8x32xf32>,
    %49 = arith.index_cast %14 : i32 to index
    %c0_29 = arith.constant 0 : index
    %50 = vector.load %arg11[%49, %c0_29] : memref<64x32xf32, #tpu.memory_space<vmem>>, vector<8x32xf32>
    tpu.vector_store %arg11[%49, %c0_29], %46 {strides = array<i32>} : memref<64x32xf32, #tpu.memory_space<vmem>>, vector<8x32xf32>,
    %c1_i32_30 = arith.constant 1 : i32
    %c1_i32_31 = arith.constant 1 : i32
    %51 = arith.muli %c1_i32_30, %c1_i32_31 : i32
    %c0_i32_32 = arith.constant 0 : i32
    %52 = arith.addi %c0_i32_32, %51 : i32
    %c8_i32_33 = arith.constant 8 : i32
    %53 = arith.muli %52, %c8_i32_33 : i32
    %54 = tpu.assume_multiple %53, 8 : i32
    %55 = arith.index_cast %54 : i32 to index
    %c0_34 = arith.constant 0 : index
    %56 = vector.load %arg10[%55, %c0_34] : memref<64x128xf32, #tpu.memory_space<vmem>>, vector<8x128xf32>
    %c0_35 = arith.constant 0 : index
    %c0_36 = arith.constant 0 : index
    %57 = vector.load %arg12[%c0_35, %c0_36] : memref<8x32xf32, #tpu.memory_space<vmem>>, vector<8x32xf32>
    %c0_37 = arith.constant 0 : index
    %c0_38 = arith.constant 0 : index
    %58 = vector.load %arg2[%c0_37, %c0_38] : memref<32x128xf32, #tpu.memory_space<vmem>>, vector<32x128xf32>
    %cst_39 = arith.constant dense<0.000000e+00> : vector<8x128xf32>
    %59 = tpu.matmul %57, %58, %cst_39 {dimension_numbers = #tpu.dot_dimension_numbers<[1], [0], [0], [1], [0, 0, 1, 1], [], []>} : vector<8x32xf32>, vector<32x128xf32>, vector<8x128xf32> -> vector<8x128xf32>
    %60 = arith.addf %56, %59 : vector<8x128xf32>
    %c0_40 = arith.constant 0 : index
    %c0_41 = arith.constant 0 : index
    %61 = vector.load %arg13[%c0_40, %c0_41] : memref<8x32xf32, #tpu.memory_space<vmem>>, vector<8x32xf32>
    %62 = vector.extract_strided_slice %60 {offsets = [0, 0], sizes = [8, 32], strides = [1, 1]} : vector<8x128xf32> to vector<8x32xf32>
    %63 = arith.negf %62 : vector<8x32xf32>
    %64 = math.exp %63 : vector<8x32xf32>
    %cst_42 = arith.constant 1.000000e+00 : f32
    %65 = vector.broadcast %cst_42 : f32 to vector<8x32xf32>
    %66 = arith.addf %65, %64 : vector<8x32xf32>
    %67 = arith.divf %65, %66 : vector<8x32xf32>
    %68 = vector.extract_strided_slice %60 {offsets = [0, 32], sizes = [8, 32], strides = [1, 1]} : vector<8x128xf32> to vector<8x32xf32>
    %69 = arith.negf %68 : vector<8x32xf32>
    %70 = math.exp %69 : vector<8x32xf32>
    %cst_43 = arith.constant 1.000000e+00 : f32
    %71 = vector.broadcast %cst_43 : f32 to vector<8x32xf32>
    %72 = arith.addf %71, %70 : vector<8x32xf32>
    %73 = arith.divf %71, %72 : vector<8x32xf32>
    %74 = vector.extract_strided_slice %60 {offsets = [0, 64], sizes = [8, 32], strides = [1, 1]} : vector<8x128xf32> to vector<8x32xf32>
    %75 = math.tanh %74 : vector<8x32xf32>
    %76 = vector.extract_strided_slice %60 {offsets = [0, 96], sizes = [8, 32], strides = [1, 1]} : vector<8x128xf32> to vector<8x32xf32>
    %77 = arith.negf %76 : vector<8x32xf32>
    %78 = math.exp %77 : vector<8x32xf32>
    %cst_44 = arith.constant 1.000000e+00 : f32
    %79 = vector.broadcast %cst_44 : f32 to vector<8x32xf32>
    %80 = arith.addf %79, %78 : vector<8x32xf32>
    %81 = arith.divf %79, %80 : vector<8x32xf32>
    %82 = arith.mulf %73, %61 : vector<8x32xf32>
    %83 = arith.mulf %67, %75 : vector<8x32xf32>
    %84 = arith.addf %82, %83 : vector<8x32xf32>
    %85 = math.tanh %84 : vector<8x32xf32>
    %86 = arith.mulf %81, %85 : vector<8x32xf32>
    %c0_45 = arith.constant 0 : index
    %c0_46 = arith.constant 0 : index
    %87 = vector.load %arg12[%c0_45, %c0_46] : memref<8x32xf32, #tpu.memory_space<vmem>>, vector<8x32xf32>
    tpu.vector_store %arg12[%c0_45, %c0_46], %86 {strides = array<i32>} : memref<8x32xf32, #tpu.memory_space<vmem>>, vector<8x32xf32>,
    %c0_47 = arith.constant 0 : index
    %c0_48 = arith.constant 0 : index
    %88 = vector.load %arg13[%c0_47, %c0_48] : memref<8x32xf32, #tpu.memory_space<vmem>>, vector<8x32xf32>
    tpu.vector_store %arg13[%c0_47, %c0_48], %84 {strides = array<i32>} : memref<8x32xf32, #tpu.memory_space<vmem>>, vector<8x32xf32>,
    %89 = arith.index_cast %54 : i32 to index
    %c0_49 = arith.constant 0 : index
    %90 = vector.load %arg11[%89, %c0_49] : memref<64x32xf32, #tpu.memory_space<vmem>>, vector<8x32xf32>
    tpu.vector_store %arg11[%89, %c0_49], %86 {strides = array<i32>} : memref<64x32xf32, #tpu.memory_space<vmem>>, vector<8x32xf32>,
    %c2_i32 = arith.constant 2 : i32
    %c1_i32_50 = arith.constant 1 : i32
    %91 = arith.muli %c2_i32, %c1_i32_50 : i32
    %c0_i32_51 = arith.constant 0 : i32
    %92 = arith.addi %c0_i32_51, %91 : i32
    %c8_i32_52 = arith.constant 8 : i32
    %93 = arith.muli %92, %c8_i32_52 : i32
    %94 = tpu.assume_multiple %93, 8 : i32
    %95 = arith.index_cast %94 : i32 to index
    %c0_53 = arith.constant 0 : index
    %96 = vector.load %arg10[%95, %c0_53] : memref<64x128xf32, #tpu.memory_space<vmem>>, vector<8x128xf32>
    %c0_54 = arith.constant 0 : index
    %c0_55 = arith.constant 0 : index
    %97 = vector.load %arg12[%c0_54, %c0_55] : memref<8x32xf32, #tpu.memory_space<vmem>>, vector<8x32xf32>
    %c0_56 = arith.constant 0 : index
    %c0_57 = arith.constant 0 : index
    %98 = vector.load %arg2[%c0_56, %c0_57] : memref<32x128xf32, #tpu.memory_space<vmem>>, vector<32x128xf32>
    %cst_58 = arith.constant dense<0.000000e+00> : vector<8x128xf32>
    %99 = tpu.matmul %97, %98, %cst_58 {dimension_numbers = #tpu.dot_dimension_numbers<[1], [0], [0], [1], [0, 0, 1, 1], [], []>} : vector<8x32xf32>, vector<32x128xf32>, vector<8x128xf32> -> vector<8x128xf32>
    %100 = arith.addf %96, %99 : vector<8x128xf32>
    %c0_59 = arith.constant 0 : index
    %c0_60 = arith.constant 0 : index
    %101 = vector.load %arg13[%c0_59, %c0_60] : memref<8x32xf32, #tpu.memory_space<vmem>>, vector<8x32xf32>
    %102 = vector.extract_strided_slice %100 {offsets = [0, 0], sizes = [8, 32], strides = [1, 1]} : vector<8x128xf32> to vector<8x32xf32>
    %103 = arith.negf %102 : vector<8x32xf32>
    %104 = math.exp %103 : vector<8x32xf32>
    %cst_61 = arith.constant 1.000000e+00 : f32
    %105 = vector.broadcast %cst_61 : f32 to vector<8x32xf32>
    %106 = arith.addf %105, %104 : vector<8x32xf32>
    %107 = arith.divf %105, %106 : vector<8x32xf32>
    %108 = vector.extract_strided_slice %100 {offsets = [0, 32], sizes = [8, 32], strides = [1, 1]} : vector<8x128xf32> to vector<8x32xf32>
    %109 = arith.negf %108 : vector<8x32xf32>
    %110 = math.exp %109 : vector<8x32xf32>
    %cst_62 = arith.constant 1.000000e+00 : f32
    %111 = vector.broadcast %cst_62 : f32 to vector<8x32xf32>
    %112 = arith.addf %111, %110 : vector<8x32xf32>
    %113 = arith.divf %111, %112 : vector<8x32xf32>
    %114 = vector.extract_strided_slice %100 {offsets = [0, 64], sizes = [8, 32], strides = [1, 1]} : vector<8x128xf32> to vector<8x32xf32>
    %115 = math.tanh %114 : vector<8x32xf32>
    %116 = vector.extract_strided_slice %100 {offsets = [0, 96], sizes = [8, 32], strides = [1, 1]} : vector<8x128xf32> to vector<8x32xf32>
    %117 = arith.negf %116 : vector<8x32xf32>
    %118 = math.exp %117 : vector<8x32xf32>
    %cst_63 = arith.constant 1.000000e+00 : f32
    %119 = vector.broadcast %cst_63 : f32 to vector<8x32xf32>
    %120 = arith.addf %119, %118 : vector<8x32xf32>
    %121 = arith.divf %119, %120 : vector<8x32xf32>
    %122 = arith.mulf %113, %101 : vector<8x32xf32>
    %123 = arith.mulf %107, %115 : vector<8x32xf32>
    %124 = arith.addf %122, %123 : vector<8x32xf32>
    %125 = math.tanh %124 : vector<8x32xf32>
    %126 = arith.mulf %121, %125 : vector<8x32xf32>
    %c0_64 = arith.constant 0 : index
    %c0_65 = arith.constant 0 : index
    %127 = vector.load %arg12[%c0_64, %c0_65] : memref<8x32xf32, #tpu.memory_space<vmem>>, vector<8x32xf32>
    tpu.vector_store %arg12[%c0_64, %c0_65], %126 {strides = array<i32>} : memref<8x32xf32, #tpu.memory_space<vmem>>, vector<8x32xf32>,
    %c0_66 = arith.constant 0 : index
    %c0_67 = arith.constant 0 : index
    %128 = vector.load %arg13[%c0_66, %c0_67] : memref<8x32xf32, #tpu.memory_space<vmem>>, vector<8x32xf32>
    tpu.vector_store %arg13[%c0_66, %c0_67], %124 {strides = array<i32>} : memref<8x32xf32, #tpu.memory_space<vmem>>, vector<8x32xf32>,
    %129 = arith.index_cast %94 : i32 to index
    %c0_68 = arith.constant 0 : index
    %130 = vector.load %arg11[%129, %c0_68] : memref<64x32xf32, #tpu.memory_space<vmem>>, vector<8x32xf32>
    tpu.vector_store %arg11[%129, %c0_68], %126 {strides = array<i32>} : memref<64x32xf32, #tpu.memory_space<vmem>>, vector<8x32xf32>,
    %c3_i32 = arith.constant 3 : i32
    %c1_i32_69 = arith.constant 1 : i32
    %131 = arith.muli %c3_i32, %c1_i32_69 : i32
    %c0_i32_70 = arith.constant 0 : i32
    %132 = arith.addi %c0_i32_70, %131 : i32
    %c8_i32_71 = arith.constant 8 : i32
    %133 = arith.muli %132, %c8_i32_71 : i32
    %134 = tpu.assume_multiple %133, 8 : i32
    %135 = arith.index_cast %134 : i32 to index
    %c0_72 = arith.constant 0 : index
    %136 = vector.load %arg10[%135, %c0_72] : memref<64x128xf32, #tpu.memory_space<vmem>>, vector<8x128xf32>
    %c0_73 = arith.constant 0 : index
    %c0_74 = arith.constant 0 : index
    %137 = vector.load %arg12[%c0_73, %c0_74] : memref<8x32xf32, #tpu.memory_space<vmem>>, vector<8x32xf32>
    %c0_75 = arith.constant 0 : index
    %c0_76 = arith.constant 0 : index
    %138 = vector.load %arg2[%c0_75, %c0_76] : memref<32x128xf32, #tpu.memory_space<vmem>>, vector<32x128xf32>
    %cst_77 = arith.constant dense<0.000000e+00> : vector<8x128xf32>
    %139 = tpu.matmul %137, %138, %cst_77 {dimension_numbers = #tpu.dot_dimension_numbers<[1], [0], [0], [1], [0, 0, 1, 1], [], []>} : vector<8x32xf32>, vector<32x128xf32>, vector<8x128xf32> -> vector<8x128xf32>
    %140 = arith.addf %136, %139 : vector<8x128xf32>
    %c0_78 = arith.constant 0 : index
    %c0_79 = arith.constant 0 : index
    %141 = vector.load %arg13[%c0_78, %c0_79] : memref<8x32xf32, #tpu.memory_space<vmem>>, vector<8x32xf32>
    %142 = vector.extract_strided_slice %140 {offsets = [0, 0], sizes = [8, 32], strides = [1, 1]} : vector<8x128xf32> to vector<8x32xf32>
    %143 = arith.negf %142 : vector<8x32xf32>
    %144 = math.exp %143 : vector<8x32xf32>
    %cst_80 = arith.constant 1.000000e+00 : f32
    %145 = vector.broadcast %cst_80 : f32 to vector<8x32xf32>
    %146 = arith.addf %145, %144 : vector<8x32xf32>
    %147 = arith.divf %145, %146 : vector<8x32xf32>
    %148 = vector.extract_strided_slice %140 {offsets = [0, 32], sizes = [8, 32], strides = [1, 1]} : vector<8x128xf32> to vector<8x32xf32>
    %149 = arith.negf %148 : vector<8x32xf32>
    %150 = math.exp %149 : vector<8x32xf32>
    %cst_81 = arith.constant 1.000000e+00 : f32
    %151 = vector.broadcast %cst_81 : f32 to vector<8x32xf32>
    %152 = arith.addf %151, %150 : vector<8x32xf32>
    %153 = arith.divf %151, %152 : vector<8x32xf32>
    %154 = vector.extract_strided_slice %140 {offsets = [0, 64], sizes = [8, 32], strides = [1, 1]} : vector<8x128xf32> to vector<8x32xf32>
    %155 = math.tanh %154 : vector<8x32xf32>
    %156 = vector.extract_strided_slice %140 {offsets = [0, 96], sizes = [8, 32], strides = [1, 1]} : vector<8x128xf32> to vector<8x32xf32>
    %157 = arith.negf %156 : vector<8x32xf32>
    %158 = math.exp %157 : vector<8x32xf32>
    %cst_82 = arith.constant 1.000000e+00 : f32
    %159 = vector.broadcast %cst_82 : f32 to vector<8x32xf32>
    %160 = arith.addf %159, %158 : vector<8x32xf32>
    %161 = arith.divf %159, %160 : vector<8x32xf32>
    %162 = arith.mulf %153, %141 : vector<8x32xf32>
    %163 = arith.mulf %147, %155 : vector<8x32xf32>
    %164 = arith.addf %162, %163 : vector<8x32xf32>
    %165 = math.tanh %164 : vector<8x32xf32>
    %166 = arith.mulf %161, %165 : vector<8x32xf32>
    %c0_83 = arith.constant 0 : index
    %c0_84 = arith.constant 0 : index
    %167 = vector.load %arg12[%c0_83, %c0_84] : memref<8x32xf32, #tpu.memory_space<vmem>>, vector<8x32xf32>
    tpu.vector_store %arg12[%c0_83, %c0_84], %166 {strides = array<i32>} : memref<8x32xf32, #tpu.memory_space<vmem>>, vector<8x32xf32>,
    %c0_85 = arith.constant 0 : index
    %c0_86 = arith.constant 0 : index
    %168 = vector.load %arg13[%c0_85, %c0_86] : memref<8x32xf32, #tpu.memory_space<vmem>>, vector<8x32xf32>
    tpu.vector_store %arg13[%c0_85, %c0_86], %164 {strides = array<i32>} : memref<8x32xf32, #tpu.memory_space<vmem>>, vector<8x32xf32>,
    %169 = arith.index_cast %134 : i32 to index
    %c0_87 = arith.constant 0 : index
    %170 = vector.load %arg11[%169, %c0_87] : memref<64x32xf32, #tpu.memory_space<vmem>>, vector<8x32xf32>
    tpu.vector_store %arg11[%169, %c0_87], %166 {strides = array<i32>} : memref<64x32xf32, #tpu.memory_space<vmem>>, vector<8x32xf32>,
    %c4_i32 = arith.constant 4 : i32
    %c1_i32_88 = arith.constant 1 : i32
    %171 = arith.muli %c4_i32, %c1_i32_88 : i32
    %c0_i32_89 = arith.constant 0 : i32
    %172 = arith.addi %c0_i32_89, %171 : i32
    %c8_i32_90 = arith.constant 8 : i32
    %173 = arith.muli %172, %c8_i32_90 : i32
    %174 = tpu.assume_multiple %173, 8 : i32
    %175 = arith.index_cast %174 : i32 to index
    %c0_91 = arith.constant 0 : index
    %176 = vector.load %arg10[%175, %c0_91] : memref<64x128xf32, #tpu.memory_space<vmem>>, vector<8x128xf32>
    %c0_92 = arith.constant 0 : index
    %c0_93 = arith.constant 0 : index
    %177 = vector.load %arg12[%c0_92, %c0_93] : memref<8x32xf32, #tpu.memory_space<vmem>>, vector<8x32xf32>
    %c0_94 = arith.constant 0 : index
    %c0_95 = arith.constant 0 : index
    %178 = vector.load %arg2[%c0_94, %c0_95] : memref<32x128xf32, #tpu.memory_space<vmem>>, vector<32x128xf32>
    %cst_96 = arith.constant dense<0.000000e+00> : vector<8x128xf32>
    %179 = tpu.matmul %177, %178, %cst_96 {dimension_numbers = #tpu.dot_dimension_numbers<[1], [0], [0], [1], [0, 0, 1, 1], [], []>} : vector<8x32xf32>, vector<32x128xf32>, vector<8x128xf32> -> vector<8x128xf32>
    %180 = arith.addf %176, %179 : vector<8x128xf32>
    %c0_97 = arith.constant 0 : index
    %c0_98 = arith.constant 0 : index
    %181 = vector.load %arg13[%c0_97, %c0_98] : memref<8x32xf32, #tpu.memory_space<vmem>>, vector<8x32xf32>
    %182 = vector.extract_strided_slice %180 {offsets = [0, 0], sizes = [8, 32], strides = [1, 1]} : vector<8x128xf32> to vector<8x32xf32>
    %183 = arith.negf %182 : vector<8x32xf32>
    %184 = math.exp %183 : vector<8x32xf32>
    %cst_99 = arith.constant 1.000000e+00 : f32
    %185 = vector.broadcast %cst_99 : f32 to vector<8x32xf32>
    %186 = arith.addf %185, %184 : vector<8x32xf32>
    %187 = arith.divf %185, %186 : vector<8x32xf32>
    %188 = vector.extract_strided_slice %180 {offsets = [0, 32], sizes = [8, 32], strides = [1, 1]} : vector<8x128xf32> to vector<8x32xf32>
    %189 = arith.negf %188 : vector<8x32xf32>
    %190 = math.exp %189 : vector<8x32xf32>
    %cst_100 = arith.constant 1.000000e+00 : f32
    %191 = vector.broadcast %cst_100 : f32 to vector<8x32xf32>
    %192 = arith.addf %191, %190 : vector<8x32xf32>
    %193 = arith.divf %191, %192 : vector<8x32xf32>
    %194 = vector.extract_strided_slice %180 {offsets = [0, 64], sizes = [8, 32], strides = [1, 1]} : vector<8x128xf32> to vector<8x32xf32>
    %195 = math.tanh %194 : vector<8x32xf32>
    %196 = vector.extract_strided_slice %180 {offsets = [0, 96], sizes = [8, 32], strides = [1, 1]} : vector<8x128xf32> to vector<8x32xf32>
    %197 = arith.negf %196 : vector<8x32xf32>
    %198 = math.exp %197 : vector<8x32xf32>
    %cst_101 = arith.constant 1.000000e+00 : f32
    %199 = vector.broadcast %cst_101 : f32 to vector<8x32xf32>
    %200 = arith.addf %199, %198 : vector<8x32xf32>
    %201 = arith.divf %199, %200 : vector<8x32xf32>
    %202 = arith.mulf %193, %181 : vector<8x32xf32>
    %203 = arith.mulf %187, %195 : vector<8x32xf32>
    %204 = arith.addf %202, %203 : vector<8x32xf32>
    %205 = math.tanh %204 : vector<8x32xf32>
    %206 = arith.mulf %201, %205 : vector<8x32xf32>
    %c0_102 = arith.constant 0 : index
    %c0_103 = arith.constant 0 : index
    %207 = vector.load %arg12[%c0_102, %c0_103] : memref<8x32xf32, #tpu.memory_space<vmem>>, vector<8x32xf32>
    tpu.vector_store %arg12[%c0_102, %c0_103], %206 {strides = array<i32>} : memref<8x32xf32, #tpu.memory_space<vmem>>, vector<8x32xf32>,
    %c0_104 = arith.constant 0 : index
    %c0_105 = arith.constant 0 : index
    %208 = vector.load %arg13[%c0_104, %c0_105] : memref<8x32xf32, #tpu.memory_space<vmem>>, vector<8x32xf32>
    tpu.vector_store %arg13[%c0_104, %c0_105], %204 {strides = array<i32>} : memref<8x32xf32, #tpu.memory_space<vmem>>, vector<8x32xf32>,
    %209 = arith.index_cast %174 : i32 to index
    %c0_106 = arith.constant 0 : index
    %210 = vector.load %arg11[%209, %c0_106] : memref<64x32xf32, #tpu.memory_space<vmem>>, vector<8x32xf32>
    tpu.vector_store %arg11[%209, %c0_106], %206 {strides = array<i32>} : memref<64x32xf32, #tpu.memory_space<vmem>>, vector<8x32xf32>,
    %c5_i32 = arith.constant 5 : i32
    %c1_i32_107 = arith.constant 1 : i32
    %211 = arith.muli %c5_i32, %c1_i32_107 : i32
    %c0_i32_108 = arith.constant 0 : i32
    %212 = arith.addi %c0_i32_108, %211 : i32
    %c8_i32_109 = arith.constant 8 : i32
    %213 = arith.muli %212, %c8_i32_109 : i32
    %214 = tpu.assume_multiple %213, 8 : i32
    %215 = arith.index_cast %214 : i32 to index
    %c0_110 = arith.constant 0 : index
    %216 = vector.load %arg10[%215, %c0_110] : memref<64x128xf32, #tpu.memory_space<vmem>>, vector<8x128xf32>
    %c0_111 = arith.constant 0 : index
    %c0_112 = arith.constant 0 : index
    %217 = vector.load %arg12[%c0_111, %c0_112] : memref<8x32xf32, #tpu.memory_space<vmem>>, vector<8x32xf32>
    %c0_113 = arith.constant 0 : index
    %c0_114 = arith.constant 0 : index
    %218 = vector.load %arg2[%c0_113, %c0_114] : memref<32x128xf32, #tpu.memory_space<vmem>>, vector<32x128xf32>
    %cst_115 = arith.constant dense<0.000000e+00> : vector<8x128xf32>
    %219 = tpu.matmul %217, %218, %cst_115 {dimension_numbers = #tpu.dot_dimension_numbers<[1], [0], [0], [1], [0, 0, 1, 1], [], []>} : vector<8x32xf32>, vector<32x128xf32>, vector<8x128xf32> -> vector<8x128xf32>
    %220 = arith.addf %216, %219 : vector<8x128xf32>
    %c0_116 = arith.constant 0 : index
    %c0_117 = arith.constant 0 : index
    %221 = vector.load %arg13[%c0_116, %c0_117] : memref<8x32xf32, #tpu.memory_space<vmem>>, vector<8x32xf32>
    %222 = vector.extract_strided_slice %220 {offsets = [0, 0], sizes = [8, 32], strides = [1, 1]} : vector<8x128xf32> to vector<8x32xf32>
    %223 = arith.negf %222 : vector<8x32xf32>
    %224 = math.exp %223 : vector<8x32xf32>
    %cst_118 = arith.constant 1.000000e+00 : f32
    %225 = vector.broadcast %cst_118 : f32 to vector<8x32xf32>
    %226 = arith.addf %225, %224 : vector<8x32xf32>
    %227 = arith.divf %225, %226 : vector<8x32xf32>
    %228 = vector.extract_strided_slice %220 {offsets = [0, 32], sizes = [8, 32], strides = [1, 1]} : vector<8x128xf32> to vector<8x32xf32>
    %229 = arith.negf %228 : vector<8x32xf32>
    %230 = math.exp %229 : vector<8x32xf32>
    %cst_119 = arith.constant 1.000000e+00 : f32
    %231 = vector.broadcast %cst_119 : f32 to vector<8x32xf32>
    %232 = arith.addf %231, %230 : vector<8x32xf32>
    %233 = arith.divf %231, %232 : vector<8x32xf32>
    %234 = vector.extract_strided_slice %220 {offsets = [0, 64], sizes = [8, 32], strides = [1, 1]} : vector<8x128xf32> to vector<8x32xf32>
    %235 = math.tanh %234 : vector<8x32xf32>
    %236 = vector.extract_strided_slice %220 {offsets = [0, 96], sizes = [8, 32], strides = [1, 1]} : vector<8x128xf32> to vector<8x32xf32>
    %237 = arith.negf %236 : vector<8x32xf32>
    %238 = math.exp %237 : vector<8x32xf32>
    %cst_120 = arith.constant 1.000000e+00 : f32
    %239 = vector.broadcast %cst_120 : f32 to vector<8x32xf32>
    %240 = arith.addf %239, %238 : vector<8x32xf32>
    %241 = arith.divf %239, %240 : vector<8x32xf32>
    %242 = arith.mulf %233, %221 : vector<8x32xf32>
    %243 = arith.mulf %227, %235 : vector<8x32xf32>
    %244 = arith.addf %242, %243 : vector<8x32xf32>
    %245 = math.tanh %244 : vector<8x32xf32>
    %246 = arith.mulf %241, %245 : vector<8x32xf32>
    %c0_121 = arith.constant 0 : index
    %c0_122 = arith.constant 0 : index
    %247 = vector.load %arg12[%c0_121, %c0_122] : memref<8x32xf32, #tpu.memory_space<vmem>>, vector<8x32xf32>
    tpu.vector_store %arg12[%c0_121, %c0_122], %246 {strides = array<i32>} : memref<8x32xf32, #tpu.memory_space<vmem>>, vector<8x32xf32>,
    %c0_123 = arith.constant 0 : index
    %c0_124 = arith.constant 0 : index
    %248 = vector.load %arg13[%c0_123, %c0_124] : memref<8x32xf32, #tpu.memory_space<vmem>>, vector<8x32xf32>
    tpu.vector_store %arg13[%c0_123, %c0_124], %244 {strides = array<i32>} : memref<8x32xf32, #tpu.memory_space<vmem>>, vector<8x32xf32>,
    %249 = arith.index_cast %214 : i32 to index
    %c0_125 = arith.constant 0 : index
    %250 = vector.load %arg11[%249, %c0_125] : memref<64x32xf32, #tpu.memory_space<vmem>>, vector<8x32xf32>
    tpu.vector_store %arg11[%249, %c0_125], %246 {strides = array<i32>} : memref<64x32xf32, #tpu.memory_space<vmem>>, vector<8x32xf32>,
    %c6_i32 = arith.constant 6 : i32
    %c1_i32_126 = arith.constant 1 : i32
    %251 = arith.muli %c6_i32, %c1_i32_126 : i32
    %c0_i32_127 = arith.constant 0 : i32
    %252 = arith.addi %c0_i32_127, %251 : i32
    %c8_i32_128 = arith.constant 8 : i32
    %253 = arith.muli %252, %c8_i32_128 : i32
    %254 = tpu.assume_multiple %253, 8 : i32
    %255 = arith.index_cast %254 : i32 to index
    %c0_129 = arith.constant 0 : index
    %256 = vector.load %arg10[%255, %c0_129] : memref<64x128xf32, #tpu.memory_space<vmem>>, vector<8x128xf32>
    %c0_130 = arith.constant 0 : index
    %c0_131 = arith.constant 0 : index
    %257 = vector.load %arg12[%c0_130, %c0_131] : memref<8x32xf32, #tpu.memory_space<vmem>>, vector<8x32xf32>
    %c0_132 = arith.constant 0 : index
    %c0_133 = arith.constant 0 : index
    %258 = vector.load %arg2[%c0_132, %c0_133] : memref<32x128xf32, #tpu.memory_space<vmem>>, vector<32x128xf32>
    %cst_134 = arith.constant dense<0.000000e+00> : vector<8x128xf32>
    %259 = tpu.matmul %257, %258, %cst_134 {dimension_numbers = #tpu.dot_dimension_numbers<[1], [0], [0], [1], [0, 0, 1, 1], [], []>} : vector<8x32xf32>, vector<32x128xf32>, vector<8x128xf32> -> vector<8x128xf32>
    %260 = arith.addf %256, %259 : vector<8x128xf32>
    %c0_135 = arith.constant 0 : index
    %c0_136 = arith.constant 0 : index
    %261 = vector.load %arg13[%c0_135, %c0_136] : memref<8x32xf32, #tpu.memory_space<vmem>>, vector<8x32xf32>
    %262 = vector.extract_strided_slice %260 {offsets = [0, 0], sizes = [8, 32], strides = [1, 1]} : vector<8x128xf32> to vector<8x32xf32>
    %263 = arith.negf %262 : vector<8x32xf32>
    %264 = math.exp %263 : vector<8x32xf32>
    %cst_137 = arith.constant 1.000000e+00 : f32
    %265 = vector.broadcast %cst_137 : f32 to vector<8x32xf32>
    %266 = arith.addf %265, %264 : vector<8x32xf32>
    %267 = arith.divf %265, %266 : vector<8x32xf32>
    %268 = vector.extract_strided_slice %260 {offsets = [0, 32], sizes = [8, 32], strides = [1, 1]} : vector<8x128xf32> to vector<8x32xf32>
    %269 = arith.negf %268 : vector<8x32xf32>
    %270 = math.exp %269 : vector<8x32xf32>
    %cst_138 = arith.constant 1.000000e+00 : f32
    %271 = vector.broadcast %cst_138 : f32 to vector<8x32xf32>
    %272 = arith.addf %271, %270 : vector<8x32xf32>
    %273 = arith.divf %271, %272 : vector<8x32xf32>
    %274 = vector.extract_strided_slice %260 {offsets = [0, 64], sizes = [8, 32], strides = [1, 1]} : vector<8x128xf32> to vector<8x32xf32>
    %275 = math.tanh %274 : vector<8x32xf32>
    %276 = vector.extract_strided_slice %260 {offsets = [0, 96], sizes = [8, 32], strides = [1, 1]} : vector<8x128xf32> to vector<8x32xf32>
    %277 = arith.negf %276 : vector<8x32xf32>
    %278 = math.exp %277 : vector<8x32xf32>
    %cst_139 = arith.constant 1.000000e+00 : f32
    %279 = vector.broadcast %cst_139 : f32 to vector<8x32xf32>
    %280 = arith.addf %279, %278 : vector<8x32xf32>
    %281 = arith.divf %279, %280 : vector<8x32xf32>
    %282 = arith.mulf %273, %261 : vector<8x32xf32>
    %283 = arith.mulf %267, %275 : vector<8x32xf32>
    %284 = arith.addf %282, %283 : vector<8x32xf32>
    %285 = math.tanh %284 : vector<8x32xf32>
    %286 = arith.mulf %281, %285 : vector<8x32xf32>
    %c0_140 = arith.constant 0 : index
    %c0_141 = arith.constant 0 : index
    %287 = vector.load %arg12[%c0_140, %c0_141] : memref<8x32xf32, #tpu.memory_space<vmem>>, vector<8x32xf32>
    tpu.vector_store %arg12[%c0_140, %c0_141], %286 {strides = array<i32>} : memref<8x32xf32, #tpu.memory_space<vmem>>, vector<8x32xf32>,
    %c0_142 = arith.constant 0 : index
    %c0_143 = arith.constant 0 : index
    %288 = vector.load %arg13[%c0_142, %c0_143] : memref<8x32xf32, #tpu.memory_space<vmem>>, vector<8x32xf32>
    tpu.vector_store %arg13[%c0_142, %c0_143], %284 {strides = array<i32>} : memref<8x32xf32, #tpu.memory_space<vmem>>, vector<8x32xf32>,
    %289 = arith.index_cast %254 : i32 to index
    %c0_144 = arith.constant 0 : index
    %290 = vector.load %arg11[%289, %c0_144] : memref<64x32xf32, #tpu.memory_space<vmem>>, vector<8x32xf32>
    tpu.vector_store %arg11[%289, %c0_144], %286 {strides = array<i32>} : memref<64x32xf32, #tpu.memory_space<vmem>>, vector<8x32xf32>,
    %c7_i32 = arith.constant 7 : i32
    %c1_i32_145 = arith.constant 1 : i32
    %291 = arith.muli %c7_i32, %c1_i32_145 : i32
    %c0_i32_146 = arith.constant 0 : i32
    %292 = arith.addi %c0_i32_146, %291 : i32
    %c8_i32_147 = arith.constant 8 : i32
    %293 = arith.muli %292, %c8_i32_147 : i32
    %294 = tpu.assume_multiple %293, 8 : i32
    %295 = arith.index_cast %294 : i32 to index
    %c0_148 = arith.constant 0 : index
    %296 = vector.load %arg10[%295, %c0_148] : memref<64x128xf32, #tpu.memory_space<vmem>>, vector<8x128xf32>
    %c0_149 = arith.constant 0 : index
    %c0_150 = arith.constant 0 : index
    %297 = vector.load %arg12[%c0_149, %c0_150] : memref<8x32xf32, #tpu.memory_space<vmem>>, vector<8x32xf32>
    %c0_151 = arith.constant 0 : index
    %c0_152 = arith.constant 0 : index
    %298 = vector.load %arg2[%c0_151, %c0_152] : memref<32x128xf32, #tpu.memory_space<vmem>>, vector<32x128xf32>
    %cst_153 = arith.constant dense<0.000000e+00> : vector<8x128xf32>
    %299 = tpu.matmul %297, %298, %cst_153 {dimension_numbers = #tpu.dot_dimension_numbers<[1], [0], [0], [1], [0, 0, 1, 1], [], []>} : vector<8x32xf32>, vector<32x128xf32>, vector<8x128xf32> -> vector<8x128xf32>
    %300 = arith.addf %296, %299 : vector<8x128xf32>
    %c0_154 = arith.constant 0 : index
    %c0_155 = arith.constant 0 : index
    %301 = vector.load %arg13[%c0_154, %c0_155] : memref<8x32xf32, #tpu.memory_space<vmem>>, vector<8x32xf32>
    %302 = vector.extract_strided_slice %300 {offsets = [0, 0], sizes = [8, 32], strides = [1, 1]} : vector<8x128xf32> to vector<8x32xf32>
    %303 = arith.negf %302 : vector<8x32xf32>
    %304 = math.exp %303 : vector<8x32xf32>
    %cst_156 = arith.constant 1.000000e+00 : f32
    %305 = vector.broadcast %cst_156 : f32 to vector<8x32xf32>
    %306 = arith.addf %305, %304 : vector<8x32xf32>
    %307 = arith.divf %305, %306 : vector<8x32xf32>
    %308 = vector.extract_strided_slice %300 {offsets = [0, 32], sizes = [8, 32], strides = [1, 1]} : vector<8x128xf32> to vector<8x32xf32>
    %309 = arith.negf %308 : vector<8x32xf32>
    %310 = math.exp %309 : vector<8x32xf32>
    %cst_157 = arith.constant 1.000000e+00 : f32
    %311 = vector.broadcast %cst_157 : f32 to vector<8x32xf32>
    %312 = arith.addf %311, %310 : vector<8x32xf32>
    %313 = arith.divf %311, %312 : vector<8x32xf32>
    %314 = vector.extract_strided_slice %300 {offsets = [0, 64], sizes = [8, 32], strides = [1, 1]} : vector<8x128xf32> to vector<8x32xf32>
    %315 = math.tanh %314 : vector<8x32xf32>
    %316 = vector.extract_strided_slice %300 {offsets = [0, 96], sizes = [8, 32], strides = [1, 1]} : vector<8x128xf32> to vector<8x32xf32>
    %317 = arith.negf %316 : vector<8x32xf32>
    %318 = math.exp %317 : vector<8x32xf32>
    %cst_158 = arith.constant 1.000000e+00 : f32
    %319 = vector.broadcast %cst_158 : f32 to vector<8x32xf32>
    %320 = arith.addf %319, %318 : vector<8x32xf32>
    %321 = arith.divf %319, %320 : vector<8x32xf32>
    %322 = arith.mulf %313, %301 : vector<8x32xf32>
    %323 = arith.mulf %307, %315 : vector<8x32xf32>
    %324 = arith.addf %322, %323 : vector<8x32xf32>
    %325 = math.tanh %324 : vector<8x32xf32>
    %326 = arith.mulf %321, %325 : vector<8x32xf32>
    %c0_159 = arith.constant 0 : index
    %c0_160 = arith.constant 0 : index
    %327 = vector.load %arg12[%c0_159, %c0_160] : memref<8x32xf32, #tpu.memory_space<vmem>>, vector<8x32xf32>
    tpu.vector_store %arg12[%c0_159, %c0_160], %326 {strides = array<i32>} : memref<8x32xf32, #tpu.memory_space<vmem>>, vector<8x32xf32>,
    %c0_161 = arith.constant 0 : index
    %c0_162 = arith.constant 0 : index
    %328 = vector.load %arg13[%c0_161, %c0_162] : memref<8x32xf32, #tpu.memory_space<vmem>>, vector<8x32xf32>
    tpu.vector_store %arg13[%c0_161, %c0_162], %324 {strides = array<i32>} : memref<8x32xf32, #tpu.memory_space<vmem>>, vector<8x32xf32>,
    %329 = arith.index_cast %294 : i32 to index
    %c0_163 = arith.constant 0 : index
    %330 = vector.load %arg11[%329, %c0_163] : memref<64x32xf32, #tpu.memory_space<vmem>>, vector<8x32xf32>
    tpu.vector_store %arg11[%329, %c0_163], %326 {strides = array<i32>} : memref<64x32xf32, #tpu.memory_space<vmem>>, vector<8x32xf32>,
    %c8_i32_164 = arith.constant 8 : i32
    %c0_165 = arith.constant 0 : index
    %c0_166 = arith.constant 0 : index
    %331 = vector.load %arg11[%c0_165, %c0_166] : memref<64x32xf32, #tpu.memory_space<vmem>>, vector<64x32xf32>
    %c0_167 = arith.constant 0 : index
    %c0_168 = arith.constant 0 : index
    %332 = vector.load %arg4[%c0_167, %c0_168] : memref<32x128xf32, #tpu.memory_space<vmem>>, vector<32x128xf32>
    %cst_169 = arith.constant dense<0.000000e+00> : vector<64x128xf32>
    %333 = tpu.matmul %331, %332, %cst_169 {dimension_numbers = #tpu.dot_dimension_numbers<[1], [0], [0], [1], [0, 0, 1, 1], [], []>} : vector<64x32xf32>, vector<32x128xf32>, vector<64x128xf32> -> vector<64x128xf32>
    %c0_170 = arith.constant 0 : index
    %c0_171 = arith.constant 0 : index
    %334 = vector.load %arg6[%c0_170, %c0_171] : memref<1x128xf32, #tpu.memory_space<vmem>>, vector<1x128xf32>
    %335 = vector.broadcast %334 : vector<1x128xf32> to vector<64x128xf32>
    %336 = arith.addf %333, %335 : vector<64x128xf32>
    %c0_172 = arith.constant 0 : index
    %c0_173 = arith.constant 0 : index
    %337 = vector.load %arg10[%c0_172, %c0_173] : memref<64x128xf32, #tpu.memory_space<vmem>>, vector<64x128xf32>
    tpu.vector_store %arg10[%c0_172, %c0_173], %336 {strides = array<i32>} : memref<64x128xf32, #tpu.memory_space<vmem>>, vector<64x128xf32>,
    %cst_174 = arith.constant 0.000000e+00 : f32
    %338 = vector.broadcast %cst_174 : f32 to vector<8x32xf32>
    %c0_175 = arith.constant 0 : index
    %c0_176 = arith.constant 0 : index
    %339 = vector.load %arg12[%c0_175, %c0_176] : memref<8x32xf32, #tpu.memory_space<vmem>>, vector<8x32xf32>
    tpu.vector_store %arg12[%c0_175, %c0_176], %338 {strides = array<i32>} : memref<8x32xf32, #tpu.memory_space<vmem>>, vector<8x32xf32>,
    %cst_177 = arith.constant 0.000000e+00 : f32
    %340 = vector.broadcast %cst_177 : f32 to vector<8x32xf32>
    %c0_178 = arith.constant 0 : index
    %c0_179 = arith.constant 0 : index
    %341 = vector.load %arg13[%c0_178, %c0_179] : memref<8x32xf32, #tpu.memory_space<vmem>>, vector<8x32xf32>
    tpu.vector_store %arg13[%c0_178, %c0_179], %340 {strides = array<i32>} : memref<8x32xf32, #tpu.memory_space<vmem>>, vector<8x32xf32>,
    %cst_180 = arith.constant 0.000000e+00 : f32
    %342 = vector.broadcast %cst_180 : f32 to vector<8x10xf32>
    %c0_181 = arith.constant 0 : index
    %c0_182 = arith.constant 0 : index
    %343 = vector.load %arg14[%c0_181, %c0_182] : memref<8x10xf32, #tpu.memory_space<vmem>>, vector<8x10xf32>
    tpu.vector_store %arg14[%c0_181, %c0_182], %342 {strides = array<i32>} : memref<8x10xf32, #tpu.memory_space<vmem>>, vector<8x10xf32>,
    %c0_i32_183 = arith.constant 0 : i32
    %c1_i32_184 = arith.constant 1 : i32
    %344 = arith.muli %c0_i32_183, %c1_i32_184 : i32
    %c0_i32_185 = arith.constant 0 : i32
    %345 = arith.addi %c0_i32_185, %344 : i32
    %c8_i32_186 = arith.constant 8 : i32
    %346 = arith.muli %345, %c8_i32_186 : i32
    %347 = tpu.assume_multiple %346, 8 : i32
    %348 = arith.index_cast %347 : i32 to index
    %c0_187 = arith.constant 0 : index
    %349 = vector.load %arg10[%348, %c0_187] : memref<64x128xf32, #tpu.memory_space<vmem>>, vector<8x128xf32>
    %c0_188 = arith.constant 0 : index
    %c0_189 = arith.constant 0 : index
    %350 = vector.load %arg12[%c0_188, %c0_189] : memref<8x32xf32, #tpu.memory_space<vmem>>, vector<8x32xf32>
    %c0_190 = arith.constant 0 : index
    %c0_191 = arith.constant 0 : index
    %351 = vector.load %arg5[%c0_190, %c0_191] : memref<32x128xf32, #tpu.memory_space<vmem>>, vector<32x128xf32>
    %cst_192 = arith.constant dense<0.000000e+00> : vector<8x128xf32>
    %352 = tpu.matmul %350, %351, %cst_192 {dimension_numbers = #tpu.dot_dimension_numbers<[1], [0], [0], [1], [0, 0, 1, 1], [], []>} : vector<8x32xf32>, vector<32x128xf32>, vector<8x128xf32> -> vector<8x128xf32>
    %353 = arith.addf %349, %352 : vector<8x128xf32>
    %c0_193 = arith.constant 0 : index
    %c0_194 = arith.constant 0 : index
    %354 = vector.load %arg13[%c0_193, %c0_194] : memref<8x32xf32, #tpu.memory_space<vmem>>, vector<8x32xf32>
    %355 = vector.extract_strided_slice %353 {offsets = [0, 0], sizes = [8, 32], strides = [1, 1]} : vector<8x128xf32> to vector<8x32xf32>
    %356 = arith.negf %355 : vector<8x32xf32>
    %357 = math.exp %356 : vector<8x32xf32>
    %cst_195 = arith.constant 1.000000e+00 : f32
    %358 = vector.broadcast %cst_195 : f32 to vector<8x32xf32>
    %359 = arith.addf %358, %357 : vector<8x32xf32>
    %360 = arith.divf %358, %359 : vector<8x32xf32>
    %361 = vector.extract_strided_slice %353 {offsets = [0, 32], sizes = [8, 32], strides = [1, 1]} : vector<8x128xf32> to vector<8x32xf32>
    %362 = arith.negf %361 : vector<8x32xf32>
    %363 = math.exp %362 : vector<8x32xf32>
    %cst_196 = arith.constant 1.000000e+00 : f32
    %364 = vector.broadcast %cst_196 : f32 to vector<8x32xf32>
    %365 = arith.addf %364, %363 : vector<8x32xf32>
    %366 = arith.divf %364, %365 : vector<8x32xf32>
    %367 = vector.extract_strided_slice %353 {offsets = [0, 64], sizes = [8, 32], strides = [1, 1]} : vector<8x128xf32> to vector<8x32xf32>
    %368 = math.tanh %367 : vector<8x32xf32>
    %369 = vector.extract_strided_slice %353 {offsets = [0, 96], sizes = [8, 32], strides = [1, 1]} : vector<8x128xf32> to vector<8x32xf32>
    %370 = arith.negf %369 : vector<8x32xf32>
    %371 = math.exp %370 : vector<8x32xf32>
    %cst_197 = arith.constant 1.000000e+00 : f32
    %372 = vector.broadcast %cst_197 : f32 to vector<8x32xf32>
    %373 = arith.addf %372, %371 : vector<8x32xf32>
    %374 = arith.divf %372, %373 : vector<8x32xf32>
    %375 = arith.mulf %366, %354 : vector<8x32xf32>
    %376 = arith.mulf %360, %368 : vector<8x32xf32>
    %377 = arith.addf %375, %376 : vector<8x32xf32>
    %378 = math.tanh %377 : vector<8x32xf32>
    %379 = arith.mulf %374, %378 : vector<8x32xf32>
    %c0_198 = arith.constant 0 : index
    %c0_199 = arith.constant 0 : index
    %380 = vector.load %arg12[%c0_198, %c0_199] : memref<8x32xf32, #tpu.memory_space<vmem>>, vector<8x32xf32>
    tpu.vector_store %arg12[%c0_198, %c0_199], %379 {strides = array<i32>} : memref<8x32xf32, #tpu.memory_space<vmem>>, vector<8x32xf32>,
    %c0_200 = arith.constant 0 : index
    %c0_201 = arith.constant 0 : index
    %381 = vector.load %arg13[%c0_200, %c0_201] : memref<8x32xf32, #tpu.memory_space<vmem>>, vector<8x32xf32>
    tpu.vector_store %arg13[%c0_200, %c0_201], %377 {strides = array<i32>} : memref<8x32xf32, #tpu.memory_space<vmem>>, vector<8x32xf32>,
    %c0_202 = arith.constant 0 : index
    %c0_203 = arith.constant 0 : index
    %382 = vector.load %arg14[%c0_202, %c0_203] : memref<8x10xf32, #tpu.memory_space<vmem>>, vector<8x10xf32>
    %383 = arith.index_cast %345 : i32 to index
    %c0_204 = arith.constant 0 : index
    %c0_205 = arith.constant 0 : index
    %384 = vector.load %arg7[%383, %c0_204, %c0_205] : memref<8x32x10xf32, #tpu.memory_space<vmem>>, vector<1x32x10xf32>
    %385 = vector.shape_cast %384 : vector<1x32x10xf32> to vector<32x10xf32>
    %cst_206 = arith.constant dense<0.000000e+00> : vector<8x10xf32>
    %386 = tpu.matmul %379, %385, %cst_206 {dimension_numbers = #tpu.dot_dimension_numbers<[1], [0], [0], [1], [0, 0, 1, 1], [], []>} : vector<8x32xf32>, vector<32x10xf32>, vector<8x10xf32> -> vector<8x10xf32>
    %387 = arith.addf %382, %386 : vector<8x10xf32>
    %c0_207 = arith.constant 0 : index
    %c0_208 = arith.constant 0 : index
    %388 = vector.load %arg14[%c0_207, %c0_208] : memref<8x10xf32, #tpu.memory_space<vmem>>, vector<8x10xf32>
    tpu.vector_store %arg14[%c0_207, %c0_208], %387 {strides = array<i32>} : memref<8x10xf32, #tpu.memory_space<vmem>>, vector<8x10xf32>,
    %c1_i32_209 = arith.constant 1 : i32
    %c1_i32_210 = arith.constant 1 : i32
    %389 = arith.muli %c1_i32_209, %c1_i32_210 : i32
    %c0_i32_211 = arith.constant 0 : i32
    %390 = arith.addi %c0_i32_211, %389 : i32
    %c8_i32_212 = arith.constant 8 : i32
    %391 = arith.muli %390, %c8_i32_212 : i32
    %392 = tpu.assume_multiple %391, 8 : i32
    %393 = arith.index_cast %392 : i32 to index
    %c0_213 = arith.constant 0 : index
    %394 = vector.load %arg10[%393, %c0_213] : memref<64x128xf32, #tpu.memory_space<vmem>>, vector<8x128xf32>
    %c0_214 = arith.constant 0 : index
    %c0_215 = arith.constant 0 : index
    %395 = vector.load %arg12[%c0_214, %c0_215] : memref<8x32xf32, #tpu.memory_space<vmem>>, vector<8x32xf32>
    %c0_216 = arith.constant 0 : index
    %c0_217 = arith.constant 0 : index
    %396 = vector.load %arg5[%c0_216, %c0_217] : memref<32x128xf32, #tpu.memory_space<vmem>>, vector<32x128xf32>
    %cst_218 = arith.constant dense<0.000000e+00> : vector<8x128xf32>
    %397 = tpu.matmul %395, %396, %cst_218 {dimension_numbers = #tpu.dot_dimension_numbers<[1], [0], [0], [1], [0, 0, 1, 1], [], []>} : vector<8x32xf32>, vector<32x128xf32>, vector<8x128xf32> -> vector<8x128xf32>
    %398 = arith.addf %394, %397 : vector<8x128xf32>
    %c0_219 = arith.constant 0 : index
    %c0_220 = arith.constant 0 : index
    %399 = vector.load %arg13[%c0_219, %c0_220] : memref<8x32xf32, #tpu.memory_space<vmem>>, vector<8x32xf32>
    %400 = vector.extract_strided_slice %398 {offsets = [0, 0], sizes = [8, 32], strides = [1, 1]} : vector<8x128xf32> to vector<8x32xf32>
    %401 = arith.negf %400 : vector<8x32xf32>
    %402 = math.exp %401 : vector<8x32xf32>
    %cst_221 = arith.constant 1.000000e+00 : f32
    %403 = vector.broadcast %cst_221 : f32 to vector<8x32xf32>
    %404 = arith.addf %403, %402 : vector<8x32xf32>
    %405 = arith.divf %403, %404 : vector<8x32xf32>
    %406 = vector.extract_strided_slice %398 {offsets = [0, 32], sizes = [8, 32], strides = [1, 1]} : vector<8x128xf32> to vector<8x32xf32>
    %407 = arith.negf %406 : vector<8x32xf32>
    %408 = math.exp %407 : vector<8x32xf32>
    %cst_222 = arith.constant 1.000000e+00 : f32
    %409 = vector.broadcast %cst_222 : f32 to vector<8x32xf32>
    %410 = arith.addf %409, %408 : vector<8x32xf32>
    %411 = arith.divf %409, %410 : vector<8x32xf32>
    %412 = vector.extract_strided_slice %398 {offsets = [0, 64], sizes = [8, 32], strides = [1, 1]} : vector<8x128xf32> to vector<8x32xf32>
    %413 = math.tanh %412 : vector<8x32xf32>
    %414 = vector.extract_strided_slice %398 {offsets = [0, 96], sizes = [8, 32], strides = [1, 1]} : vector<8x128xf32> to vector<8x32xf32>
    %415 = arith.negf %414 : vector<8x32xf32>
    %416 = math.exp %415 : vector<8x32xf32>
    %cst_223 = arith.constant 1.000000e+00 : f32
    %417 = vector.broadcast %cst_223 : f32 to vector<8x32xf32>
    %418 = arith.addf %417, %416 : vector<8x32xf32>
    %419 = arith.divf %417, %418 : vector<8x32xf32>
    %420 = arith.mulf %411, %399 : vector<8x32xf32>
    %421 = arith.mulf %405, %413 : vector<8x32xf32>
    %422 = arith.addf %420, %421 : vector<8x32xf32>
    %423 = math.tanh %422 : vector<8x32xf32>
    %424 = arith.mulf %419, %423 : vector<8x32xf32>
    %c0_224 = arith.constant 0 : index
    %c0_225 = arith.constant 0 : index
    %425 = vector.load %arg12[%c0_224, %c0_225] : memref<8x32xf32, #tpu.memory_space<vmem>>, vector<8x32xf32>
    tpu.vector_store %arg12[%c0_224, %c0_225], %424 {strides = array<i32>} : memref<8x32xf32, #tpu.memory_space<vmem>>, vector<8x32xf32>,
    %c0_226 = arith.constant 0 : index
    %c0_227 = arith.constant 0 : index
    %426 = vector.load %arg13[%c0_226, %c0_227] : memref<8x32xf32, #tpu.memory_space<vmem>>, vector<8x32xf32>
    tpu.vector_store %arg13[%c0_226, %c0_227], %422 {strides = array<i32>} : memref<8x32xf32, #tpu.memory_space<vmem>>, vector<8x32xf32>,
    %c0_228 = arith.constant 0 : index
    %c0_229 = arith.constant 0 : index
    %427 = vector.load %arg14[%c0_228, %c0_229] : memref<8x10xf32, #tpu.memory_space<vmem>>, vector<8x10xf32>
    %428 = arith.index_cast %390 : i32 to index
    %c0_230 = arith.constant 0 : index
    %c0_231 = arith.constant 0 : index
    %429 = vector.load %arg7[%428, %c0_230, %c0_231] : memref<8x32x10xf32, #tpu.memory_space<vmem>>, vector<1x32x10xf32>
    %430 = vector.shape_cast %429 : vector<1x32x10xf32> to vector<32x10xf32>
    %cst_232 = arith.constant dense<0.000000e+00> : vector<8x10xf32>
    %431 = tpu.matmul %424, %430, %cst_232 {dimension_numbers = #tpu.dot_dimension_numbers<[1], [0], [0], [1], [0, 0, 1, 1], [], []>} : vector<8x32xf32>, vector<32x10xf32>, vector<8x10xf32> -> vector<8x10xf32>
    %432 = arith.addf %427, %431 : vector<8x10xf32>
    %c0_233 = arith.constant 0 : index
    %c0_234 = arith.constant 0 : index
    %433 = vector.load %arg14[%c0_233, %c0_234] : memref<8x10xf32, #tpu.memory_space<vmem>>, vector<8x10xf32>
    tpu.vector_store %arg14[%c0_233, %c0_234], %432 {strides = array<i32>} : memref<8x10xf32, #tpu.memory_space<vmem>>, vector<8x10xf32>,
    %c2_i32_235 = arith.constant 2 : i32
    %c1_i32_236 = arith.constant 1 : i32
    %434 = arith.muli %c2_i32_235, %c1_i32_236 : i32
    %c0_i32_237 = arith.constant 0 : i32
    %435 = arith.addi %c0_i32_237, %434 : i32
    %c8_i32_238 = arith.constant 8 : i32
    %436 = arith.muli %435, %c8_i32_238 : i32
    %437 = tpu.assume_multiple %436, 8 : i32
    %438 = arith.index_cast %437 : i32 to index
    %c0_239 = arith.constant 0 : index
    %439 = vector.load %arg10[%438, %c0_239] : memref<64x128xf32, #tpu.memory_space<vmem>>, vector<8x128xf32>
    %c0_240 = arith.constant 0 : index
    %c0_241 = arith.constant 0 : index
    %440 = vector.load %arg12[%c0_240, %c0_241] : memref<8x32xf32, #tpu.memory_space<vmem>>, vector<8x32xf32>
    %c0_242 = arith.constant 0 : index
    %c0_243 = arith.constant 0 : index
    %441 = vector.load %arg5[%c0_242, %c0_243] : memref<32x128xf32, #tpu.memory_space<vmem>>, vector<32x128xf32>
    %cst_244 = arith.constant dense<0.000000e+00> : vector<8x128xf32>
    %442 = tpu.matmul %440, %441, %cst_244 {dimension_numbers = #tpu.dot_dimension_numbers<[1], [0], [0], [1], [0, 0, 1, 1], [], []>} : vector<8x32xf32>, vector<32x128xf32>, vector<8x128xf32> -> vector<8x128xf32>
    %443 = arith.addf %439, %442 : vector<8x128xf32>
    %c0_245 = arith.constant 0 : index
    %c0_246 = arith.constant 0 : index
    %444 = vector.load %arg13[%c0_245, %c0_246] : memref<8x32xf32, #tpu.memory_space<vmem>>, vector<8x32xf32>
    %445 = vector.extract_strided_slice %443 {offsets = [0, 0], sizes = [8, 32], strides = [1, 1]} : vector<8x128xf32> to vector<8x32xf32>
    %446 = arith.negf %445 : vector<8x32xf32>
    %447 = math.exp %446 : vector<8x32xf32>
    %cst_247 = arith.constant 1.000000e+00 : f32
    %448 = vector.broadcast %cst_247 : f32 to vector<8x32xf32>
    %449 = arith.addf %448, %447 : vector<8x32xf32>
    %450 = arith.divf %448, %449 : vector<8x32xf32>
    %451 = vector.extract_strided_slice %443 {offsets = [0, 32], sizes = [8, 32], strides = [1, 1]} : vector<8x128xf32> to vector<8x32xf32>
    %452 = arith.negf %451 : vector<8x32xf32>
    %453 = math.exp %452 : vector<8x32xf32>
    %cst_248 = arith.constant 1.000000e+00 : f32
    %454 = vector.broadcast %cst_248 : f32 to vector<8x32xf32>
    %455 = arith.addf %454, %453 : vector<8x32xf32>
    %456 = arith.divf %454, %455 : vector<8x32xf32>
    %457 = vector.extract_strided_slice %443 {offsets = [0, 64], sizes = [8, 32], strides = [1, 1]} : vector<8x128xf32> to vector<8x32xf32>
    %458 = math.tanh %457 : vector<8x32xf32>
    %459 = vector.extract_strided_slice %443 {offsets = [0, 96], sizes = [8, 32], strides = [1, 1]} : vector<8x128xf32> to vector<8x32xf32>
    %460 = arith.negf %459 : vector<8x32xf32>
    %461 = math.exp %460 : vector<8x32xf32>
    %cst_249 = arith.constant 1.000000e+00 : f32
    %462 = vector.broadcast %cst_249 : f32 to vector<8x32xf32>
    %463 = arith.addf %462, %461 : vector<8x32xf32>
    %464 = arith.divf %462, %463 : vector<8x32xf32>
    %465 = arith.mulf %456, %444 : vector<8x32xf32>
    %466 = arith.mulf %450, %458 : vector<8x32xf32>
    %467 = arith.addf %465, %466 : vector<8x32xf32>
    %468 = math.tanh %467 : vector<8x32xf32>
    %469 = arith.mulf %464, %468 : vector<8x32xf32>
    %c0_250 = arith.constant 0 : index
    %c0_251 = arith.constant 0 : index
    %470 = vector.load %arg12[%c0_250, %c0_251] : memref<8x32xf32, #tpu.memory_space<vmem>>, vector<8x32xf32>
    tpu.vector_store %arg12[%c0_250, %c0_251], %469 {strides = array<i32>} : memref<8x32xf32, #tpu.memory_space<vmem>>, vector<8x32xf32>,
    %c0_252 = arith.constant 0 : index
    %c0_253 = arith.constant 0 : index
    %471 = vector.load %arg13[%c0_252, %c0_253] : memref<8x32xf32, #tpu.memory_space<vmem>>, vector<8x32xf32>
    tpu.vector_store %arg13[%c0_252, %c0_253], %467 {strides = array<i32>} : memref<8x32xf32, #tpu.memory_space<vmem>>, vector<8x32xf32>,
    %c0_254 = arith.constant 0 : index
    %c0_255 = arith.constant 0 : index
    %472 = vector.load %arg14[%c0_254, %c0_255] : memref<8x10xf32, #tpu.memory_space<vmem>>, vector<8x10xf32>
    %473 = arith.index_cast %435 : i32 to index
    %c0_256 = arith.constant 0 : index
    %c0_257 = arith.constant 0 : index
    %474 = vector.load %arg7[%473, %c0_256, %c0_257] : memref<8x32x10xf32, #tpu.memory_space<vmem>>, vector<1x32x10xf32>
    %475 = vector.shape_cast %474 : vector<1x32x10xf32> to vector<32x10xf32>
    %cst_258 = arith.constant dense<0.000000e+00> : vector<8x10xf32>
    %476 = tpu.matmul %469, %475, %cst_258 {dimension_numbers = #tpu.dot_dimension_numbers<[1], [0], [0], [1], [0, 0, 1, 1], [], []>} : vector<8x32xf32>, vector<32x10xf32>, vector<8x10xf32> -> vector<8x10xf32>
    %477 = arith.addf %472, %476 : vector<8x10xf32>
    %c0_259 = arith.constant 0 : index
    %c0_260 = arith.constant 0 : index
    %478 = vector.load %arg14[%c0_259, %c0_260] : memref<8x10xf32, #tpu.memory_space<vmem>>, vector<8x10xf32>
    tpu.vector_store %arg14[%c0_259, %c0_260], %477 {strides = array<i32>} : memref<8x10xf32, #tpu.memory_space<vmem>>, vector<8x10xf32>,
    %c3_i32_261 = arith.constant 3 : i32
    %c1_i32_262 = arith.constant 1 : i32
    %479 = arith.muli %c3_i32_261, %c1_i32_262 : i32
    %c0_i32_263 = arith.constant 0 : i32
    %480 = arith.addi %c0_i32_263, %479 : i32
    %c8_i32_264 = arith.constant 8 : i32
    %481 = arith.muli %480, %c8_i32_264 : i32
    %482 = tpu.assume_multiple %481, 8 : i32
    %483 = arith.index_cast %482 : i32 to index
    %c0_265 = arith.constant 0 : index
    %484 = vector.load %arg10[%483, %c0_265] : memref<64x128xf32, #tpu.memory_space<vmem>>, vector<8x128xf32>
    %c0_266 = arith.constant 0 : index
    %c0_267 = arith.constant 0 : index
    %485 = vector.load %arg12[%c0_266, %c0_267] : memref<8x32xf32, #tpu.memory_space<vmem>>, vector<8x32xf32>
    %c0_268 = arith.constant 0 : index
    %c0_269 = arith.constant 0 : index
    %486 = vector.load %arg5[%c0_268, %c0_269] : memref<32x128xf32, #tpu.memory_space<vmem>>, vector<32x128xf32>
    %cst_270 = arith.constant dense<0.000000e+00> : vector<8x128xf32>
    %487 = tpu.matmul %485, %486, %cst_270 {dimension_numbers = #tpu.dot_dimension_numbers<[1], [0], [0], [1], [0, 0, 1, 1], [], []>} : vector<8x32xf32>, vector<32x128xf32>, vector<8x128xf32> -> vector<8x128xf32>
    %488 = arith.addf %484, %487 : vector<8x128xf32>
    %c0_271 = arith.constant 0 : index
    %c0_272 = arith.constant 0 : index
    %489 = vector.load %arg13[%c0_271, %c0_272] : memref<8x32xf32, #tpu.memory_space<vmem>>, vector<8x32xf32>
    %490 = vector.extract_strided_slice %488 {offsets = [0, 0], sizes = [8, 32], strides = [1, 1]} : vector<8x128xf32> to vector<8x32xf32>
    %491 = arith.negf %490 : vector<8x32xf32>
    %492 = math.exp %491 : vector<8x32xf32>
    %cst_273 = arith.constant 1.000000e+00 : f32
    %493 = vector.broadcast %cst_273 : f32 to vector<8x32xf32>
    %494 = arith.addf %493, %492 : vector<8x32xf32>
    %495 = arith.divf %493, %494 : vector<8x32xf32>
    %496 = vector.extract_strided_slice %488 {offsets = [0, 32], sizes = [8, 32], strides = [1, 1]} : vector<8x128xf32> to vector<8x32xf32>
    %497 = arith.negf %496 : vector<8x32xf32>
    %498 = math.exp %497 : vector<8x32xf32>
    %cst_274 = arith.constant 1.000000e+00 : f32
    %499 = vector.broadcast %cst_274 : f32 to vector<8x32xf32>
    %500 = arith.addf %499, %498 : vector<8x32xf32>
    %501 = arith.divf %499, %500 : vector<8x32xf32>
    %502 = vector.extract_strided_slice %488 {offsets = [0, 64], sizes = [8, 32], strides = [1, 1]} : vector<8x128xf32> to vector<8x32xf32>
    %503 = math.tanh %502 : vector<8x32xf32>
    %504 = vector.extract_strided_slice %488 {offsets = [0, 96], sizes = [8, 32], strides = [1, 1]} : vector<8x128xf32> to vector<8x32xf32>
    %505 = arith.negf %504 : vector<8x32xf32>
    %506 = math.exp %505 : vector<8x32xf32>
    %cst_275 = arith.constant 1.000000e+00 : f32
    %507 = vector.broadcast %cst_275 : f32 to vector<8x32xf32>
    %508 = arith.addf %507, %506 : vector<8x32xf32>
    %509 = arith.divf %507, %508 : vector<8x32xf32>
    %510 = arith.mulf %501, %489 : vector<8x32xf32>
    %511 = arith.mulf %495, %503 : vector<8x32xf32>
    %512 = arith.addf %510, %511 : vector<8x32xf32>
    %513 = math.tanh %512 : vector<8x32xf32>
    %514 = arith.mulf %509, %513 : vector<8x32xf32>
    %c0_276 = arith.constant 0 : index
    %c0_277 = arith.constant 0 : index
    %515 = vector.load %arg12[%c0_276, %c0_277] : memref<8x32xf32, #tpu.memory_space<vmem>>, vector<8x32xf32>
    tpu.vector_store %arg12[%c0_276, %c0_277], %514 {strides = array<i32>} : memref<8x32xf32, #tpu.memory_space<vmem>>, vector<8x32xf32>,
    %c0_278 = arith.constant 0 : index
    %c0_279 = arith.constant 0 : index
    %516 = vector.load %arg13[%c0_278, %c0_279] : memref<8x32xf32, #tpu.memory_space<vmem>>, vector<8x32xf32>
    tpu.vector_store %arg13[%c0_278, %c0_279], %512 {strides = array<i32>} : memref<8x32xf32, #tpu.memory_space<vmem>>, vector<8x32xf32>,
    %c0_280 = arith.constant 0 : index
    %c0_281 = arith.constant 0 : index
    %517 = vector.load %arg14[%c0_280, %c0_281] : memref<8x10xf32, #tpu.memory_space<vmem>>, vector<8x10xf32>
    %518 = arith.index_cast %480 : i32 to index
    %c0_282 = arith.constant 0 : index
    %c0_283 = arith.constant 0 : index
    %519 = vector.load %arg7[%518, %c0_282, %c0_283] : memref<8x32x10xf32, #tpu.memory_space<vmem>>, vector<1x32x10xf32>
    %520 = vector.shape_cast %519 : vector<1x32x10xf32> to vector<32x10xf32>
    %cst_284 = arith.constant dense<0.000000e+00> : vector<8x10xf32>
    %521 = tpu.matmul %514, %520, %cst_284 {dimension_numbers = #tpu.dot_dimension_numbers<[1], [0], [0], [1], [0, 0, 1, 1], [], []>} : vector<8x32xf32>, vector<32x10xf32>, vector<8x10xf32> -> vector<8x10xf32>
    %522 = arith.addf %517, %521 : vector<8x10xf32>
    %c0_285 = arith.constant 0 : index
    %c0_286 = arith.constant 0 : index
    %523 = vector.load %arg14[%c0_285, %c0_286] : memref<8x10xf32, #tpu.memory_space<vmem>>, vector<8x10xf32>
    tpu.vector_store %arg14[%c0_285, %c0_286], %522 {strides = array<i32>} : memref<8x10xf32, #tpu.memory_space<vmem>>, vector<8x10xf32>,
    %c4_i32_287 = arith.constant 4 : i32
    %c1_i32_288 = arith.constant 1 : i32
    %524 = arith.muli %c4_i32_287, %c1_i32_288 : i32
    %c0_i32_289 = arith.constant 0 : i32
    %525 = arith.addi %c0_i32_289, %524 : i32
    %c8_i32_290 = arith.constant 8 : i32
    %526 = arith.muli %525, %c8_i32_290 : i32
    %527 = tpu.assume_multiple %526, 8 : i32
    %528 = arith.index_cast %527 : i32 to index
    %c0_291 = arith.constant 0 : index
    %529 = vector.load %arg10[%528, %c0_291] : memref<64x128xf32, #tpu.memory_space<vmem>>, vector<8x128xf32>
    %c0_292 = arith.constant 0 : index
    %c0_293 = arith.constant 0 : index
    %530 = vector.load %arg12[%c0_292, %c0_293] : memref<8x32xf32, #tpu.memory_space<vmem>>, vector<8x32xf32>
    %c0_294 = arith.constant 0 : index
    %c0_295 = arith.constant 0 : index
    %531 = vector.load %arg5[%c0_294, %c0_295] : memref<32x128xf32, #tpu.memory_space<vmem>>, vector<32x128xf32>
    %cst_296 = arith.constant dense<0.000000e+00> : vector<8x128xf32>
    %532 = tpu.matmul %530, %531, %cst_296 {dimension_numbers = #tpu.dot_dimension_numbers<[1], [0], [0], [1], [0, 0, 1, 1], [], []>} : vector<8x32xf32>, vector<32x128xf32>, vector<8x128xf32> -> vector<8x128xf32>
    %533 = arith.addf %529, %532 : vector<8x128xf32>
    %c0_297 = arith.constant 0 : index
    %c0_298 = arith.constant 0 : index
    %534 = vector.load %arg13[%c0_297, %c0_298] : memref<8x32xf32, #tpu.memory_space<vmem>>, vector<8x32xf32>
    %535 = vector.extract_strided_slice %533 {offsets = [0, 0], sizes = [8, 32], strides = [1, 1]} : vector<8x128xf32> to vector<8x32xf32>
    %536 = arith.negf %535 : vector<8x32xf32>
    %537 = math.exp %536 : vector<8x32xf32>
    %cst_299 = arith.constant 1.000000e+00 : f32
    %538 = vector.broadcast %cst_299 : f32 to vector<8x32xf32>
    %539 = arith.addf %538, %537 : vector<8x32xf32>
    %540 = arith.divf %538, %539 : vector<8x32xf32>
    %541 = vector.extract_strided_slice %533 {offsets = [0, 32], sizes = [8, 32], strides = [1, 1]} : vector<8x128xf32> to vector<8x32xf32>
    %542 = arith.negf %541 : vector<8x32xf32>
    %543 = math.exp %542 : vector<8x32xf32>
    %cst_300 = arith.constant 1.000000e+00 : f32
    %544 = vector.broadcast %cst_300 : f32 to vector<8x32xf32>
    %545 = arith.addf %544, %543 : vector<8x32xf32>
    %546 = arith.divf %544, %545 : vector<8x32xf32>
    %547 = vector.extract_strided_slice %533 {offsets = [0, 64], sizes = [8, 32], strides = [1, 1]} : vector<8x128xf32> to vector<8x32xf32>
    %548 = math.tanh %547 : vector<8x32xf32>
    %549 = vector.extract_strided_slice %533 {offsets = [0, 96], sizes = [8, 32], strides = [1, 1]} : vector<8x128xf32> to vector<8x32xf32>
    %550 = arith.negf %549 : vector<8x32xf32>
    %551 = math.exp %550 : vector<8x32xf32>
    %cst_301 = arith.constant 1.000000e+00 : f32
    %552 = vector.broadcast %cst_301 : f32 to vector<8x32xf32>
    %553 = arith.addf %552, %551 : vector<8x32xf32>
    %554 = arith.divf %552, %553 : vector<8x32xf32>
    %555 = arith.mulf %546, %534 : vector<8x32xf32>
    %556 = arith.mulf %540, %548 : vector<8x32xf32>
    %557 = arith.addf %555, %556 : vector<8x32xf32>
    %558 = math.tanh %557 : vector<8x32xf32>
    %559 = arith.mulf %554, %558 : vector<8x32xf32>
    %c0_302 = arith.constant 0 : index
    %c0_303 = arith.constant 0 : index
    %560 = vector.load %arg12[%c0_302, %c0_303] : memref<8x32xf32, #tpu.memory_space<vmem>>, vector<8x32xf32>
    tpu.vector_store %arg12[%c0_302, %c0_303], %559 {strides = array<i32>} : memref<8x32xf32, #tpu.memory_space<vmem>>, vector<8x32xf32>,
    %c0_304 = arith.constant 0 : index
    %c0_305 = arith.constant 0 : index
    %561 = vector.load %arg13[%c0_304, %c0_305] : memref<8x32xf32, #tpu.memory_space<vmem>>, vector<8x32xf32>
    tpu.vector_store %arg13[%c0_304, %c0_305], %557 {strides = array<i32>} : memref<8x32xf32, #tpu.memory_space<vmem>>, vector<8x32xf32>,
    %c0_306 = arith.constant 0 : index
    %c0_307 = arith.constant 0 : index
    %562 = vector.load %arg14[%c0_306, %c0_307] : memref<8x10xf32, #tpu.memory_space<vmem>>, vector<8x10xf32>
    %563 = arith.index_cast %525 : i32 to index
    %c0_308 = arith.constant 0 : index
    %c0_309 = arith.constant 0 : index
    %564 = vector.load %arg7[%563, %c0_308, %c0_309] : memref<8x32x10xf32, #tpu.memory_space<vmem>>, vector<1x32x10xf32>
    %565 = vector.shape_cast %564 : vector<1x32x10xf32> to vector<32x10xf32>
    %cst_310 = arith.constant dense<0.000000e+00> : vector<8x10xf32>
    %566 = tpu.matmul %559, %565, %cst_310 {dimension_numbers = #tpu.dot_dimension_numbers<[1], [0], [0], [1], [0, 0, 1, 1], [], []>} : vector<8x32xf32>, vector<32x10xf32>, vector<8x10xf32> -> vector<8x10xf32>
    %567 = arith.addf %562, %566 : vector<8x10xf32>
    %c0_311 = arith.constant 0 : index
    %c0_312 = arith.constant 0 : index
    %568 = vector.load %arg14[%c0_311, %c0_312] : memref<8x10xf32, #tpu.memory_space<vmem>>, vector<8x10xf32>
    tpu.vector_store %arg14[%c0_311, %c0_312], %567 {strides = array<i32>} : memref<8x10xf32, #tpu.memory_space<vmem>>, vector<8x10xf32>,
    %c5_i32_313 = arith.constant 5 : i32
    %c1_i32_314 = arith.constant 1 : i32
    %569 = arith.muli %c5_i32_313, %c1_i32_314 : i32
    %c0_i32_315 = arith.constant 0 : i32
    %570 = arith.addi %c0_i32_315, %569 : i32
    %c8_i32_316 = arith.constant 8 : i32
    %571 = arith.muli %570, %c8_i32_316 : i32
    %572 = tpu.assume_multiple %571, 8 : i32
    %573 = arith.index_cast %572 : i32 to index
    %c0_317 = arith.constant 0 : index
    %574 = vector.load %arg10[%573, %c0_317] : memref<64x128xf32, #tpu.memory_space<vmem>>, vector<8x128xf32>
    %c0_318 = arith.constant 0 : index
    %c0_319 = arith.constant 0 : index
    %575 = vector.load %arg12[%c0_318, %c0_319] : memref<8x32xf32, #tpu.memory_space<vmem>>, vector<8x32xf32>
    %c0_320 = arith.constant 0 : index
    %c0_321 = arith.constant 0 : index
    %576 = vector.load %arg5[%c0_320, %c0_321] : memref<32x128xf32, #tpu.memory_space<vmem>>, vector<32x128xf32>
    %cst_322 = arith.constant dense<0.000000e+00> : vector<8x128xf32>
    %577 = tpu.matmul %575, %576, %cst_322 {dimension_numbers = #tpu.dot_dimension_numbers<[1], [0], [0], [1], [0, 0, 1, 1], [], []>} : vector<8x32xf32>, vector<32x128xf32>, vector<8x128xf32> -> vector<8x128xf32>
    %578 = arith.addf %574, %577 : vector<8x128xf32>
    %c0_323 = arith.constant 0 : index
    %c0_324 = arith.constant 0 : index
    %579 = vector.load %arg13[%c0_323, %c0_324] : memref<8x32xf32, #tpu.memory_space<vmem>>, vector<8x32xf32>
    %580 = vector.extract_strided_slice %578 {offsets = [0, 0], sizes = [8, 32], strides = [1, 1]} : vector<8x128xf32> to vector<8x32xf32>
    %581 = arith.negf %580 : vector<8x32xf32>
    %582 = math.exp %581 : vector<8x32xf32>
    %cst_325 = arith.constant 1.000000e+00 : f32
    %583 = vector.broadcast %cst_325 : f32 to vector<8x32xf32>
    %584 = arith.addf %583, %582 : vector<8x32xf32>
    %585 = arith.divf %583, %584 : vector<8x32xf32>
    %586 = vector.extract_strided_slice %578 {offsets = [0, 32], sizes = [8, 32], strides = [1, 1]} : vector<8x128xf32> to vector<8x32xf32>
    %587 = arith.negf %586 : vector<8x32xf32>
    %588 = math.exp %587 : vector<8x32xf32>
    %cst_326 = arith.constant 1.000000e+00 : f32
    %589 = vector.broadcast %cst_326 : f32 to vector<8x32xf32>
    %590 = arith.addf %589, %588 : vector<8x32xf32>
    %591 = arith.divf %589, %590 : vector<8x32xf32>
    %592 = vector.extract_strided_slice %578 {offsets = [0, 64], sizes = [8, 32], strides = [1, 1]} : vector<8x128xf32> to vector<8x32xf32>
    %593 = math.tanh %592 : vector<8x32xf32>
    %594 = vector.extract_strided_slice %578 {offsets = [0, 96], sizes = [8, 32], strides = [1, 1]} : vector<8x128xf32> to vector<8x32xf32>
    %595 = arith.negf %594 : vector<8x32xf32>
    %596 = math.exp %595 : vector<8x32xf32>
    %cst_327 = arith.constant 1.000000e+00 : f32
    %597 = vector.broadcast %cst_327 : f32 to vector<8x32xf32>
    %598 = arith.addf %597, %596 : vector<8x32xf32>
    %599 = arith.divf %597, %598 : vector<8x32xf32>
    %600 = arith.mulf %591, %579 : vector<8x32xf32>
    %601 = arith.mulf %585, %593 : vector<8x32xf32>
    %602 = arith.addf %600, %601 : vector<8x32xf32>
    %603 = math.tanh %602 : vector<8x32xf32>
    %604 = arith.mulf %599, %603 : vector<8x32xf32>
    %c0_328 = arith.constant 0 : index
    %c0_329 = arith.constant 0 : index
    %605 = vector.load %arg12[%c0_328, %c0_329] : memref<8x32xf32, #tpu.memory_space<vmem>>, vector<8x32xf32>
    tpu.vector_store %arg12[%c0_328, %c0_329], %604 {strides = array<i32>} : memref<8x32xf32, #tpu.memory_space<vmem>>, vector<8x32xf32>,
    %c0_330 = arith.constant 0 : index
    %c0_331 = arith.constant 0 : index
    %606 = vector.load %arg13[%c0_330, %c0_331] : memref<8x32xf32, #tpu.memory_space<vmem>>, vector<8x32xf32>
    tpu.vector_store %arg13[%c0_330, %c0_331], %602 {strides = array<i32>} : memref<8x32xf32, #tpu.memory_space<vmem>>, vector<8x32xf32>,
    %c0_332 = arith.constant 0 : index
    %c0_333 = arith.constant 0 : index
    %607 = vector.load %arg14[%c0_332, %c0_333] : memref<8x10xf32, #tpu.memory_space<vmem>>, vector<8x10xf32>
    %608 = arith.index_cast %570 : i32 to index
    %c0_334 = arith.constant 0 : index
    %c0_335 = arith.constant 0 : index
    %609 = vector.load %arg7[%608, %c0_334, %c0_335] : memref<8x32x10xf32, #tpu.memory_space<vmem>>, vector<1x32x10xf32>
    %610 = vector.shape_cast %609 : vector<1x32x10xf32> to vector<32x10xf32>
    %cst_336 = arith.constant dense<0.000000e+00> : vector<8x10xf32>
    %611 = tpu.matmul %604, %610, %cst_336 {dimension_numbers = #tpu.dot_dimension_numbers<[1], [0], [0], [1], [0, 0, 1, 1], [], []>} : vector<8x32xf32>, vector<32x10xf32>, vector<8x10xf32> -> vector<8x10xf32>
    %612 = arith.addf %607, %611 : vector<8x10xf32>
    %c0_337 = arith.constant 0 : index
    %c0_338 = arith.constant 0 : index
    %613 = vector.load %arg14[%c0_337, %c0_338] : memref<8x10xf32, #tpu.memory_space<vmem>>, vector<8x10xf32>
    tpu.vector_store %arg14[%c0_337, %c0_338], %612 {strides = array<i32>} : memref<8x10xf32, #tpu.memory_space<vmem>>, vector<8x10xf32>,
    %c6_i32_339 = arith.constant 6 : i32
    %c1_i32_340 = arith.constant 1 : i32
    %614 = arith.muli %c6_i32_339, %c1_i32_340 : i32
    %c0_i32_341 = arith.constant 0 : i32
    %615 = arith.addi %c0_i32_341, %614 : i32
    %c8_i32_342 = arith.constant 8 : i32
    %616 = arith.muli %615, %c8_i32_342 : i32
    %617 = tpu.assume_multiple %616, 8 : i32
    %618 = arith.index_cast %617 : i32 to index
    %c0_343 = arith.constant 0 : index
    %619 = vector.load %arg10[%618, %c0_343] : memref<64x128xf32, #tpu.memory_space<vmem>>, vector<8x128xf32>
    %c0_344 = arith.constant 0 : index
    %c0_345 = arith.constant 0 : index
    %620 = vector.load %arg12[%c0_344, %c0_345] : memref<8x32xf32, #tpu.memory_space<vmem>>, vector<8x32xf32>
    %c0_346 = arith.constant 0 : index
    %c0_347 = arith.constant 0 : index
    %621 = vector.load %arg5[%c0_346, %c0_347] : memref<32x128xf32, #tpu.memory_space<vmem>>, vector<32x128xf32>
    %cst_348 = arith.constant dense<0.000000e+00> : vector<8x128xf32>
    %622 = tpu.matmul %620, %621, %cst_348 {dimension_numbers = #tpu.dot_dimension_numbers<[1], [0], [0], [1], [0, 0, 1, 1], [], []>} : vector<8x32xf32>, vector<32x128xf32>, vector<8x128xf32> -> vector<8x128xf32>
    %623 = arith.addf %619, %622 : vector<8x128xf32>
    %c0_349 = arith.constant 0 : index
    %c0_350 = arith.constant 0 : index
    %624 = vector.load %arg13[%c0_349, %c0_350] : memref<8x32xf32, #tpu.memory_space<vmem>>, vector<8x32xf32>
    %625 = vector.extract_strided_slice %623 {offsets = [0, 0], sizes = [8, 32], strides = [1, 1]} : vector<8x128xf32> to vector<8x32xf32>
    %626 = arith.negf %625 : vector<8x32xf32>
    %627 = math.exp %626 : vector<8x32xf32>
    %cst_351 = arith.constant 1.000000e+00 : f32
    %628 = vector.broadcast %cst_351 : f32 to vector<8x32xf32>
    %629 = arith.addf %628, %627 : vector<8x32xf32>
    %630 = arith.divf %628, %629 : vector<8x32xf32>
    %631 = vector.extract_strided_slice %623 {offsets = [0, 32], sizes = [8, 32], strides = [1, 1]} : vector<8x128xf32> to vector<8x32xf32>
    %632 = arith.negf %631 : vector<8x32xf32>
    %633 = math.exp %632 : vector<8x32xf32>
    %cst_352 = arith.constant 1.000000e+00 : f32
    %634 = vector.broadcast %cst_352 : f32 to vector<8x32xf32>
    %635 = arith.addf %634, %633 : vector<8x32xf32>
    %636 = arith.divf %634, %635 : vector<8x32xf32>
    %637 = vector.extract_strided_slice %623 {offsets = [0, 64], sizes = [8, 32], strides = [1, 1]} : vector<8x128xf32> to vector<8x32xf32>
    %638 = math.tanh %637 : vector<8x32xf32>
    %639 = vector.extract_strided_slice %623 {offsets = [0, 96], sizes = [8, 32], strides = [1, 1]} : vector<8x128xf32> to vector<8x32xf32>
    %640 = arith.negf %639 : vector<8x32xf32>
    %641 = math.exp %640 : vector<8x32xf32>
    %cst_353 = arith.constant 1.000000e+00 : f32
    %642 = vector.broadcast %cst_353 : f32 to vector<8x32xf32>
    %643 = arith.addf %642, %641 : vector<8x32xf32>
    %644 = arith.divf %642, %643 : vector<8x32xf32>
    %645 = arith.mulf %636, %624 : vector<8x32xf32>
    %646 = arith.mulf %630, %638 : vector<8x32xf32>
    %647 = arith.addf %645, %646 : vector<8x32xf32>
    %648 = math.tanh %647 : vector<8x32xf32>
    %649 = arith.mulf %644, %648 : vector<8x32xf32>
    %c0_354 = arith.constant 0 : index
    %c0_355 = arith.constant 0 : index
    %650 = vector.load %arg12[%c0_354, %c0_355] : memref<8x32xf32, #tpu.memory_space<vmem>>, vector<8x32xf32>
    tpu.vector_store %arg12[%c0_354, %c0_355], %649 {strides = array<i32>} : memref<8x32xf32, #tpu.memory_space<vmem>>, vector<8x32xf32>,
    %c0_356 = arith.constant 0 : index
    %c0_357 = arith.constant 0 : index
    %651 = vector.load %arg13[%c0_356, %c0_357] : memref<8x32xf32, #tpu.memory_space<vmem>>, vector<8x32xf32>
    tpu.vector_store %arg13[%c0_356, %c0_357], %647 {strides = array<i32>} : memref<8x32xf32, #tpu.memory_space<vmem>>, vector<8x32xf32>,
    %c0_358 = arith.constant 0 : index
    %c0_359 = arith.constant 0 : index
    %652 = vector.load %arg14[%c0_358, %c0_359] : memref<8x10xf32, #tpu.memory_space<vmem>>, vector<8x10xf32>
    %653 = arith.index_cast %615 : i32 to index
    %c0_360 = arith.constant 0 : index
    %c0_361 = arith.constant 0 : index
    %654 = vector.load %arg7[%653, %c0_360, %c0_361] : memref<8x32x10xf32, #tpu.memory_space<vmem>>, vector<1x32x10xf32>
    %655 = vector.shape_cast %654 : vector<1x32x10xf32> to vector<32x10xf32>
    %cst_362 = arith.constant dense<0.000000e+00> : vector<8x10xf32>
    %656 = tpu.matmul %649, %655, %cst_362 {dimension_numbers = #tpu.dot_dimension_numbers<[1], [0], [0], [1], [0, 0, 1, 1], [], []>} : vector<8x32xf32>, vector<32x10xf32>, vector<8x10xf32> -> vector<8x10xf32>
    %657 = arith.addf %652, %656 : vector<8x10xf32>
    %c0_363 = arith.constant 0 : index
    %c0_364 = arith.constant 0 : index
    %658 = vector.load %arg14[%c0_363, %c0_364] : memref<8x10xf32, #tpu.memory_space<vmem>>, vector<8x10xf32>
    tpu.vector_store %arg14[%c0_363, %c0_364], %657 {strides = array<i32>} : memref<8x10xf32, #tpu.memory_space<vmem>>, vector<8x10xf32>,
    %c7_i32_365 = arith.constant 7 : i32
    %c1_i32_366 = arith.constant 1 : i32
    %659 = arith.muli %c7_i32_365, %c1_i32_366 : i32
    %c0_i32_367 = arith.constant 0 : i32
    %660 = arith.addi %c0_i32_367, %659 : i32
    %c8_i32_368 = arith.constant 8 : i32
    %661 = arith.muli %660, %c8_i32_368 : i32
    %662 = tpu.assume_multiple %661, 8 : i32
    %663 = arith.index_cast %662 : i32 to index
    %c0_369 = arith.constant 0 : index
    %664 = vector.load %arg10[%663, %c0_369] : memref<64x128xf32, #tpu.memory_space<vmem>>, vector<8x128xf32>
    %c0_370 = arith.constant 0 : index
    %c0_371 = arith.constant 0 : index
    %665 = vector.load %arg12[%c0_370, %c0_371] : memref<8x32xf32, #tpu.memory_space<vmem>>, vector<8x32xf32>
    %c0_372 = arith.constant 0 : index
    %c0_373 = arith.constant 0 : index
    %666 = vector.load %arg5[%c0_372, %c0_373] : memref<32x128xf32, #tpu.memory_space<vmem>>, vector<32x128xf32>
    %cst_374 = arith.constant dense<0.000000e+00> : vector<8x128xf32>
    %667 = tpu.matmul %665, %666, %cst_374 {dimension_numbers = #tpu.dot_dimension_numbers<[1], [0], [0], [1], [0, 0, 1, 1], [], []>} : vector<8x32xf32>, vector<32x128xf32>, vector<8x128xf32> -> vector<8x128xf32>
    %668 = arith.addf %664, %667 : vector<8x128xf32>
    %c0_375 = arith.constant 0 : index
    %c0_376 = arith.constant 0 : index
    %669 = vector.load %arg13[%c0_375, %c0_376] : memref<8x32xf32, #tpu.memory_space<vmem>>, vector<8x32xf32>
    %670 = vector.extract_strided_slice %668 {offsets = [0, 0], sizes = [8, 32], strides = [1, 1]} : vector<8x128xf32> to vector<8x32xf32>
    %671 = arith.negf %670 : vector<8x32xf32>
    %672 = math.exp %671 : vector<8x32xf32>
    %cst_377 = arith.constant 1.000000e+00 : f32
    %673 = vector.broadcast %cst_377 : f32 to vector<8x32xf32>
    %674 = arith.addf %673, %672 : vector<8x32xf32>
    %675 = arith.divf %673, %674 : vector<8x32xf32>
    %676 = vector.extract_strided_slice %668 {offsets = [0, 32], sizes = [8, 32], strides = [1, 1]} : vector<8x128xf32> to vector<8x32xf32>
    %677 = arith.negf %676 : vector<8x32xf32>
    %678 = math.exp %677 : vector<8x32xf32>
    %cst_378 = arith.constant 1.000000e+00 : f32
    %679 = vector.broadcast %cst_378 : f32 to vector<8x32xf32>
    %680 = arith.addf %679, %678 : vector<8x32xf32>
    %681 = arith.divf %679, %680 : vector<8x32xf32>
    %682 = vector.extract_strided_slice %668 {offsets = [0, 64], sizes = [8, 32], strides = [1, 1]} : vector<8x128xf32> to vector<8x32xf32>
    %683 = math.tanh %682 : vector<8x32xf32>
    %684 = vector.extract_strided_slice %668 {offsets = [0, 96], sizes = [8, 32], strides = [1, 1]} : vector<8x128xf32> to vector<8x32xf32>
    %685 = arith.negf %684 : vector<8x32xf32>
    %686 = math.exp %685 : vector<8x32xf32>
    %cst_379 = arith.constant 1.000000e+00 : f32
    %687 = vector.broadcast %cst_379 : f32 to vector<8x32xf32>
    %688 = arith.addf %687, %686 : vector<8x32xf32>
    %689 = arith.divf %687, %688 : vector<8x32xf32>
    %690 = arith.mulf %681, %669 : vector<8x32xf32>
    %691 = arith.mulf %675, %683 : vector<8x32xf32>
    %692 = arith.addf %690, %691 : vector<8x32xf32>
    %693 = math.tanh %692 : vector<8x32xf32>
    %694 = arith.mulf %689, %693 : vector<8x32xf32>
    %c0_380 = arith.constant 0 : index
    %c0_381 = arith.constant 0 : index
    %695 = vector.load %arg12[%c0_380, %c0_381] : memref<8x32xf32, #tpu.memory_space<vmem>>, vector<8x32xf32>
    tpu.vector_store %arg12[%c0_380, %c0_381], %694 {strides = array<i32>} : memref<8x32xf32, #tpu.memory_space<vmem>>, vector<8x32xf32>,
    %c0_382 = arith.constant 0 : index
    %c0_383 = arith.constant 0 : index
    %696 = vector.load %arg13[%c0_382, %c0_383] : memref<8x32xf32, #tpu.memory_space<vmem>>, vector<8x32xf32>
    tpu.vector_store %arg13[%c0_382, %c0_383], %692 {strides = array<i32>} : memref<8x32xf32, #tpu.memory_space<vmem>>, vector<8x32xf32>,
    %c0_384 = arith.constant 0 : index
    %c0_385 = arith.constant 0 : index
    %697 = vector.load %arg14[%c0_384, %c0_385] : memref<8x10xf32, #tpu.memory_space<vmem>>, vector<8x10xf32>
    %698 = arith.index_cast %660 : i32 to index
    %c0_386 = arith.constant 0 : index
    %c0_387 = arith.constant 0 : index
    %699 = vector.load %arg7[%698, %c0_386, %c0_387] : memref<8x32x10xf32, #tpu.memory_space<vmem>>, vector<1x32x10xf32>
    %700 = vector.shape_cast %699 : vector<1x32x10xf32> to vector<32x10xf32>
    %cst_388 = arith.constant dense<0.000000e+00> : vector<8x10xf32>
    %701 = tpu.matmul %694, %700, %cst_388 {dimension_numbers = #tpu.dot_dimension_numbers<[1], [0], [0], [1], [0, 0, 1, 1], [], []>} : vector<8x32xf32>, vector<32x10xf32>, vector<8x10xf32> -> vector<8x10xf32>
    %702 = arith.addf %697, %701 : vector<8x10xf32>
    %c0_389 = arith.constant 0 : index
    %c0_390 = arith.constant 0 : index
    %703 = vector.load %arg14[%c0_389, %c0_390] : memref<8x10xf32, #tpu.memory_space<vmem>>, vector<8x10xf32>
    tpu.vector_store %arg14[%c0_389, %c0_390], %702 {strides = array<i32>} : memref<8x10xf32, #tpu.memory_space<vmem>>, vector<8x10xf32>,
    %c8_i32_391 = arith.constant 8 : i32
    %c0_392 = arith.constant 0 : index
    %c0_393 = arith.constant 0 : index
    %704 = vector.load %arg14[%c0_392, %c0_393] : memref<8x10xf32, #tpu.memory_space<vmem>>, vector<8x10xf32>
    %c0_394 = arith.constant 0 : index
    %c0_395 = arith.constant 0 : index
    %705 = vector.load %arg8[%c0_394, %c0_395] : memref<1x10xf32, #tpu.memory_space<vmem>>, vector<1x10xf32>
    %706 = vector.broadcast %705 : vector<1x10xf32> to vector<8x10xf32>
    %707 = arith.addf %704, %706 : vector<8x10xf32>
    %c0_396 = arith.constant 0 : index
    %c0_397 = arith.constant 0 : index
    %708 = vector.load %arg9[%c0_396, %c0_397] : memref<8x10xf32, #tpu.memory_space<vmem>>, vector<8x10xf32>
    tpu.vector_store %arg9[%c0_396, %c0_397], %707 {strides = array<i32>} : memref<8x10xf32, #tpu.memory_space<vmem>>, vector<8x10xf32>,
    return
  }
}

</mosaic_0001>

<llo_original>
// kernel: rnn_forward.1
$region0: #{rnn_forward.1}
  #allocation0 [shape = 'u32[]', space=smem, size = 0x4, offset = 0x4, fixed_abs, tag = 'smem constant byte address 0x4 - core index']
  #allocation1 [shape = 'u32[144,128]{1,0:T(1,128)}', space=vmem, size = 0x12000, scoped, tag = 'internal scratch']
  #allocation2 [shape = 'f32[64,128]{1,0:T(8,128)}', space=vmem, size = 0x8000, scoped, tag = 'scratch operand']
  #allocation3 [shape = 'f32[64,32]{1,0:T(8,128)}', space=vmem, size = 0x8000, scoped, tag = 'scratch operand']
  #allocation4 [shape = 'f32[8,32]{1,0:T(8,128)}', space=vmem, size = 0x1000, scoped, tag = 'scratch operand']
  #allocation5 [shape = 'f32[8,32]{1,0:T(8,128)}', space=vmem, size = 0x1000, scoped, tag = 'scratch operand']
  #allocation6 [shape = 'f32[8,10]{1,0:T(8,128)}', space=vmem, size = 0x1000, scoped, tag = 'scratch operand']
  %s0 = inlined_call_operand.vmem [shape: f32[64,16], index: 0, kind: input, shape index: {}]
  %s1 = inlined_call_operand.vmem [shape: f32[16,128], index: 1, kind: input, shape index: {}]
  %s2 = inlined_call_operand.vmem [shape: f32[32,128], index: 2, kind: input, shape index: {}]
  %s3 = inlined_call_operand.vmem [shape: f32[1,128], index: 3, kind: input, shape index: {}]
  %s4 = inlined_call_operand.vmem [shape: f32[32,128], index: 4, kind: input, shape index: {}]
  %s5 = inlined_call_operand.vmem [shape: f32[32,128], index: 5, kind: input, shape index: {}]
  %s6 = inlined_call_operand.vmem [shape: f32[1,128], index: 6, kind: input, shape index: {}]
  %s7 = inlined_call_operand.vmem [shape: f32[8,32,10], index: 7, kind: input, shape index: {}]
  %s8 = inlined_call_operand.vmem [shape: f32[1,10], index: 8, kind: input, shape index: {}]
  %s9 = inlined_call_operand.vmem [shape: f32[8,10], index: 9, kind: output, shape index: {}]
  %s10 = sld [smem:[#allocation0]]
  $region46: #{rnn_forward.1} parent=0
    _
  %s12 = ssub.s32 1, %s10
  %s13 = scalar_select 0, %s12, %s10
  // Predicated region
  $region2: #{rnn_forward.1} parent=0 // pred_check
    _
  $region3: #{rnn_forward.1} parent=0 // pred_check_branch
    %15 = sbr.rel (0) target = $region5
  $region4: #{rnn_forward.1} parent=0 // pred_region
    _
  $region5: #{rnn_forward.1} parent=0 // pred_fallthru
    _
  // Predicated region
  $region6: #{rnn_forward.1} parent=0 // pred_check
    _
  $region7: #{rnn_forward.1} parent=0 // pred_check_branch
    %17 = sbr.rel (0) target = $region9
  $region8: #{rnn_forward.1} parent=0 // pred_region
    _
  $region9: #{rnn_forward.1} parent=0 // pred_fallthru
    _
  // Predicated region
  $region10: #{rnn_forward.1} parent=0 // pred_check
    _
  $region11: #{rnn_forward.1} parent=0 // pred_check_branch
    %19 = sbr.rel (0) target = $region13
  $region12: #{rnn_forward.1} parent=0 // pred_region
    _
  $region13: #{rnn_forward.1} parent=0 // pred_fallthru
    _
  // Predicated region
  $region14: #{rnn_forward.1} parent=0 // pred_check
    _
  $region15: #{rnn_forward.1} parent=0 // pred_check_branch
    %21 = sbr.rel (0) target = $region17
  $region16: #{rnn_forward.1} parent=0 // pred_region
    _
  $region17: #{rnn_forward.1} parent=0 // pred_fallthru
    _
  // Predicated region
  $region18: #{rnn_forward.1} parent=0 // pred_check
    _
  $region19: #{rnn_forward.1} parent=0 // pred_check_branch
    %23 = sbr.rel (0) target = $region21
  $region20: #{rnn_forward.1} parent=0 // pred_region
    _
  $region21: #{rnn_forward.1} parent=0 // pred_fallthru
    _
  // Predicated region
  $region22: #{rnn_forward.1} parent=0 // pred_check
    _
  $region23: #{rnn_forward.1} parent=0 // pred_check_branch
    %25 = sbr.rel (0) target = $region25
  $region24: #{rnn_forward.1} parent=0 // pred_region
    _
  $region25: #{rnn_forward.1} parent=0 // pred_fallthru
    _
  // Predicated region
  $region26: #{rnn_forward.1} parent=0 // pred_check
    _
  $region27: #{rnn_forward.1} parent=0 // pred_check_branch
    %27 = sbr.rel (0) target = $region29
  $region28: #{rnn_forward.1} parent=0 // pred_region
    _
  $region29: #{rnn_forward.1} parent=0 // pred_fallthru
    _
  // Predicated region
  $region30: #{rnn_forward.1} parent=0 // pred_check
    _
  $region31: #{rnn_forward.1} parent=0 // pred_check_branch
    %29 = sbr.rel (0) target = $region33
  $region32: #{rnn_forward.1} parent=0 // pred_region
    _
  $region33: #{rnn_forward.1} parent=0 // pred_fallthru
    _
  // Predicated region
  $region34: #{rnn_forward.1} parent=0 // pred_check
    _
  $region35: #{rnn_forward.1} parent=0 // pred_check_branch
    %31 = sbr.rel (0) target = $region37
  $region36: #{rnn_forward.1} parent=0 // pred_region
    _
  $region37: #{rnn_forward.1} parent=0 // pred_fallthru
    _
  %v32 = vld [vmem:[%s0] sm:$0xff]
  %v33 = vld [vmem:[%s0 + $0x8] sm:$0xff]
  %v34 = vld [vmem:[%s0 + $0x10] sm:$0xff]
  %v35 = vld [vmem:[%s0 + $0x18] sm:$0xff]
  %v36 = vld [vmem:[%s0 + $0x20] sm:$0xff]
  %v37 = vld [vmem:[%s0 + $0x28] sm:$0xff]
  %v38 = vld [vmem:[%s0 + $0x30] sm:$0xff]
  %v39 = vld [vmem:[%s0 + $0x38] sm:$0xff]
  %v40 = vld [vmem:[%s1] sm:$0xff]
  %v41 = vld [vmem:[%s1 + $0x8] sm:$0xff]
  %v42 = vld [vmem:[%s3] sm:$0x1]
  %v44 = vlaneseq
  %v45 = vshrl.u32 %v44, 7
  %v46 = vsub.s32 0, %v45
  %v47 = vrot.slane %v42, %v46
  %vm49 = vcmask 130048
  %v51 = vsel %vm49, %v32, 0
  %v54 = vsel %vm49, %v33, 0
  %v57 = vsel %vm49, %v34, 0
  %v60 = vsel %vm49, %v35, 0
  %v63 = vsel %vm49, %v36, 0
  %v66 = vsel %vm49, %v37, 0
  %v69 = vsel %vm49, %v38, 0
  %v72 = vsel %vm49, %v39, 0
  %74 = vmatprep.subr.mxu0 0.0
  %75 = vmatpush1.msra.mxu0 %v40
  %76 = vmatprep.subr.mxu0 0.0
  %77 = vmatpush1.msra.mxu0 %v41
  %78 = vmatprep.subr.mxu0 0.0
  %79 = vmatpush1.msra.mxu0 0.0
  %80 = vmatprep.subr.mxu0 0.0
  %81 = vmatpush1.msra.mxu0 0.0
  %82 = vmatprep.subr.mxu0 0.0
  %83 = vmatpush1.msra.mxu0 0.0
  %84 = vmatprep.subr.mxu0 0.0
  %85 = vmatpush1.msra.mxu0 0.0
  %86 = vmatprep.subr.mxu0 0.0
  %87 = vmatpush1.msra.mxu0 0.0
  %88 = vmatprep.subr.mxu0 0.0
  %89 = vmatpush1.msra.mxu0 0.0
  %90 = vmatprep.subr.mxu0 0.0
  %91 = vmatpush1.msra.mxu0 0.0
  %92 = vmatprep.subr.mxu0 0.0
  %93 = vmatpush1.msra.mxu0 0.0
  %94 = vmatprep.subr.mxu0 0.0
  %95 = vmatpush1.msra.mxu0 0.0
  %96 = vmatprep.subr.mxu0 0.0
  %97 = vmatpush1.msra.mxu0 0.0
  %98 = vmatprep.subr.mxu0 0.0
  %99 = vmatpush1.msra.mxu0 0.0
  %100 = vmatprep.subr.mxu0 0.0
  %101 = vmatpush1.msra.mxu0 0.0
  %102 = vmatprep.subr.mxu0 0.0
  %103 = vmatpush1.msra.mxu0 0.0
  %104 = vmatprep.subr.mxu0 0.0
  %105 = vmatpush1.msra.mxu0 0.0
  %106 = vmatprep.subr.mxu0 0.0
  %107 = vmatpush1.msra.mxu0 0.0
  %108 = vmatprep.subr.mxu0 0.0
  %109 = vmatpush1.msra.mxu0 0.0
  %110 = vmatprep.subr.mxu0 0.0
  %111 = vmatpush1.msra.mxu0 0.0
  %112 = vmatprep.subr.mxu0 0.0
  %113 = vmatpush1.msra.mxu0 0.0
  %114 = vmatprep.subr.mxu0 0.0
  %115 = vmatpush1.msra.mxu0 0.0
  %116 = vmatprep.subr.mxu0 0.0
  %117 = vmatpush1.msra.mxu0 0.0
  %118 = vmatprep.subr.mxu0 0.0
  %119 = vmatpush1.msra.mxu0 0.0
  %120 = vmatprep.subr.mxu0 0.0
  %121 = vmatpush1.msra.mxu0 0.0
  %122 = vmatprep.subr.mxu0 0.0
  %123 = vmatpush1.msra.mxu0 0.0
  %124 = vmatprep.subr.mxu0 0.0
  %125 = vmatpush1.msra.mxu0 0.0
  %126 = vmatprep.subr.mxu0 0.0
  %127 = vmatpush1.msra.mxu0 0.0
  %128 = vmatprep.subr.mxu0 0.0
  %129 = vmatpush1.msra.mxu0 0.0
  %130 = vmatprep.subr.mxu0 0.0
  %131 = vmatpush1.msra.mxu0 0.0
  %132 = vmatprep.subr.mxu0 0.0
  %133 = vmatpush1.msra.mxu0 0.0
  %134 = vmatprep.subr.mxu0 0.0
  %135 = vmatpush1.msra.mxu0 0.0
  %136 = vmatprep.subr.mxu0 0.0
  %137 = vmatpush1.msra.mxu0 0.0
  %138 = vmatprep.mubr.f32.mxu0 0.0
  %139 = vmatmul.mubr.f32.gmra.mrb[0].mxu0 %v51
  %v140 = vpop.f32.mrb[0].mxu0
  %v141 = vadd.f32 %v47, %v140
  %v142 = vpop.f32.mrb[0].mxu0
  %143 = vmatprep.mubr.f32.mxu0 0.0
  %144 = vmatmul.mubr.f32.gmra.mrb[0].mxu0 %v54
  %v145 = vpop.f32.mrb[0].mxu0
  %v146 = vadd.f32 %v47, %v145
  %v147 = vpop.f32.mrb[0].mxu0
  %148 = vmatprep.mubr.f32.mxu0 0.0
  %149 = vmatmul.mubr.f32.gmra.mrb[0].mxu0 %v57
  %v150 = vpop.f32.mrb[0].mxu0
  %v151 = vadd.f32 %v47, %v150
  %v152 = vpop.f32.mrb[0].mxu0
  %153 = vmatprep.mubr.f32.mxu0 0.0
  %154 = vmatmul.mubr.f32.gmra.mrb[0].mxu0 %v60
  %v155 = vpop.f32.mrb[0].mxu0
  %v156 = vadd.f32 %v47, %v155
  %v157 = vpop.f32.mrb[0].mxu0
  %158 = vmatprep.mubr.f32.mxu0 0.0
  %159 = vmatmul.mubr.f32.gmra.mrb[0].mxu0 %v63
  %v160 = vpop.f32.mrb[0].mxu0
  %v161 = vadd.f32 %v47, %v160
  %v162 = vpop.f32.mrb[0].mxu0
  %163 = vmatprep.mubr.f32.mxu0 0.0
  %164 = vmatmul.mubr.f32.gmra.mrb[0].mxu0 %v66
  %v165 = vpop.f32.mrb[0].mxu0
  %v166 = vadd.f32 %v47, %v165
  %v167 = vpop.f32.mrb[0].mxu0
  %168 = vmatprep.mubr.f32.mxu0 0.0
  %169 = vmatmul.mubr.f32.gmra.mrb[0].mxu0 %v69
  %v170 = vpop.f32.mrb[0].mxu0
  %v171 = vadd.f32 %v47, %v170
  %v172 = vpop.f32.mrb[0].mxu0
  %173 = vmatprep.mubr.f32.mxu0 0.0
  %174 = vmatmul.mubr.f32.gmra.mrb[0].mxu0 %v72
  %v175 = vpop.f32.mrb[0].mxu0
  %v176 = vadd.f32 %v47, %v175
  %v177 = vpop.f32.mrb[0].mxu0
  %178 = vdwg.mxu0
  %179 = vst [vmem:[#allocation2] sm:$0xff] %v141
  %180 = vst [vmem:[#allocation2 + $0x8] sm:$0xff] %v146
  %181 = vst [vmem:[#allocation2 + $0x10] sm:$0xff] %v151
  %182 = vst [vmem:[#allocation2 + $0x18] sm:$0xff] %v156
  %183 = vst [vmem:[#allocation2 + $0x20] sm:$0xff] %v161
  %184 = vst [vmem:[#allocation2 + $0x28] sm:$0xff] %v166
  %185 = vst [vmem:[#allocation2 + $0x30] sm:$0xff] %v171
  %186 = vst [vmem:[#allocation2 + $0x38] sm:$0xff] %v176
  %vm187 = vcmask 261120
  %188 = vst.msk [vmem:[#allocation4] sm:$0xff] %vm187, 0.0
  %189 = vst.msk [vmem:[#allocation5] sm:$0xff] %vm187, 0.0
  %v190 = vld [vmem:[#allocation2] sm:$0xff]
  %v191 = vld [vmem:[#allocation4] sm:$0xff]
  %v192 = vld [vmem:[%s2] sm:$0xff]
  %v193 = vld [vmem:[%s2 + $0x8] sm:$0xff]
  %v194 = vld [vmem:[%s2 + $0x10] sm:$0xff]
  %v195 = vld [vmem:[%s2 + $0x18] sm:$0xff]
  %v197 = vsel %vm187, %v191, 0
  %199 = vmatprep.subr.mxu0 0.0
  %200 = vmatpush1.msra.mxu0 %v192
  %201 = vmatprep.subr.mxu0 0.0
  %202 = vmatpush1.msra.mxu0 %v193
  %203 = vmatprep.subr.mxu0 0.0
  %204 = vmatpush1.msra.mxu0 %v194
  %205 = vmatprep.subr.mxu0 0.0
  %206 = vmatpush1.msra.mxu0 %v195
  %207 = vmatprep.subr.mxu0 0.0
  %208 = vmatpush1.msra.mxu0 0.0
  %209 = vmatprep.subr.mxu0 0.0
  %210 = vmatpush1.msra.mxu0 0.0
  %211 = vmatprep.subr.mxu0 0.0
  %212 = vmatpush1.msra.mxu0 0.0
  %213 = vmatprep.subr.mxu0 0.0
  %214 = vmatpush1.msra.mxu0 0.0
  %215 = vmatprep.subr.mxu0 0.0
  %216 = vmatpush1.msra.mxu0 0.0
  %217 = vmatprep.subr.mxu0 0.0
  %218 = vmatpush1.msra.mxu0 0.0
  %219 = vmatprep.subr.mxu0 0.0
  %220 = vmatpush1.msra.mxu0 0.0
  %221 = vmatprep.subr.mxu0 0.0
  %222 = vmatpush1.msra.mxu0 0.0
  %223 = vmatprep.subr.mxu0 0.0
  %224 = vmatpush1.msra.mxu0 0.0
  %225 = vmatprep.subr.mxu0 0.0
  %226 = vmatpush1.msra.mxu0 0.0
  %227 = vmatprep.subr.mxu0 0.0
  %228 = vmatpush1.msra.mxu0 0.0
  %229 = vmatprep.subr.mxu0 0.0
  %230 = vmatpush1.msra.mxu0 0.0
  %231 = vmatprep.subr.mxu0 0.0
  %232 = vmatpush1.msra.mxu0 0.0
  %233 = vmatprep.subr.mxu0 0.0
  %234 = vmatpush1.msra.mxu0 0.0
  %235 = vmatprep.subr.mxu0 0.0
  %236 = vmatpush1.msra.mxu0 0.0
  %237 = vmatprep.subr.mxu0 0.0
  %238 = vmatpush1.msra.mxu0 0.0
  %239 = vmatprep.subr.mxu0 0.0
  %240 = vmatpush1.msra.mxu0 0.0
  %241 = vmatprep.subr.mxu0 0.0
  %242 = vmatpush1.msra.mxu0 0.0
  %243 = vmatprep.subr.mxu0 0.0
  %244 = vmatpush1.msra.mxu0 0.0
  %245 = vmatprep.subr.mxu0 0.0
  %246 = vmatpush1.msra.mxu0 0.0
  %247 = vmatprep.subr.mxu0 0.0
  %248 = vmatpush1.msra.mxu0 0.0
  %249 = vmatprep.subr.mxu0 0.0
  %250 = vmatpush1.msra.mxu0 0.0
  %251 = vmatprep.subr.mxu0 0.0
  %252 = vmatpush1.msra.mxu0 0.0
  %253 = vmatprep.subr.mxu0 0.0
  %254 = vmatpush1.msra.mxu0 0.0
  %255 = vmatprep.subr.mxu0 0.0
  %256 = vmatpush1.msra.mxu0 0.0
  %257 = vmatprep.subr.mxu0 0.0
  %258 = vmatpush1.msra.mxu0 0.0
  %259 = vmatprep.subr.mxu0 0.0
  %260 = vmatpush1.msra.mxu0 0.0
  %261 = vmatprep.subr.mxu0 0.0
  %262 = vmatpush1.msra.mxu0 0.0
  %263 = vmatprep.mubr.f32.mxu0 0.0
  %264 = vmatmul.mubr.f32.gmra.mrb[0].mxu0 %v197
  %v265 = vpop.f32.mrb[0].mxu0
  %v266 = vadd.f32 0.0, %v265
  %v267 = vpop.f32.mrb[0].mxu0
  %268 = vdwg.mxu0
  %v269 = vadd.f32 %v190, %v266
  %v270 = vld [vmem:[#allocation5] sm:$0xff]
  %v271 = vxor.u32 %v269, 2147483648
  %v272 = vmul.f32 %v271, 1.442695
  %v273 = vpow.pop %v272
  %v274 = vadd.f32 %v273, 1.0
  %v275 = vrcp.pop %v274
  %v276 = vmul.f32 1.0, %v275
  %v277 = vtanh.pop %v269
  %279 = vrot.lane.b32.xlu0 %v270, 32
  %v280 = vpop.permute.xlu0 %279
  %v282 = vmul.f32 %v276, %v280
  %284 = vrot.lane.b32.xlu0 %v277, 64
  %v285 = vpop.permute.xlu0 %284
  %v287 = vmul.f32 %v276, %v285
  %289 = vrot.lane.b32.xlu0 %v287, 32
  %v290 = vpop.permute.xlu0 %289
  %v292 = vadd.f32 %v282, %v290
  %v293 = vtanh.pop %v292
  %295 = vrot.lane.b32.xlu0 %v293, 64
  %v296 = vpop.permute.xlu0 %295
  %v298 = vmul.f32 %v276, %v296
  %300 = vrot.lane.b32.xlu0 %v298, 32
  %v301 = vpop.permute.xlu0 %300
  %303 = vst.msk [vmem:[#allocation4] sm:$0xff] %vm187, %v301
  %305 = vrot.lane.b32.xlu0 %v292, 96
  %v306 = vpop.permute.xlu0 %305
  %308 = vst.msk [vmem:[#allocation5] sm:$0xff] %vm187, %v306
  %309 = vst.msk [vmem:[#allocation3] sm:$0xff] %vm187, %v301
  %s310 = scalar_lea.vmem [#allocation2], 8
  %v311 = vld [vmem:[%s310] sm:$0xff]
  %v312 = vld [vmem:[#allocation4] sm:$0xff]
  %v313 = vld [vmem:[%s2] sm:$0xff]
  %v314 = vld [vmem:[%s2 + $0x8] sm:$0xff]
  %v315 = vld [vmem:[%s2 + $0x10] sm:$0xff]
  %v316 = vld [vmem:[%s2 + $0x18] sm:$0xff]
  %v318 = vsel %vm187, %v312, 0
  %320 = vmatprep.subr.mxu0 0.0
  %321 = vmatpush1.msra.mxu0 %v313
  %322 = vmatprep.subr.mxu0 0.0
  %323 = vmatpush1.msra.mxu0 %v314
  %324 = vmatprep.subr.mxu0 0.0
  %325 = vmatpush1.msra.mxu0 %v315
  %326 = vmatprep.subr.mxu0 0.0
  %327 = vmatpush1.msra.mxu0 %v316
  %328 = vmatprep.subr.mxu0 0.0
  %329 = vmatpush1.msra.mxu0 0.0
  %330 = vmatprep.subr.mxu0 0.0
  %331 = vmatpush1.msra.mxu0 0.0
  %332 = vmatprep.subr.mxu0 0.0
  %333 = vmatpush1.msra.mxu0 0.0
  %334 = vmatprep.subr.mxu0 0.0
  %335 = vmatpush1.msra.mxu0 0.0
  %336 = vmatprep.subr.mxu0 0.0
  %337 = vmatpush1.msra.mxu0 0.0
  %338 = vmatprep.subr.mxu0 0.0
  %339 = vmatpush1.msra.mxu0 0.0
  %340 = vmatprep.subr.mxu0 0.0
  %341 = vmatpush1.msra.mxu0 0.0
  %342 = vmatprep.subr.mxu0 0.0
  %343 = vmatpush1.msra.mxu0 0.0
  %344 = vmatprep.subr.mxu0 0.0
  %345 = vmatpush1.msra.mxu0 0.0
  %346 = vmatprep.subr.mxu0 0.0
  %347 = vmatpush1.msra.mxu0 0.0
  %348 = vmatprep.subr.mxu0 0.0
  %349 = vmatpush1.msra.mxu0 0.0
  %350 = vmatprep.subr.mxu0 0.0
  %351 = vmatpush1.msra.mxu0 0.0
  %352 = vmatprep.subr.mxu0 0.0
  %353 = vmatpush1.msra.mxu0 0.0
  %354 = vmatprep.subr.mxu0 0.0
  %355 = vmatpush1.msra.mxu0 0.0
  %356 = vmatprep.subr.mxu0 0.0
  %357 = vmatpush1.msra.mxu0 0.0
  %358 = vmatprep.subr.mxu0 0.0
  %359 = vmatpush1.msra.mxu0 0.0
  %360 = vmatprep.subr.mxu0 0.0
  %361 = vmatpush1.msra.mxu0 0.0
  %362 = vmatprep.subr.mxu0 0.0
  %363 = vmatpush1.msra.mxu0 0.0
  %364 = vmatprep.subr.mxu0 0.0
  %365 = vmatpush1.msra.mxu0 0.0
  %366 = vmatprep.subr.mxu0 0.0
  %367 = vmatpush1.msra.mxu0 0.0
  %368 = vmatprep.subr.mxu0 0.0
  %369 = vmatpush1.msra.mxu0 0.0
  %370 = vmatprep.subr.mxu0 0.0
  %371 = vmatpush1.msra.mxu0 0.0
  %372 = vmatprep.subr.mxu0 0.0
  %373 = vmatpush1.msra.mxu0 0.0
  %374 = vmatprep.subr.mxu0 0.0
  %375 = vmatpush1.msra.mxu0 0.0
  %376 = vmatprep.subr.mxu0 0.0
  %377 = vmatpush1.msra.mxu0 0.0
  %378 = vmatprep.subr.mxu0 0.0
  %379 = vmatpush1.msra.mxu0 0.0
  %380 = vmatprep.subr.mxu0 0.0
  %381 = vmatpush1.msra.mxu0 0.0
  %382 = vmatprep.subr.mxu0 0.0
  %383 = vmatpush1.msra.mxu0 0.0
  %384 = vmatprep.mubr.f32.mxu0 0.0
  %385 = vmatmul.mubr.f32.gmra.mrb[0].mxu0 %v318
  %v386 = vpop.f32.mrb[0].mxu0
  %v387 = vadd.f32 0.0, %v386
  %v388 = vpop.f32.mrb[0].mxu0
  %389 = vdwg.mxu0
  %v390 = vadd.f32 %v311, %v387
  %v391 = vld [vmem:[#allocation5] sm:$0xff]
  %v392 = vxor.u32 %v390, 2147483648
  %v393 = vmul.f32 %v392, 1.442695
  %v394 = vpow.pop %v393
  %v395 = vadd.f32 %v394, 1.0
  %v396 = vrcp.pop %v395
  %v397 = vmul.f32 1.0, %v396
  %v398 = vtanh.pop %v390
  %400 = vrot.lane.b32.xlu0 %v391, 32
  %v401 = vpop.permute.xlu0 %400
  %v403 = vmul.f32 %v397, %v401
  %405 = vrot.lane.b32.xlu0 %v398, 64
  %v406 = vpop.permute.xlu0 %405
  %v408 = vmul.f32 %v397, %v406
  %410 = vrot.lane.b32.xlu0 %v408, 32
  %v411 = vpop.permute.xlu0 %410
  %v413 = vadd.f32 %v403, %v411
  %v414 = vtanh.pop %v413
  %416 = vrot.lane.b32.xlu0 %v414, 64
  %v417 = vpop.permute.xlu0 %416
  %v419 = vmul.f32 %v397, %v417
  %421 = vrot.lane.b32.xlu0 %v419, 32
  %v422 = vpop.permute.xlu0 %421
  %424 = vst.msk [vmem:[#allocation4] sm:$0xff] %vm187, %v422
  %426 = vrot.lane.b32.xlu0 %v413, 96
  %v427 = vpop.permute.xlu0 %426
  %429 = vst.msk [vmem:[#allocation5] sm:$0xff] %vm187, %v427
  %s430 = scalar_lea.vmem [#allocation3], 8
  %431 = vst.msk [vmem:[%s430] sm:$0xff] %vm187, %v422
  %s432 = scalar_lea.vmem [#allocation2], 16
  %v433 = vld [vmem:[%s432] sm:$0xff]
  %v434 = vld [vmem:[#allocation4] sm:$0xff]
  %v435 = vld [vmem:[%s2] sm:$0xff]
  %v436 = vld [vmem:[%s2 + $0x8] sm:$0xff]
  %v437 = vld [vmem:[%s2 + $0x10] sm:$0xff]
  %v438 = vld [vmem:[%s2 + $0x18] sm:$0xff]
  %v440 = vsel %vm187, %v434, 0
  %442 = vmatprep.subr.mxu0 0.0
  %443 = vmatpush1.msra.mxu0 %v435
  %444 = vmatprep.subr.mxu0 0.0
  %445 = vmatpush1.msra.mxu0 %v436
  %446 = vmatprep.subr.mxu0 0.0
  %447 = vmatpush1.msra.mxu0 %v437
  %448 = vmatprep.subr.mxu0 0.0
  %449 = vmatpush1.msra.mxu0 %v438
  %450 = vmatprep.subr.mxu0 0.0
  %451 = vmatpush1.msra.mxu0 0.0
  %452 = vmatprep.subr.mxu0 0.0
  %453 = vmatpush1.msra.mxu0 0.0
  %454 = vmatprep.subr.mxu0 0.0
  %455 = vmatpush1.msra.mxu0 0.0
  %456 = vmatprep.subr.mxu0 0.0
  %457 = vmatpush1.msra.mxu0 0.0
  %458 = vmatprep.subr.mxu0 0.0
  %459 = vmatpush1.msra.mxu0 0.0
  %460 = vmatprep.subr.mxu0 0.0
  %461 = vmatpush1.msra.mxu0 0.0
  %462 = vmatprep.subr.mxu0 0.0
  %463 = vmatpush1.msra.mxu0 0.0
  %464 = vmatprep.subr.mxu0 0.0
  %465 = vmatpush1.msra.mxu0 0.0
  %466 = vmatprep.subr.mxu0 0.0
  %467 = vmatpush1.msra.mxu0 0.0
  %468 = vmatprep.subr.mxu0 0.0
  %469 = vmatpush1.msra.mxu0 0.0
  %470 = vmatprep.subr.mxu0 0.0
  %471 = vmatpush1.msra.mxu0 0.0
  %472 = vmatprep.subr.mxu0 0.0
  %473 = vmatpush1.msra.mxu0 0.0
  %474 = vmatprep.subr.mxu0 0.0
  %475 = vmatpush1.msra.mxu0 0.0
  %476 = vmatprep.subr.mxu0 0.0
  %477 = vmatpush1.msra.mxu0 0.0
  %478 = vmatprep.subr.mxu0 0.0
  %479 = vmatpush1.msra.mxu0 0.0
  %480 = vmatprep.subr.mxu0 0.0
  %481 = vmatpush1.msra.mxu0 0.0
  %482 = vmatprep.subr.mxu0 0.0
  %483 = vmatpush1.msra.mxu0 0.0
  %484 = vmatprep.subr.mxu0 0.0
  %485 = vmatpush1.msra.mxu0 0.0
  %486 = vmatprep.subr.mxu0 0.0
  %487 = vmatpush1.msra.mxu0 0.0
  %488 = vmatprep.subr.mxu0 0.0
  %489 = vmatpush1.msra.mxu0 0.0
  %490 = vmatprep.subr.mxu0 0.0
  %491 = vmatpush1.msra.mxu0 0.0
  %492 = vmatprep.subr.mxu0 0.0
  %493 = vmatpush1.msra.mxu0 0.0
  %494 = vmatprep.subr.mxu0 0.0
  %495 = vmatpush1.msra.mxu0 0.0
  %496 = vmatprep.subr.mxu0 0.0
  %497 = vmatpush1.msra.mxu0 0.0
  %498 = vmatprep.subr.mxu0 0.0
  %499 = vmatpush1.msra.mxu0 0.0
  %500 = vmatprep.subr.mxu0 0.0
  %501 = vmatpush1.msra.mxu0 0.0
  %502 = vmatprep.subr.mxu0 0.0
  %503 = vmatpush1.msra.mxu0 0.0
  %504 = vmatprep.subr.mxu0 0.0
  %505 = vmatpush1.msra.mxu0 0.0
  %506 = vmatprep.mubr.f32.mxu0 0.0
  %507 = vmatmul.mubr.f32.gmra.mrb[0].mxu0 %v440
  %v508 = vpop.f32.mrb[0].mxu0
  %v509 = vadd.f32 0.0, %v508
  %v510 = vpop.f32.mrb[0].mxu0
  %511 = vdwg.mxu0
  %v512 = vadd.f32 %v433, %v509
  %v513 = vld [vmem:[#allocation5] sm:$0xff]
  %v514 = vxor.u32 %v512, 2147483648
  %v515 = vmul.f32 %v514, 1.442695
  %v516 = vpow.pop %v515
  %v517 = vadd.f32 %v516, 1.0
  %v518 = vrcp.pop %v517
  %v519 = vmul.f32 1.0, %v518
  %v520 = vtanh.pop %v512
  %522 = vrot.lane.b32.xlu0 %v513, 32
  %v523 = vpop.permute.xlu0 %522
  %v525 = vmul.f32 %v519, %v523
  %527 = vrot.lane.b32.xlu0 %v520, 64
  %v528 = vpop.permute.xlu0 %527
  %v530 = vmul.f32 %v519, %v528
  %532 = vrot.lane.b32.xlu0 %v530, 32
  %v533 = vpop.permute.xlu0 %532
  %v535 = vadd.f32 %v525, %v533
  %v536 = vtanh.pop %v535
  %538 = vrot.lane.b32.xlu0 %v536, 64
  %v539 = vpop.permute.xlu0 %538
  %v541 = vmul.f32 %v519, %v539
  %543 = vrot.lane.b32.xlu0 %v541, 32
  %v544 = vpop.permute.xlu0 %543
  %546 = vst.msk [vmem:[#allocation4] sm:$0xff] %vm187, %v544
  %548 = vrot.lane.b32.xlu0 %v535, 96
  %v549 = vpop.permute.xlu0 %548
  %551 = vst.msk [vmem:[#allocation5] sm:$0xff] %vm187, %v549
  %s552 = scalar_lea.vmem [#allocation3], 16
  %553 = vst.msk [vmem:[%s552] sm:$0xff] %vm187, %v544
  %s554 = scalar_lea.vmem [#allocation2], 24
  %v555 = vld [vmem:[%s554] sm:$0xff]
  %v556 = vld [vmem:[#allocation4] sm:$0xff]
  %v557 = vld [vmem:[%s2] sm:$0xff]
  %v558 = vld [vmem:[%s2 + $0x8] sm:$0xff]
  %v559 = vld [vmem:[%s2 + $0x10] sm:$0xff]
  %v560 = vld [vmem:[%s2 + $0x18] sm:$0xff]
  %v562 = vsel %vm187, %v556, 0
  %564 = vmatprep.subr.mxu0 0.0
  %565 = vmatpush1.msra.mxu0 %v557
  %566 = vmatprep.subr.mxu0 0.0
  %567 = vmatpush1.msra.mxu0 %v558
  %568 = vmatprep.subr.mxu0 0.0
  %569 = vmatpush1.msra.mxu0 %v559
  %570 = vmatprep.subr.mxu0 0.0
  %571 = vmatpush1.msra.mxu0 %v560
  %572 = vmatprep.subr.mxu0 0.0
  %573 = vmatpush1.msra.mxu0 0.0
  %574 = vmatprep.subr.mxu0 0.0
  %575 = vmatpush1.msra.mxu0 0.0
  %576 = vmatprep.subr.mxu0 0.0
  %577 = vmatpush1.msra.mxu0 0.0
  %578 = vmatprep.subr.mxu0 0.0
  %579 = vmatpush1.msra.mxu0 0.0
  %580 = vmatprep.subr.mxu0 0.0
  %581 = vmatpush1.msra.mxu0 0.0
  %582 = vmatprep.subr.mxu0 0.0
  %583 = vmatpush1.msra.mxu0 0.0
  %584 = vmatprep.subr.mxu0 0.0
  %585 = vmatpush1.msra.mxu0 0.0
  %586 = vmatprep.subr.mxu0 0.0
  %587 = vmatpush1.msra.mxu0 0.0
  %588 = vmatprep.subr.mxu0 0.0
  %589 = vmatpush1.msra.mxu0 0.0
  %590 = vmatprep.subr.mxu0 0.0
  %591 = vmatpush1.msra.mxu0 0.0
  %592 = vmatprep.subr.mxu0 0.0
  %593 = vmatpush1.msra.mxu0 0.0
  %594 = vmatprep.subr.mxu0 0.0
  %595 = vmatpush1.msra.mxu0 0.0
  %596 = vmatprep.subr.mxu0 0.0
  %597 = vmatpush1.msra.mxu0 0.0
  %598 = vmatprep.subr.mxu0 0.0
  %599 = vmatpush1.msra.mxu0 0.0
  %600 = vmatprep.subr.mxu0 0.0
  %601 = vmatpush1.msra.mxu0 0.0
  %602 = vmatprep.subr.mxu0 0.0
  %603 = vmatpush1.msra.mxu0 0.0
  %604 = vmatprep.subr.mxu0 0.0
  %605 = vmatpush1.msra.mxu0 0.0
  %606 = vmatprep.subr.mxu0 0.0
  %607 = vmatpush1.msra.mxu0 0.0
  %608 = vmatprep.subr.mxu0 0.0
  %609 = vmatpush1.msra.mxu0 0.0
  %610 = vmatprep.subr.mxu0 0.0
  %611 = vmatpush1.msra.mxu0 0.0
  %612 = vmatprep.subr.mxu0 0.0
  %613 = vmatpush1.msra.mxu0 0.0
  %614 = vmatprep.subr.mxu0 0.0
  %615 = vmatpush1.msra.mxu0 0.0
  %616 = vmatprep.subr.mxu0 0.0
  %617 = vmatpush1.msra.mxu0 0.0
  %618 = vmatprep.subr.mxu0 0.0
  %619 = vmatpush1.msra.mxu0 0.0
  %620 = vmatprep.subr.mxu0 0.0
  %621 = vmatpush1.msra.mxu0 0.0
  %622 = vmatprep.subr.mxu0 0.0
  %623 = vmatpush1.msra.mxu0 0.0
  %624 = vmatprep.subr.mxu0 0.0
  %625 = vmatpush1.msra.mxu0 0.0
  %626 = vmatprep.subr.mxu0 0.0
  %627 = vmatpush1.msra.mxu0 0.0
  %628 = vmatprep.mubr.f32.mxu0 0.0
  %629 = vmatmul.mubr.f32.gmra.mrb[0].mxu0 %v562
  %v630 = vpop.f32.mrb[0].mxu0
  %v631 = vadd.f32 0.0, %v630
  %v632 = vpop.f32.mrb[0].mxu0
  %633 = vdwg.mxu0
  %v634 = vadd.f32 %v555, %v631
  %v635 = vld [vmem:[#allocation5] sm:$0xff]
  %v636 = vxor.u32 %v634, 2147483648
  %v637 = vmul.f32 %v636, 1.442695
  %v638 = vpow.pop %v637
  %v639 = vadd.f32 %v638, 1.0
  %v640 = vrcp.pop %v639
  %v641 = vmul.f32 1.0, %v640
  %v642 = vtanh.pop %v634
  %644 = vrot.lane.b32.xlu0 %v635, 32
  %v645 = vpop.permute.xlu0 %644
  %v647 = vmul.f32 %v641, %v645
  %649 = vrot.lane.b32.xlu0 %v642, 64
  %v650 = vpop.permute.xlu0 %649
  %v652 = vmul.f32 %v641, %v650
  %654 = vrot.lane.b32.xlu0 %v652, 32
  %v655 = vpop.permute.xlu0 %654
  %v657 = vadd.f32 %v647, %v655
  %v658 = vtanh.pop %v657
  %660 = vrot.lane.b32.xlu0 %v658, 64
  %v661 = vpop.permute.xlu0 %660
  %v663 = vmul.f32 %v641, %v661
  %665 = vrot.lane.b32.xlu0 %v663, 32
  %v666 = vpop.permute.xlu0 %665
  %668 = vst.msk [vmem:[#allocation4] sm:$0xff] %vm187, %v666
  %670 = vrot.lane.b32.xlu0 %v657, 96
  %v671 = vpop.permute.xlu0 %670
  %673 = vst.msk [vmem:[#allocation5] sm:$0xff] %vm187, %v671
  %s674 = scalar_lea.vmem [#allocation3], 24
  %675 = vst.msk [vmem:[%s674] sm:$0xff] %vm187, %v666
  %s676 = scalar_lea.vmem [#allocation2], 32
  %v677 = vld [vmem:[%s676] sm:$0xff]
  %v678 = vld [vmem:[#allocation4] sm:$0xff]
  %v679 = vld [vmem:[%s2] sm:$0xff]
  %v680 = vld [vmem:[%s2 + $0x8] sm:$0xff]
  %v681 = vld [vmem:[%s2 + $0x10] sm:$0xff]
  %v682 = vld [vmem:[%s2 + $0x18] sm:$0xff]
  %v684 = vsel %vm187, %v678, 0
  %686 = vmatprep.subr.mxu0 0.0
  %687 = vmatpush1.msra.mxu0 %v679
  %688 = vmatprep.subr.mxu0 0.0
  %689 = vmatpush1.msra.mxu0 %v680
  %690 = vmatprep.subr.mxu0 0.0
  %691 = vmatpush1.msra.mxu0 %v681
  %692 = vmatprep.subr.mxu0 0.0
  %693 = vmatpush1.msra.mxu0 %v682
  %694 = vmatprep.subr.mxu0 0.0
  %695 = vmatpush1.msra.mxu0 0.0
  %696 = vmatprep.subr.mxu0 0.0
  %697 = vmatpush1.msra.mxu0 0.0
  %698 = vmatprep.subr.mxu0 0.0
  %699 = vmatpush1.msra.mxu0 0.0
  %700 = vmatprep.subr.mxu0 0.0
  %701 = vmatpush1.msra.mxu0 0.0
  %702 = vmatprep.subr.mxu0 0.0
  %703 = vmatpush1.msra.mxu0 0.0
  %704 = vmatprep.subr.mxu0 0.0
  %705 = vmatpush1.msra.mxu0 0.0
  %706 = vmatprep.subr.mxu0 0.0
  %707 = vmatpush1.msra.mxu0 0.0
  %708 = vmatprep.subr.mxu0 0.0
  %709 = vmatpush1.msra.mxu0 0.0
  %710 = vmatprep.subr.mxu0 0.0
  %711 = vmatpush1.msra.mxu0 0.0
  %712 = vmatprep.subr.mxu0 0.0
  %713 = vmatpush1.msra.mxu0 0.0
  %714 = vmatprep.subr.mxu0 0.0
  %715 = vmatpush1.msra.mxu0 0.0
  %716 = vmatprep.subr.mxu0 0.0
  %717 = vmatpush1.msra.mxu0 0.0
  %718 = vmatprep.subr.mxu0 0.0
  %719 = vmatpush1.msra.mxu0 0.0
  %720 = vmatprep.subr.mxu0 0.0
  %721 = vmatpush1.msra.mxu0 0.0
  %722 = vmatprep.subr.mxu0 0.0
  %723 = vmatpush1.msra.mxu0 0.0
  %724 = vmatprep.subr.mxu0 0.0
  %725 = vmatpush1.msra.mxu0 0.0
  %726 = vmatprep.subr.mxu0 0.0
  %727 = vmatpush1.msra.mxu0 0.0
  %728 = vmatprep.subr.mxu0 0.0
  %729 = vmatpush1.msra.mxu0 0.0
  %730 = vmatprep.subr.mxu0 0.0
  %731 = vmatpush1.msra.mxu0 0.0
  %732 = vmatprep.subr.mxu0 0.0
  %733 = vmatpush1.msra.mxu0 0.0
  %734 = vmatprep.subr.mxu0 0.0
  %735 = vmatpush1.msra.mxu0 0.0
  %736 = vmatprep.subr.mxu0 0.0
  %737 = vmatpush1.msra.mxu0 0.0
  %738 = vmatprep.subr.mxu0 0.0
  %739 = vmatpush1.msra.mxu0 0.0
  %740 = vmatprep.subr.mxu0 0.0
  %741 = vmatpush1.msra.mxu0 0.0
  %742 = vmatprep.subr.mxu0 0.0
  %743 = vmatpush1.msra.mxu0 0.0
  %744 = vmatprep.subr.mxu0 0.0
  %745 = vmatpush1.msra.mxu0 0.0
  %746 = vmatprep.subr.mxu0 0.0
  %747 = vmatpush1.msra.mxu0 0.0
  %748 = vmatprep.subr.mxu0 0.0
  %749 = vmatpush1.msra.mxu0 0.0
  %750 = vmatprep.mubr.f32.mxu0 0.0
  %751 = vmatmul.mubr.f32.gmra.mrb[0].mxu0 %v684
  %v752 = vpop.f32.mrb[0].mxu0
  %v753 = vadd.f32 0.0, %v752
  %v754 = vpop.f32.mrb[0].mxu0
  %755 = vdwg.mxu0
  %v756 = vadd.f32 %v677, %v753
  %v757 = vld [vmem:[#allocation5] sm:$0xff]
  %v758 = vxor.u32 %v756, 2147483648
  %v759 = vmul.f32 %v758, 1.442695
  %v760 = vpow.pop %v759
  %v761 = vadd.f32 %v760, 1.0
  %v762 = vrcp.pop %v761
  %v763 = vmul.f32 1.0, %v762
  %v764 = vtanh.pop %v756
  %766 = vrot.lane.b32.xlu0 %v757, 32
  %v767 = vpop.permute.xlu0 %766
  %v769 = vmul.f32 %v763, %v767
  %771 = vrot.lane.b32.xlu0 %v764, 64
  %v772 = vpop.permute.xlu0 %771
  %v774 = vmul.f32 %v763, %v772
  %776 = vrot.lane.b32.xlu0 %v774, 32
  %v777 = vpop.permute.xlu0 %776
  %v779 = vadd.f32 %v769, %v777
  %v780 = vtanh.pop %v779
  %782 = vrot.lane.b32.xlu0 %v780, 64
  %v783 = vpop.permute.xlu0 %782
  %v785 = vmul.f32 %v763, %v783
  %787 = vrot.lane.b32.xlu0 %v785, 32
  %v788 = vpop.permute.xlu0 %787
  %790 = vst.msk [vmem:[#allocation4] sm:$0xff] %vm187, %v788
  %792 = vrot.lane.b32.xlu0 %v779, 96
  %v793 = vpop.permute.xlu0 %792
  %795 = vst.msk [vmem:[#allocation5] sm:$0xff] %vm187, %v793
  %s796 = scalar_lea.vmem [#allocation3], 32
  %797 = vst.msk [vmem:[%s796] sm:$0xff] %vm187, %v788
  %s798 = scalar_lea.vmem [#allocation2], 40
  %v799 = vld [vmem:[%s798] sm:$0xff]
  %v800 = vld [vmem:[#allocation4] sm:$0xff]
  %v801 = vld [vmem:[%s2] sm:$0xff]
  %v802 = vld [vmem:[%s2 + $0x8] sm:$0xff]
  %v803 = vld [vmem:[%s2 + $0x10] sm:$0xff]
  %v804 = vld [vmem:[%s2 + $0x18] sm:$0xff]
  %v806 = vsel %vm187, %v800, 0
  %808 = vmatprep.subr.mxu0 0.0
  %809 = vmatpush1.msra.mxu0 %v801
  %810 = vmatprep.subr.mxu0 0.0
  %811 = vmatpush1.msra.mxu0 %v802
  %812 = vmatprep.subr.mxu0 0.0
  %813 = vmatpush1.msra.mxu0 %v803
  %814 = vmatprep.subr.mxu0 0.0
  %815 = vmatpush1.msra.mxu0 %v804
  %816 = vmatprep.subr.mxu0 0.0
  %817 = vmatpush1.msra.mxu0 0.0
  %818 = vmatprep.subr.mxu0 0.0
  %819 = vmatpush1.msra.mxu0 0.0
  %820 = vmatprep.subr.mxu0 0.0
  %821 = vmatpush1.msra.mxu0 0.0
  %822 = vmatprep.subr.mxu0 0.0
  %823 = vmatpush1.msra.mxu0 0.0
  %824 = vmatprep.subr.mxu0 0.0
  %825 = vmatpush1.msra.mxu0 0.0
  %826 = vmatprep.subr.mxu0 0.0
  %827 = vmatpush1.msra.mxu0 0.0
  %828 = vmatprep.subr.mxu0 0.0
  %829 = vmatpush1.msra.mxu0 0.0
  %830 = vmatprep.subr.mxu0 0.0
  %831 = vmatpush1.msra.mxu0 0.0
  %832 = vmatprep.subr.mxu0 0.0
  %833 = vmatpush1.msra.mxu0 0.0
  %834 = vmatprep.subr.mxu0 0.0
  %835 = vmatpush1.msra.mxu0 0.0
  %836 = vmatprep.subr.mxu0 0.0
  %837 = vmatpush1.msra.mxu0 0.0
  %838 = vmatprep.subr.mxu0 0.0
  %839 = vmatpush1.msra.mxu0 0.0
  %840 = vmatprep.subr.mxu0 0.0
  %841 = vmatpush1.msra.mxu0 0.0
  %842 = vmatprep.subr.mxu0 0.0
  %843 = vmatpush1.msra.mxu0 0.0
  %844 = vmatprep.subr.mxu0 0.0
  %845 = vmatpush1.msra.mxu0 0.0
  %846 = vmatprep.subr.mxu0 0.0
  %847 = vmatpush1.msra.mxu0 0.0
  %848 = vmatprep.subr.mxu0 0.0
  %849 = vmatpush1.msra.mxu0 0.0
  %850 = vmatprep.subr.mxu0 0.0
  %851 = vmatpush1.msra.mxu0 0.0
  %852 = vmatprep.subr.mxu0 0.0
  %853 = vmatpush1.msra.mxu0 0.0
  %854 = vmatprep.subr.mxu0 0.0
  %855 = vmatpush1.msra.mxu0 0.0
  %856 = vmatprep.subr.mxu0 0.0
  %857 = vmatpush1.msra.mxu0 0.0
  %858 = vmatprep.subr.mxu0 0.0
  %859 = vmatpush1.msra.mxu0 0.0
  %860 = vmatprep.subr.mxu0 0.0
  %861 = vmatpush1.msra.mxu0 0.0
  %862 = vmatprep.subr.mxu0 0.0
  %863 = vmatpush1.msra.mxu0 0.0
  %864 = vmatprep.subr.mxu0 0.0
  %865 = vmatpush1.msra.mxu0 0.0
  %866 = vmatprep.subr.mxu0 0.0
  %867 = vmatpush1.msra.mxu0 0.0
  %868 = vmatprep.subr.mxu0 0.0
  %869 = vmatpush1.msra.mxu0 0.0
  %870 = vmatprep.subr.mxu0 0.0
  %871 = vmatpush1.msra.mxu0 0.0
  %872 = vmatprep.mubr.f32.mxu0 0.0
  %873 = vmatmul.mubr.f32.gmra.mrb[0].mxu0 %v806
  %v874 = vpop.f32.mrb[0].mxu0
  %v875 = vadd.f32 0.0, %v874
  %v876 = vpop.f32.mrb[0].mxu0
  %877 = vdwg.mxu0
  %v878 = vadd.f32 %v799, %v875
  %v879 = vld [vmem:[#allocation5] sm:$0xff]
  %v880 = vxor.u32 %v878, 2147483648
  %v881 = vmul.f32 %v880, 1.442695
  %v882 = vpow.pop %v881
  %v883 = vadd.f32 %v882, 1.0
  %v884 = vrcp.pop %v883
  %v885 = vmul.f32 1.0, %v884
  %v886 = vtanh.pop %v878
  %888 = vrot.lane.b32.xlu0 %v879, 32
  %v889 = vpop.permute.xlu0 %888
  %v891 = vmul.f32 %v885, %v889
  %893 = vrot.lane.b32.xlu0 %v886, 64
  %v894 = vpop.permute.xlu0 %893
  %v896 = vmul.f32 %v885, %v894
  %898 = vrot.lane.b32.xlu0 %v896, 32
  %v899 = vpop.permute.xlu0 %898
  %v901 = vadd.f32 %v891, %v899
  %v902 = vtanh.pop %v901
  %904 = vrot.lane.b32.xlu0 %v902, 64
  %v905 = vpop.permute.xlu0 %904
  %v907 = vmul.f32 %v885, %v905
  %909 = vrot.lane.b32.xlu0 %v907, 32
  %v910 = vpop.permute.xlu0 %909
  %912 = vst.msk [vmem:[#allocation4] sm:$0xff] %vm187, %v910
  %914 = vrot.lane.b32.xlu0 %v901, 96
  %v915 = vpop.permute.xlu0 %914
  %917 = vst.msk [vmem:[#allocation5] sm:$0xff] %vm187, %v915
  %s918 = scalar_lea.vmem [#allocation3], 40
  %919 = vst.msk [vmem:[%s918] sm:$0xff] %vm187, %v910
  %s920 = scalar_lea.vmem [#allocation2], 48
  %v921 = vld [vmem:[%s920] sm:$0xff]
  %v922 = vld [vmem:[#allocation4] sm:$0xff]
  %v923 = vld [vmem:[%s2] sm:$0xff]
  %v924 = vld [vmem:[%s2 + $0x8] sm:$0xff]
  %v925 = vld [vmem:[%s2 + $0x10] sm:$0xff]
  %v926 = vld [vmem:[%s2 + $0x18] sm:$0xff]
  %v928 = vsel %vm187, %v922, 0
  %930 = vmatprep.subr.mxu0 0.0
  %931 = vmatpush1.msra.mxu0 %v923
  %932 = vmatprep.subr.mxu0 0.0
  %933 = vmatpush1.msra.mxu0 %v924
  %934 = vmatprep.subr.mxu0 0.0
  %935 = vmatpush1.msra.mxu0 %v925
  %936 = vmatprep.subr.mxu0 0.0
  %937 = vmatpush1.msra.mxu0 %v926
  %938 = vmatprep.subr.mxu0 0.0
  %939 = vmatpush1.msra.mxu0 0.0
  %940 = vmatprep.subr.mxu0 0.0
  %941 = vmatpush1.msra.mxu0 0.0
  %942 = vmatprep.subr.mxu0 0.0
  %943 = vmatpush1.msra.mxu0 0.0
  %944 = vmatprep.subr.mxu0 0.0
  %945 = vmatpush1.msra.mxu0 0.0
  %946 = vmatprep.subr.mxu0 0.0
  %947 = vmatpush1.msra.mxu0 0.0
  %948 = vmatprep.subr.mxu0 0.0
  %949 = vmatpush1.msra.mxu0 0.0
  %950 = vmatprep.subr.mxu0 0.0
  %951 = vmatpush1.msra.mxu0 0.0
  %952 = vmatprep.subr.mxu0 0.0
  %953 = vmatpush1.msra.mxu0 0.0
  %954 = vmatprep.subr.mxu0 0.0
  %955 = vmatpush1.msra.mxu0 0.0
  %956 = vmatprep.subr.mxu0 0.0
  %957 = vmatpush1.msra.mxu0 0.0
  %958 = vmatprep.subr.mxu0 0.0
  %959 = vmatpush1.msra.mxu0 0.0
  %960 = vmatprep.subr.mxu0 0.0
  %961 = vmatpush1.msra.mxu0 0.0
  %962 = vmatprep.subr.mxu0 0.0
  %963 = vmatpush1.msra.mxu0 0.0
  %964 = vmatprep.subr.mxu0 0.0
  %965 = vmatpush1.msra.mxu0 0.0
  %966 = vmatprep.subr.mxu0 0.0
  %967 = vmatpush1.msra.mxu0 0.0
  %968 = vmatprep.subr.mxu0 0.0
  %969 = vmatpush1.msra.mxu0 0.0
  %970 = vmatprep.subr.mxu0 0.0
  %971 = vmatpush1.msra.mxu0 0.0
  %972 = vmatprep.subr.mxu0 0.0
  %973 = vmatpush1.msra.mxu0 0.0
  %974 = vmatprep.subr.mxu0 0.0
  %975 = vmatpush1.msra.mxu0 0.0
  %976 = vmatprep.subr.mxu0 0.0
  %977 = vmatpush1.msra.mxu0 0.0
  %978 = vmatprep.subr.mxu0 0.0
  %979 = vmatpush1.msra.mxu0 0.0
  %980 = vmatprep.subr.mxu0 0.0
  %981 = vmatpush1.msra.mxu0 0.0
  %982 = vmatprep.subr.mxu0 0.0
  %983 = vmatpush1.msra.mxu0 0.0
  %984 = vmatprep.subr.mxu0 0.0
  %985 = vmatpush1.msra.mxu0 0.0
  %986 = vmatprep.subr.mxu0 0.0
  %987 = vmatpush1.msra.mxu0 0.0
  %988 = vmatprep.subr.mxu0 0.0
  %989 = vmatpush1.msra.mxu0 0.0
  %990 = vmatprep.subr.mxu0 0.0
  %991 = vmatpush1.msra.mxu0 0.0
  %992 = vmatprep.subr.mxu0 0.0
  %993 = vmatpush1.msra.mxu0 0.0
  %994 = vmatprep.mubr.f32.mxu0 0.0
  %995 = vmatmul.mubr.f32.gmra.mrb[0].mxu0 %v928
  %v996 = vpop.f32.mrb[0].mxu0
  %v997 = vadd.f32 0.0, %v996
  %v998 = vpop.f32.mrb[0].mxu0
  %999 = vdwg.mxu0
  %v1000 = vadd.f32 %v921, %v997
  %v1001 = vld [vmem:[#allocation5] sm:$0xff]
  %v1002 = vxor.u32 %v1000, 2147483648
  %v1003 = vmul.f32 %v1002, 1.442695
  %v1004 = vpow.pop %v1003
  %v1005 = vadd.f32 %v1004, 1.0
  %v1006 = vrcp.pop %v1005
  %v1007 = vmul.f32 1.0, %v1006
  %v1008 = vtanh.pop %v1000
  %1010 = vrot.lane.b32.xlu0 %v1001, 32
  %v1011 = vpop.permute.xlu0 %1010
  %v1013 = vmul.f32 %v1007, %v1011
  %1015 = vrot.lane.b32.xlu0 %v1008, 64
  %v1016 = vpop.permute.xlu0 %1015
  %v1018 = vmul.f32 %v1007, %v1016
  %1020 = vrot.lane.b32.xlu0 %v1018, 32
  %v1021 = vpop.permute.xlu0 %1020
  %v1023 = vadd.f32 %v1013, %v1021
  %v1024 = vtanh.pop %v1023
  %1026 = vrot.lane.b32.xlu0 %v1024, 64
  %v1027 = vpop.permute.xlu0 %1026
  %v1029 = vmul.f32 %v1007, %v1027
  %1031 = vrot.lane.b32.xlu0 %v1029, 32
  %v1032 = vpop.permute.xlu0 %1031
  %1034 = vst.msk [vmem:[#allocation4] sm:$0xff] %vm187, %v1032
  %1036 = vrot.lane.b32.xlu0 %v1023, 96
  %v1037 = vpop.permute.xlu0 %1036
  %1039 = vst.msk [vmem:[#allocation5] sm:$0xff] %vm187, %v1037
  %s1040 = scalar_lea.vmem [#allocation3], 48
  %1041 = vst.msk [vmem:[%s1040] sm:$0xff] %vm187, %v1032
  %s1042 = scalar_lea.vmem [#allocation2], 56
  %v1043 = vld [vmem:[%s1042] sm:$0xff]
  %v1044 = vld [vmem:[#allocation4] sm:$0xff]
  %v1045 = vld [vmem:[%s2] sm:$0xff]
  %v1046 = vld [vmem:[%s2 + $0x8] sm:$0xff]
  %v1047 = vld [vmem:[%s2 + $0x10] sm:$0xff]
  %v1048 = vld [vmem:[%s2 + $0x18] sm:$0xff]
  %v1050 = vsel %vm187, %v1044, 0
  %1052 = vmatprep.subr.mxu0 0.0
  %1053 = vmatpush1.msra.mxu0 %v1045
  %1054 = vmatprep.subr.mxu0 0.0
  %1055 = vmatpush1.msra.mxu0 %v1046
  %1056 = vmatprep.subr.mxu0 0.0
  %1057 = vmatpush1.msra.mxu0 %v1047
  %1058 = vmatprep.subr.mxu0 0.0
  %1059 = vmatpush1.msra.mxu0 %v1048
  %1060 = vmatprep.subr.mxu0 0.0
  %1061 = vmatpush1.msra.mxu0 0.0
  %1062 = vmatprep.subr.mxu0 0.0
  %1063 = vmatpush1.msra.mxu0 0.0
  %1064 = vmatprep.subr.mxu0 0.0
  %1065 = vmatpush1.msra.mxu0 0.0
  %1066 = vmatprep.subr.mxu0 0.0
  %1067 = vmatpush1.msra.mxu0 0.0
  %1068 = vmatprep.subr.mxu0 0.0
  %1069 = vmatpush1.msra.mxu0 0.0
  %1070 = vmatprep.subr.mxu0 0.0
  %1071 = vmatpush1.msra.mxu0 0.0
  %1072 = vmatprep.subr.mxu0 0.0
  %1073 = vmatpush1.msra.mxu0 0.0
  %1074 = vmatprep.subr.mxu0 0.0
  %1075 = vmatpush1.msra.mxu0 0.0
  %1076 = vmatprep.subr.mxu0 0.0
  %1077 = vmatpush1.msra.mxu0 0.0
  %1078 = vmatprep.subr.mxu0 0.0
  %1079 = vmatpush1.msra.mxu0 0.0
  %1080 = vmatprep.subr.mxu0 0.0
  %1081 = vmatpush1.msra.mxu0 0.0
  %1082 = vmatprep.subr.mxu0 0.0
  %1083 = vmatpush1.msra.mxu0 0.0
  %1084 = vmatprep.subr.mxu0 0.0
  %1085 = vmatpush1.msra.mxu0 0.0
  %1086 = vmatprep.subr.mxu0 0.0
  %1087 = vmatpush1.msra.mxu0 0.0
  %1088 = vmatprep.subr.mxu0 0.0
  %1089 = vmatpush1.msra.mxu0 0.0
  %1090 = vmatprep.subr.mxu0 0.0
  %1091 = vmatpush1.msra.mxu0 0.0
  %1092 = vmatprep.subr.mxu0 0.0
  %1093 = vmatpush1.msra.mxu0 0.0
  %1094 = vmatprep.subr.mxu0 0.0
  %1095 = vmatpush1.msra.mxu0 0.0
  %1096 = vmatprep.subr.mxu0 0.0
  %1097 = vmatpush1.msra.mxu0 0.0
  %1098 = vmatprep.subr.mxu0 0.0
  %1099 = vmatpush1.msra.mxu0 0.0
  %1100 = vmatprep.subr.mxu0 0.0
  %1101 = vmatpush1.msra.mxu0 0.0
  %1102 = vmatprep.subr.mxu0 0.0
  %1103 = vmatpush1.msra.mxu0 0.0
  %1104 = vmatprep.subr.mxu0 0.0
  %1105 = vmatpush1.msra.mxu0 0.0
  %1106 = vmatprep.subr.mxu0 0.0
  %1107 = vmatpush1.msra.mxu0 0.0
  %1108 = vmatprep.subr.mxu0 0.0
  %1109 = vmatpush1.msra.mxu0 0.0
  %1110 = vmatprep.subr.mxu0 0.0
  %1111 = vmatpush1.msra.mxu0 0.0
  %1112 = vmatprep.subr.mxu0 0.0
  %1113 = vmatpush1.msra.mxu0 0.0
  %1114 = vmatprep.subr.mxu0 0.0
  %1115 = vmatpush1.msra.mxu0 0.0
  %1116 = vmatprep.mubr.f32.mxu0 0.0
  %1117 = vmatmul.mubr.f32.gmra.mrb[0].mxu0 %v1050
  %v1118 = vpop.f32.mrb[0].mxu0
  %v1119 = vadd.f32 0.0, %v1118
  %v1120 = vpop.f32.mrb[0].mxu0
  %1121 = vdwg.mxu0
  %v1122 = vadd.f32 %v1043, %v1119
  %v1123 = vld [vmem:[#allocation5] sm:$0xff]
  %v1124 = vxor.u32 %v1122, 2147483648
  %v1125 = vmul.f32 %v1124, 1.442695
  %v1126 = vpow.pop %v1125
  %v1127 = vadd.f32 %v1126, 1.0
  %v1128 = vrcp.pop %v1127
  %v1129 = vmul.f32 1.0, %v1128
  %v1130 = vtanh.pop %v1122
  %1132 = vrot.lane.b32.xlu0 %v1123, 32
  %v1133 = vpop.permute.xlu0 %1132
  %v1135 = vmul.f32 %v1129, %v1133
  %1137 = vrot.lane.b32.xlu0 %v1130, 64
  %v1138 = vpop.permute.xlu0 %1137
  %v1140 = vmul.f32 %v1129, %v1138
  %1142 = vrot.lane.b32.xlu0 %v1140, 32
  %v1143 = vpop.permute.xlu0 %1142
  %v1145 = vadd.f32 %v1135, %v1143
  %v1146 = vtanh.pop %v1145
  %1148 = vrot.lane.b32.xlu0 %v1146, 64
  %v1149 = vpop.permute.xlu0 %1148
  %v1151 = vmul.f32 %v1129, %v1149
  %1153 = vrot.lane.b32.xlu0 %v1151, 32
  %v1154 = vpop.permute.xlu0 %1153
  %1156 = vst.msk [vmem:[#allocation4] sm:$0xff] %vm187, %v1154
  %1158 = vrot.lane.b32.xlu0 %v1145, 96
  %v1159 = vpop.permute.xlu0 %1158
  %1161 = vst.msk [vmem:[#allocation5] sm:$0xff] %vm187, %v1159
  %s1162 = scalar_lea.vmem [#allocation3], 56
  %1163 = vst.msk [vmem:[%s1162] sm:$0xff] %vm187, %v1154
  %v1164 = vld [vmem:[#allocation3] sm:$0xff]
  %v1165 = vld [vmem:[#allocation3 + $0x8] sm:$0xff]
  %v1166 = vld [vmem:[#allocation3 + $0x10] sm:$0xff]
  %v1167 = vld [vmem:[#allocation3 + $0x18] sm:$0xff]
  %v1168 = vld [vmem:[#allocation3 + $0x20] sm:$0xff]
  %v1169 = vld [vmem:[#allocation3 + $0x28] sm:$0xff]
  %v1170 = vld [vmem:[#allocation3 + $0x30] sm:$0xff]
  %v1171 = vld [vmem:[#allocation3 + $0x38] sm:$0xff]
  %v1172 = vld [vmem:[%s4] sm:$0xff]
  %v1173 = vld [vmem:[%s4 + $0x8] sm:$0xff]
  %v1174 = vld [vmem:[%s4 + $0x10] sm:$0xff]
  %v1175 = vld [vmem:[%s4 + $0x18] sm:$0xff]
  %v1176 = vld [vmem:[%s6] sm:$0x1]
  %v1178 = vlaneseq
  %v1179 = vshrl.u32 %v1178, 7
  %v1180 = vsub.s32 0, %v1179
  %v1181 = vrot.slane %v1176, %v1180
  %v1184 = vsel %vm187, %v1164, 0
  %v1187 = vsel %vm187, %v1165, 0
  %v1190 = vsel %vm187, %v1166, 0
  %v1193 = vsel %vm187, %v1167, 0
  %v1196 = vsel %vm187, %v1168, 0
  %v1199 = vsel %vm187, %v1169, 0
  %v1202 = vsel %vm187, %v1170, 0
  %v1205 = vsel %vm187, %v1171, 0
  %1207 = vmatprep.subr.mxu0 0.0
  %1208 = vmatpush1.msra.mxu0 %v1172
  %1209 = vmatprep.subr.mxu0 0.0
  %1210 = vmatpush1.msra.mxu0 %v1173
  %1211 = vmatprep.subr.mxu0 0.0
  %1212 = vmatpush1.msra.mxu0 %v1174
  %1213 = vmatprep.subr.mxu0 0.0
  %1214 = vmatpush1.msra.mxu0 %v1175
  %1215 = vmatprep.subr.mxu0 0.0
  %1216 = vmatpush1.msra.mxu0 0.0
  %1217 = vmatprep.subr.mxu0 0.0
  %1218 = vmatpush1.msra.mxu0 0.0
  %1219 = vmatprep.subr.mxu0 0.0
  %1220 = vmatpush1.msra.mxu0 0.0
  %1221 = vmatprep.subr.mxu0 0.0
  %1222 = vmatpush1.msra.mxu0 0.0
  %1223 = vmatprep.subr.mxu0 0.0
  %1224 = vmatpush1.msra.mxu0 0.0
  %1225 = vmatprep.subr.mxu0 0.0
  %1226 = vmatpush1.msra.mxu0 0.0
  %1227 = vmatprep.subr.mxu0 0.0
  %1228 = vmatpush1.msra.mxu0 0.0
  %1229 = vmatprep.subr.mxu0 0.0
  %1230 = vmatpush1.msra.mxu0 0.0
  %1231 = vmatprep.subr.mxu0 0.0
  %1232 = vmatpush1.msra.mxu0 0.0
  %1233 = vmatprep.subr.mxu0 0.0
  %1234 = vmatpush1.msra.mxu0 0.0
  %1235 = vmatprep.subr.mxu0 0.0
  %1236 = vmatpush1.msra.mxu0 0.0
  %1237 = vmatprep.subr.mxu0 0.0
  %1238 = vmatpush1.msra.mxu0 0.0
  %1239 = vmatprep.subr.mxu0 0.0
  %1240 = vmatpush1.msra.mxu0 0.0
  %1241 = vmatprep.subr.mxu0 0.0
  %1242 = vmatpush1.msra.mxu0 0.0
  %1243 = vmatprep.subr.mxu0 0.0
  %1244 = vmatpush1.msra.mxu0 0.0
  %1245 = vmatprep.subr.mxu0 0.0
  %1246 = vmatpush1.msra.mxu0 0.0
  %1247 = vmatprep.subr.mxu0 0.0
  %1248 = vmatpush1.msra.mxu0 0.0
  %1249 = vmatprep.subr.mxu0 0.0
  %1250 = vmatpush1.msra.mxu0 0.0
  %1251 = vmatprep.subr.mxu0 0.0
  %1252 = vmatpush1.msra.mxu0 0.0
  %1253 = vmatprep.subr.mxu0 0.0
  %1254 = vmatpush1.msra.mxu0 0.0
  %1255 = vmatprep.subr.mxu0 0.0
  %1256 = vmatpush1.msra.mxu0 0.0
  %1257 = vmatprep.subr.mxu0 0.0
  %1258 = vmatpush1.msra.mxu0 0.0
  %1259 = vmatprep.subr.mxu0 0.0
  %1260 = vmatpush1.msra.mxu0 0.0
  %1261 = vmatprep.subr.mxu0 0.0
  %1262 = vmatpush1.msra.mxu0 0.0
  %1263 = vmatprep.subr.mxu0 0.0
  %1264 = vmatpush1.msra.mxu0 0.0
  %1265 = vmatprep.subr.mxu0 0.0
  %1266 = vmatpush1.msra.mxu0 0.0
  %1267 = vmatprep.subr.mxu0 0.0
  %1268 = vmatpush1.msra.mxu0 0.0
  %1269 = vmatprep.subr.mxu0 0.0
  %1270 = vmatpush1.msra.mxu0 0.0
  %1271 = vmatprep.mubr.f32.mxu0 0.0
  %1272 = vmatmul.mubr.f32.gmra.mrb[0].mxu0 %v1184
  %v1273 = vpop.f32.mrb[0].mxu0
  %v1274 = vadd.f32 %v1181, %v1273
  %v1275 = vpop.f32.mrb[0].mxu0
  %1276 = vmatprep.mubr.f32.mxu0 0.0
  %1277 = vmatmul.mubr.f32.gmra.mrb[0].mxu0 %v1187
  %v1278 = vpop.f32.mrb[0].mxu0
  %v1279 = vadd.f32 %v1181, %v1278
  %v1280 = vpop.f32.mrb[0].mxu0
  %1281 = vmatprep.mubr.f32.mxu0 0.0
  %1282 = vmatmul.mubr.f32.gmra.mrb[0].mxu0 %v1190
  %v1283 = vpop.f32.mrb[0].mxu0
  %v1284 = vadd.f32 %v1181, %v1283
  %v1285 = vpop.f32.mrb[0].mxu0
  %1286 = vmatprep.mubr.f32.mxu0 0.0
  %1287 = vmatmul.mubr.f32.gmra.mrb[0].mxu0 %v1193
  %v1288 = vpop.f32.mrb[0].mxu0
  %v1289 = vadd.f32 %v1181, %v1288
  %v1290 = vpop.f32.mrb[0].mxu0
  %1291 = vmatprep.mubr.f32.mxu0 0.0
  %1292 = vmatmul.mubr.f32.gmra.mrb[0].mxu0 %v1196
  %v1293 = vpop.f32.mrb[0].mxu0
  %v1294 = vadd.f32 %v1181, %v1293
  %v1295 = vpop.f32.mrb[0].mxu0
  %1296 = vmatprep.mubr.f32.mxu0 0.0
  %1297 = vmatmul.mubr.f32.gmra.mrb[0].mxu0 %v1199
  %v1298 = vpop.f32.mrb[0].mxu0
  %v1299 = vadd.f32 %v1181, %v1298
  %v1300 = vpop.f32.mrb[0].mxu0
  %1301 = vmatprep.mubr.f32.mxu0 0.0
  %1302 = vmatmul.mubr.f32.gmra.mrb[0].mxu0 %v1202
  %v1303 = vpop.f32.mrb[0].mxu0
  %v1304 = vadd.f32 %v1181, %v1303
  %v1305 = vpop.f32.mrb[0].mxu0
  %1306 = vmatprep.mubr.f32.mxu0 0.0
  %1307 = vmatmul.mubr.f32.gmra.mrb[0].mxu0 %v1205
  %v1308 = vpop.f32.mrb[0].mxu0
  %v1309 = vadd.f32 %v1181, %v1308
  %v1310 = vpop.f32.mrb[0].mxu0
  %1311 = vdwg.mxu0
  %1312 = vst [vmem:[#allocation2] sm:$0xff] %v1274
  %1313 = vst [vmem:[#allocation2 + $0x8] sm:$0xff] %v1279
  %1314 = vst [vmem:[#allocation2 + $0x10] sm:$0xff] %v1284
  %1315 = vst [vmem:[#allocation2 + $0x18] sm:$0xff] %v1289
  %1316 = vst [vmem:[#allocation2 + $0x20] sm:$0xff] %v1294
  %1317 = vst [vmem:[#allocation2 + $0x28] sm:$0xff] %v1299
  %1318 = vst [vmem:[#allocation2 + $0x30] sm:$0xff] %v1304
  %1319 = vst [vmem:[#allocation2 + $0x38] sm:$0xff] %v1309
  %1320 = vst.msk [vmem:[#allocation4] sm:$0xff] %vm187, 0.0
  %1321 = vst.msk [vmem:[#allocation5] sm:$0xff] %vm187, 0.0
  %vm1322 = vcmask 80896
  %1323 = vst.msk [vmem:[#allocation6] sm:$0xff] %vm1322, 0.0
  %v1324 = vld [vmem:[#allocation2] sm:$0xff]
  %v1325 = vld [vmem:[#allocation4] sm:$0xff]
  %v1326 = vld [vmem:[%s5] sm:$0xff]
  %v1327 = vld [vmem:[%s5 + $0x8] sm:$0xff]
  %v1328 = vld [vmem:[%s5 + $0x10] sm:$0xff]
  %v1329 = vld [vmem:[%s5 + $0x18] sm:$0xff]
  %v1331 = vsel %vm187, %v1325, 0
  %1333 = vmatprep.subr.mxu0 0.0
  %1334 = vmatpush1.msra.mxu0 %v1326
  %1335 = vmatprep.subr.mxu0 0.0
  %1336 = vmatpush1.msra.mxu0 %v1327
  %1337 = vmatprep.subr.mxu0 0.0
  %1338 = vmatpush1.msra.mxu0 %v1328
  %1339 = vmatprep.subr.mxu0 0.0
  %1340 = vmatpush1.msra.mxu0 %v1329
  %1341 = vmatprep.subr.mxu0 0.0
  %1342 = vmatpush1.msra.mxu0 0.0
  %1343 = vmatprep.subr.mxu0 0.0
  %1344 = vmatpush1.msra.mxu0 0.0
  %1345 = vmatprep.subr.mxu0 0.0
  %1346 = vmatpush1.msra.mxu0 0.0
  %1347 = vmatprep.subr.mxu0 0.0
  %1348 = vmatpush1.msra.mxu0 0.0
  %1349 = vmatprep.subr.mxu0 0.0
  %1350 = vmatpush1.msra.mxu0 0.0
  %1351 = vmatprep.subr.mxu0 0.0
  %1352 = vmatpush1.msra.mxu0 0.0
  %1353 = vmatprep.subr.mxu0 0.0
  %1354 = vmatpush1.msra.mxu0 0.0
  %1355 = vmatprep.subr.mxu0 0.0
  %1356 = vmatpush1.msra.mxu0 0.0
  %1357 = vmatprep.subr.mxu0 0.0
  %1358 = vmatpush1.msra.mxu0 0.0
  %1359 = vmatprep.subr.mxu0 0.0
  %1360 = vmatpush1.msra.mxu0 0.0
  %1361 = vmatprep.subr.mxu0 0.0
  %1362 = vmatpush1.msra.mxu0 0.0
  %1363 = vmatprep.subr.mxu0 0.0
  %1364 = vmatpush1.msra.mxu0 0.0
  %1365 = vmatprep.subr.mxu0 0.0
  %1366 = vmatpush1.msra.mxu0 0.0
  %1367 = vmatprep.subr.mxu0 0.0
  %1368 = vmatpush1.msra.mxu0 0.0
  %1369 = vmatprep.subr.mxu0 0.0
  %1370 = vmatpush1.msra.mxu0 0.0
  %1371 = vmatprep.subr.mxu0 0.0
  %1372 = vmatpush1.msra.mxu0 0.0
  %1373 = vmatprep.subr.mxu0 0.0
  %1374 = vmatpush1.msra.mxu0 0.0
  %1375 = vmatprep.subr.mxu0 0.0
  %1376 = vmatpush1.msra.mxu0 0.0
  %1377 = vmatprep.subr.mxu0 0.0
  %1378 = vmatpush1.msra.mxu0 0.0
  %1379 = vmatprep.subr.mxu0 0.0
  %1380 = vmatpush1.msra.mxu0 0.0
  %1381 = vmatprep.subr.mxu0 0.0
  %1382 = vmatpush1.msra.mxu0 0.0
  %1383 = vmatprep.subr.mxu0 0.0
  %1384 = vmatpush1.msra.mxu0 0.0
  %1385 = vmatprep.subr.mxu0 0.0
  %1386 = vmatpush1.msra.mxu0 0.0
  %1387 = vmatprep.subr.mxu0 0.0
  %1388 = vmatpush1.msra.mxu0 0.0
  %1389 = vmatprep.subr.mxu0 0.0
  %1390 = vmatpush1.msra.mxu0 0.0
  %1391 = vmatprep.subr.mxu0 0.0
  %1392 = vmatpush1.msra.mxu0 0.0
  %1393 = vmatprep.subr.mxu0 0.0
  %1394 = vmatpush1.msra.mxu0 0.0
  %1395 = vmatprep.subr.mxu0 0.0
  %1396 = vmatpush1.msra.mxu0 0.0
  %1397 = vmatprep.mubr.f32.mxu0 0.0
  %1398 = vmatmul.mubr.f32.gmra.mrb[0].mxu0 %v1331
  %v1399 = vpop.f32.mrb[0].mxu0
  %v1400 = vadd.f32 0.0, %v1399
  %v1401 = vpop.f32.mrb[0].mxu0
  %1402 = vdwg.mxu0
  %v1403 = vadd.f32 %v1324, %v1400
  %v1404 = vld [vmem:[#allocation5] sm:$0xff]
  %v1405 = vxor.u32 %v1403, 2147483648
  %v1406 = vmul.f32 %v1405, 1.442695
  %v1407 = vpow.pop %v1406
  %v1408 = vadd.f32 %v1407, 1.0
  %v1409 = vrcp.pop %v1408
  %v1410 = vmul.f32 1.0, %v1409
  %v1411 = vtanh.pop %v1403
  %1413 = vrot.lane.b32.xlu0 %v1404, 32
  %v1414 = vpop.permute.xlu0 %1413
  %v1416 = vmul.f32 %v1410, %v1414
  %1418 = vrot.lane.b32.xlu0 %v1411, 64
  %v1419 = vpop.permute.xlu0 %1418
  %v1421 = vmul.f32 %v1410, %v1419
  %1423 = vrot.lane.b32.xlu0 %v1421, 32
  %v1424 = vpop.permute.xlu0 %1423
  %v1426 = vadd.f32 %v1416, %v1424
  %v1427 = vtanh.pop %v1426
  %1429 = vrot.lane.b32.xlu0 %v1427, 64
  %v1430 = vpop.permute.xlu0 %1429
  %v1432 = vmul.f32 %v1410, %v1430
  %1434 = vrot.lane.b32.xlu0 %v1432, 32
  %v1435 = vpop.permute.xlu0 %1434
  %1437 = vst.msk [vmem:[#allocation4] sm:$0xff] %vm187, %v1435
  %1439 = vrot.lane.b32.xlu0 %v1426, 96
  %v1440 = vpop.permute.xlu0 %1439
  %1442 = vst.msk [vmem:[#allocation5] sm:$0xff] %vm187, %v1440
  %v1443 = vld [vmem:[#allocation6] sm:$0xff]
  %v1444 = vld [vmem:[%s7] sm:$0xff]
  %v1445 = vld [vmem:[%s7 + $0x8] sm:$0xff]
  %v1446 = vld [vmem:[%s7 + $0x10] sm:$0xff]
  %v1447 = vld [vmem:[%s7 + $0x18] sm:$0xff]
  %v1448 = vsel %vm187, %v1435, 0
  %1450 = vmatprep.subr.mxu0 0.0
  %1451 = vmatpush1.msra.mxu0 %v1444
  %1452 = vmatprep.subr.mxu0 0.0
  %1453 = vmatpush1.msra.mxu0 %v1445
  %1454 = vmatprep.subr.mxu0 0.0
  %1455 = vmatpush1.msra.mxu0 %v1446
  %1456 = vmatprep.subr.mxu0 0.0
  %1457 = vmatpush1.msra.mxu0 %v1447
  %1458 = vmatprep.subr.mxu0 0.0
  %1459 = vmatpush1.msra.mxu0 0.0
  %1460 = vmatprep.subr.mxu0 0.0
  %1461 = vmatpush1.msra.mxu0 0.0
  %1462 = vmatprep.subr.mxu0 0.0
  %1463 = vmatpush1.msra.mxu0 0.0
  %1464 = vmatprep.subr.mxu0 0.0
  %1465 = vmatpush1.msra.mxu0 0.0
  %1466 = vmatprep.subr.mxu0 0.0
  %1467 = vmatpush1.msra.mxu0 0.0
  %1468 = vmatprep.subr.mxu0 0.0
  %1469 = vmatpush1.msra.mxu0 0.0
  %1470 = vmatprep.subr.mxu0 0.0
  %1471 = vmatpush1.msra.mxu0 0.0
  %1472 = vmatprep.subr.mxu0 0.0
  %1473 = vmatpush1.msra.mxu0 0.0
  %1474 = vmatprep.subr.mxu0 0.0
  %1475 = vmatpush1.msra.mxu0 0.0
  %1476 = vmatprep.subr.mxu0 0.0
  %1477 = vmatpush1.msra.mxu0 0.0
  %1478 = vmatprep.subr.mxu0 0.0
  %1479 = vmatpush1.msra.mxu0 0.0
  %1480 = vmatprep.subr.mxu0 0.0
  %1481 = vmatpush1.msra.mxu0 0.0
  %1482 = vmatprep.subr.mxu0 0.0
  %1483 = vmatpush1.msra.mxu0 0.0
  %1484 = vmatprep.subr.mxu0 0.0
  %1485 = vmatpush1.msra.mxu0 0.0
  %1486 = vmatprep.subr.mxu0 0.0
  %1487 = vmatpush1.msra.mxu0 0.0
  %1488 = vmatprep.subr.mxu0 0.0
  %1489 = vmatpush1.msra.mxu0 0.0
  %1490 = vmatprep.subr.mxu0 0.0
  %1491 = vmatpush1.msra.mxu0 0.0
  %1492 = vmatprep.subr.mxu0 0.0
  %1493 = vmatpush1.msra.mxu0 0.0
  %1494 = vmatprep.subr.mxu0 0.0
  %1495 = vmatpush1.msra.mxu0 0.0
  %1496 = vmatprep.subr.mxu0 0.0
  %1497 = vmatpush1.msra.mxu0 0.0
  %1498 = vmatprep.subr.mxu0 0.0
  %1499 = vmatpush1.msra.mxu0 0.0
  %1500 = vmatprep.subr.mxu0 0.0
  %1501 = vmatpush1.msra.mxu0 0.0
  %1502 = vmatprep.subr.mxu0 0.0
  %1503 = vmatpush1.msra.mxu0 0.0
  %1504 = vmatprep.subr.mxu0 0.0
  %1505 = vmatpush1.msra.mxu0 0.0
  %1506 = vmatprep.subr.mxu0 0.0
  %1507 = vmatpush1.msra.mxu0 0.0
  %1508 = vmatprep.subr.mxu0 0.0
  %1509 = vmatpush1.msra.mxu0 0.0
  %1510 = vmatprep.subr.mxu0 0.0
  %1511 = vmatpush1.msra.mxu0 0.0
  %1512 = vmatprep.subr.mxu0 0.0
  %1513 = vmatpush1.msra.mxu0 0.0
  %1514 = vmatprep.mubr.f32.mxu0 0.0
  %1515 = vmatmul.mubr.f32.gmra.mrb[0].mxu0 %v1448
  %v1516 = vpop.f32.mrb[0].mxu0
  %v1517 = vadd.f32 0.0, %v1516
  %v1518 = vpop.f32.mrb[0].mxu0
  %1519 = vdwg.mxu0
  %v1520 = vadd.f32 %v1443, %v1517
  %1521 = vst.msk [vmem:[#allocation6] sm:$0xff] %vm1322, %v1520
  %v1522 = vld [vmem:[%s310] sm:$0xff]
  %v1523 = vld [vmem:[#allocation4] sm:$0xff]
  %v1524 = vld [vmem:[%s5] sm:$0xff]
  %v1525 = vld [vmem:[%s5 + $0x8] sm:$0xff]
  %v1526 = vld [vmem:[%s5 + $0x10] sm:$0xff]
  %v1527 = vld [vmem:[%s5 + $0x18] sm:$0xff]
  %v1529 = vsel %vm187, %v1523, 0
  %1531 = vmatprep.subr.mxu0 0.0
  %1532 = vmatpush1.msra.mxu0 %v1524
  %1533 = vmatprep.subr.mxu0 0.0
  %1534 = vmatpush1.msra.mxu0 %v1525
  %1535 = vmatprep.subr.mxu0 0.0
  %1536 = vmatpush1.msra.mxu0 %v1526
  %1537 = vmatprep.subr.mxu0 0.0
  %1538 = vmatpush1.msra.mxu0 %v1527
  %1539 = vmatprep.subr.mxu0 0.0
  %1540 = vmatpush1.msra.mxu0 0.0
  %1541 = vmatprep.subr.mxu0 0.0
  %1542 = vmatpush1.msra.mxu0 0.0
  %1543 = vmatprep.subr.mxu0 0.0
  %1544 = vmatpush1.msra.mxu0 0.0
  %1545 = vmatprep.subr.mxu0 0.0
  %1546 = vmatpush1.msra.mxu0 0.0
  %1547 = vmatprep.subr.mxu0 0.0
  %1548 = vmatpush1.msra.mxu0 0.0
  %1549 = vmatprep.subr.mxu0 0.0
  %1550 = vmatpush1.msra.mxu0 0.0
  %1551 = vmatprep.subr.mxu0 0.0
  %1552 = vmatpush1.msra.mxu0 0.0
  %1553 = vmatprep.subr.mxu0 0.0
  %1554 = vmatpush1.msra.mxu0 0.0
  %1555 = vmatprep.subr.mxu0 0.0
  %1556 = vmatpush1.msra.mxu0 0.0
  %1557 = vmatprep.subr.mxu0 0.0
  %1558 = vmatpush1.msra.mxu0 0.0
  %1559 = vmatprep.subr.mxu0 0.0
  %1560 = vmatpush1.msra.mxu0 0.0
  %1561 = vmatprep.subr.mxu0 0.0
  %1562 = vmatpush1.msra.mxu0 0.0
  %1563 = vmatprep.subr.mxu0 0.0
  %1564 = vmatpush1.msra.mxu0 0.0
  %1565 = vmatprep.subr.mxu0 0.0
  %1566 = vmatpush1.msra.mxu0 0.0
  %1567 = vmatprep.subr.mxu0 0.0
  %1568 = vmatpush1.msra.mxu0 0.0
  %1569 = vmatprep.subr.mxu0 0.0
  %1570 = vmatpush1.msra.mxu0 0.0
  %1571 = vmatprep.subr.mxu0 0.0
  %1572 = vmatpush1.msra.mxu0 0.0
  %1573 = vmatprep.subr.mxu0 0.0
  %1574 = vmatpush1.msra.mxu0 0.0
  %1575 = vmatprep.subr.mxu0 0.0
  %1576 = vmatpush1.msra.mxu0 0.0
  %1577 = vmatprep.subr.mxu0 0.0
  %1578 = vmatpush1.msra.mxu0 0.0
  %1579 = vmatprep.subr.mxu0 0.0
  %1580 = vmatpush1.msra.mxu0 0.0
  %1581 = vmatprep.subr.mxu0 0.0
  %1582 = vmatpush1.msra.mxu0 0.0
  %1583 = vmatprep.subr.mxu0 0.0
  %1584 = vmatpush1.msra.mxu0 0.0
  %1585 = vmatprep.subr.mxu0 0.0
  %1586 = vmatpush1.msra.mxu0 0.0
  %1587 = vmatprep.subr.mxu0 0.0
  %1588 = vmatpush1.msra.mxu0 0.0
  %1589 = vmatprep.subr.mxu0 0.0
  %1590 = vmatpush1.msra.mxu0 0.0
  %1591 = vmatprep.subr.mxu0 0.0
  %1592 = vmatpush1.msra.mxu0 0.0
  %1593 = vmatprep.subr.mxu0 0.0
  %1594 = vmatpush1.msra.mxu0 0.0
  %1595 = vmatprep.mubr.f32.mxu0 0.0
  %1596 = vmatmul.mubr.f32.gmra.mrb[0].mxu0 %v1529
  %v1597 = vpop.f32.mrb[0].mxu0
  %v1598 = vadd.f32 0.0, %v1597
  %v1599 = vpop.f32.mrb[0].mxu0
  %1600 = vdwg.mxu0
  %v1601 = vadd.f32 %v1522, %v1598
  %v1602 = vld [vmem:[#allocation5] sm:$0xff]
  %v1603 = vxor.u32 %v1601, 2147483648
  %v1604 = vmul.f32 %v1603, 1.442695
  %v1605 = vpow.pop %v1604
  %v1606 = vadd.f32 %v1605, 1.0
  %v1607 = vrcp.pop %v1606
  %v1608 = vmul.f32 1.0, %v1607
  %v1609 = vtanh.pop %v1601
  %1611 = vrot.lane.b32.xlu0 %v1602, 32
  %v1612 = vpop.permute.xlu0 %1611
  %v1614 = vmul.f32 %v1608, %v1612
  %1616 = vrot.lane.b32.xlu0 %v1609, 64
  %v1617 = vpop.permute.xlu0 %1616
  %v1619 = vmul.f32 %v1608, %v1617
  %1621 = vrot.lane.b32.xlu0 %v1619, 32
  %v1622 = vpop.permute.xlu0 %1621
  %v1624 = vadd.f32 %v1614, %v1622
  %v1625 = vtanh.pop %v1624
  %1627 = vrot.lane.b32.xlu0 %v1625, 64
  %v1628 = vpop.permute.xlu0 %1627
  %v1630 = vmul.f32 %v1608, %v1628
  %1632 = vrot.lane.b32.xlu0 %v1630, 32
  %v1633 = vpop.permute.xlu0 %1632
  %1635 = vst.msk [vmem:[#allocation4] sm:$0xff] %vm187, %v1633
  %1637 = vrot.lane.b32.xlu0 %v1624, 96
  %v1638 = vpop.permute.xlu0 %1637
  %1640 = vst.msk [vmem:[#allocation5] sm:$0xff] %vm187, %v1638
  %v1641 = vld [vmem:[#allocation6] sm:$0xff]
  %s1642 = scalar_lea.vmem %s7, 32
  %v1643 = vld [vmem:[%s1642] sm:$0xff]
  %v1644 = vld [vmem:[%s1642 + $0x8] sm:$0xff]
  %v1645 = vld [vmem:[%s1642 + $0x10] sm:$0xff]
  %v1646 = vld [vmem:[%s1642 + $0x18] sm:$0xff]
  %v1647 = vsel %vm187, %v1633, 0
  %1649 = vmatprep.subr.mxu0 0.0
  %1650 = vmatpush1.msra.mxu0 %v1643
  %1651 = vmatprep.subr.mxu0 0.0
  %1652 = vmatpush1.msra.mxu0 %v1644
  %1653 = vmatprep.subr.mxu0 0.0
  %1654 = vmatpush1.msra.mxu0 %v1645
  %1655 = vmatprep.subr.mxu0 0.0
  %1656 = vmatpush1.msra.mxu0 %v1646
  %1657 = vmatprep.subr.mxu0 0.0
  %1658 = vmatpush1.msra.mxu0 0.0
  %1659 = vmatprep.subr.mxu0 0.0
  %1660 = vmatpush1.msra.mxu0 0.0
  %1661 = vmatprep.subr.mxu0 0.0
  %1662 = vmatpush1.msra.mxu0 0.0
  %1663 = vmatprep.subr.mxu0 0.0
  %1664 = vmatpush1.msra.mxu0 0.0
  %1665 = vmatprep.subr.mxu0 0.0
  %1666 = vmatpush1.msra.mxu0 0.0
  %1667 = vmatprep.subr.mxu0 0.0
  %1668 = vmatpush1.msra.mxu0 0.0
  %1669 = vmatprep.subr.mxu0 0.0
  %1670 = vmatpush1.msra.mxu0 0.0
  %1671 = vmatprep.subr.mxu0 0.0
  %1672 = vmatpush1.msra.mxu0 0.0
  %1673 = vmatprep.subr.mxu0 0.0
  %1674 = vmatpush1.msra.mxu0 0.0
  %1675 = vmatprep.subr.mxu0 0.0
  %1676 = vmatpush1.msra.mxu0 0.0
  %1677 = vmatprep.subr.mxu0 0.0
  %1678 = vmatpush1.msra.mxu0 0.0
  %1679 = vmatprep.subr.mxu0 0.0
  %1680 = vmatpush1.msra.mxu0 0.0
  %1681 = vmatprep.subr.mxu0 0.0
  %1682 = vmatpush1.msra.mxu0 0.0
  %1683 = vmatprep.subr.mxu0 0.0
  %1684 = vmatpush1.msra.mxu0 0.0
  %1685 = vmatprep.subr.mxu0 0.0
  %1686 = vmatpush1.msra.mxu0 0.0
  %1687 = vmatprep.subr.mxu0 0.0
  %1688 = vmatpush1.msra.mxu0 0.0
  %1689 = vmatprep.subr.mxu0 0.0
  %1690 = vmatpush1.msra.mxu0 0.0
  %1691 = vmatprep.subr.mxu0 0.0
  %1692 = vmatpush1.msra.mxu0 0.0
  %1693 = vmatprep.subr.mxu0 0.0
  %1694 = vmatpush1.msra.mxu0 0.0
  %1695 = vmatprep.subr.mxu0 0.0
  %1696 = vmatpush1.msra.mxu0 0.0
  %1697 = vmatprep.subr.mxu0 0.0
  %1698 = vmatpush1.msra.mxu0 0.0
  %1699 = vmatprep.subr.mxu0 0.0
  %1700 = vmatpush1.msra.mxu0 0.0
  %1701 = vmatprep.subr.mxu0 0.0
  %1702 = vmatpush1.msra.mxu0 0.0
  %1703 = vmatprep.subr.mxu0 0.0
  %1704 = vmatpush1.msra.mxu0 0.0
  %1705 = vmatprep.subr.mxu0 0.0
  %1706 = vmatpush1.msra.mxu0 0.0
  %1707 = vmatprep.subr.mxu0 0.0
  %1708 = vmatpush1.msra.mxu0 0.0
  %1709 = vmatprep.subr.mxu0 0.0
  %1710 = vmatpush1.msra.mxu0 0.0
  %1711 = vmatprep.subr.mxu0 0.0
  %1712 = vmatpush1.msra.mxu0 0.0
  %1713 = vmatprep.mubr.f32.mxu0 0.0
  %1714 = vmatmul.mubr.f32.gmra.mrb[0].mxu0 %v1647
  %v1715 = vpop.f32.mrb[0].mxu0
  %v1716 = vadd.f32 0.0, %v1715
  %v1717 = vpop.f32.mrb[0].mxu0
  %1718 = vdwg.mxu0
  %v1719 = vadd.f32 %v1641, %v1716
  %1720 = vst.msk [vmem:[#allocation6] sm:$0xff] %vm1322, %v1719
  %v1721 = vld [vmem:[%s432] sm:$0xff]
  %v1722 = vld [vmem:[#allocation4] sm:$0xff]
  %v1723 = vld [vmem:[%s5] sm:$0xff]
  %v1724 = vld [vmem:[%s5 + $0x8] sm:$0xff]
  %v1725 = vld [vmem:[%s5 + $0x10] sm:$0xff]
  %v1726 = vld [vmem:[%s5 + $0x18] sm:$0xff]
  %v1728 = vsel %vm187, %v1722, 0
  %1730 = vmatprep.subr.mxu0 0.0
  %1731 = vmatpush1.msra.mxu0 %v1723
  %1732 = vmatprep.subr.mxu0 0.0
  %1733 = vmatpush1.msra.mxu0 %v1724
  %1734 = vmatprep.subr.mxu0 0.0
  %1735 = vmatpush1.msra.mxu0 %v1725
  %1736 = vmatprep.subr.mxu0 0.0
  %1737 = vmatpush1.msra.mxu0 %v1726
  %1738 = vmatprep.subr.mxu0 0.0
  %1739 = vmatpush1.msra.mxu0 0.0
  %1740 = vmatprep.subr.mxu0 0.0
  %1741 = vmatpush1.msra.mxu0 0.0
  %1742 = vmatprep.subr.mxu0 0.0
  %1743 = vmatpush1.msra.mxu0 0.0
  %1744 = vmatprep.subr.mxu0 0.0
  %1745 = vmatpush1.msra.mxu0 0.0
  %1746 = vmatprep.subr.mxu0 0.0
  %1747 = vmatpush1.msra.mxu0 0.0
  %1748 = vmatprep.subr.mxu0 0.0
  %1749 = vmatpush1.msra.mxu0 0.0
  %1750 = vmatprep.subr.mxu0 0.0
  %1751 = vmatpush1.msra.mxu0 0.0
  %1752 = vmatprep.subr.mxu0 0.0
  %1753 = vmatpush1.msra.mxu0 0.0
  %1754 = vmatprep.subr.mxu0 0.0
  %1755 = vmatpush1.msra.mxu0 0.0
  %1756 = vmatprep.subr.mxu0 0.0
  %1757 = vmatpush1.msra.mxu0 0.0
  %1758 = vmatprep.subr.mxu0 0.0
  %1759 = vmatpush1.msra.mxu0 0.0
  %1760 = vmatprep.subr.mxu0 0.0
  %1761 = vmatpush1.msra.mxu0 0.0
  %1762 = vmatprep.subr.mxu0 0.0
  %1763 = vmatpush1.msra.mxu0 0.0
  %1764 = vmatprep.subr.mxu0 0.0
  %1765 = vmatpush1.msra.mxu0 0.0
  %1766 = vmatprep.subr.mxu0 0.0
  %1767 = vmatpush1.msra.mxu0 0.0
  %1768 = vmatprep.subr.mxu0 0.0
  %1769 = vmatpush1.msra.mxu0 0.0
  %1770 = vmatprep.subr.mxu0 0.0
  %1771 = vmatpush1.msra.mxu0 0.0
  %1772 = vmatprep.subr.mxu0 0.0
  %1773 = vmatpush1.msra.mxu0 0.0
  %1774 = vmatprep.subr.mxu0 0.0
  %1775 = vmatpush1.msra.mxu0 0.0
  %1776 = vmatprep.subr.mxu0 0.0
  %1777 = vmatpush1.msra.mxu0 0.0
  %1778 = vmatprep.subr.mxu0 0.0
  %1779 = vmatpush1.msra.mxu0 0.0
  %1780 = vmatprep.subr.mxu0 0.0
  %1781 = vmatpush1.msra.mxu0 0.0
  %1782 = vmatprep.subr.mxu0 0.0
  %1783 = vmatpush1.msra.mxu0 0.0
  %1784 = vmatprep.subr.mxu0 0.0
  %1785 = vmatpush1.msra.mxu0 0.0
  %1786 = vmatprep.subr.mxu0 0.0
  %1787 = vmatpush1.msra.mxu0 0.0
  %1788 = vmatprep.subr.mxu0 0.0
  %1789 = vmatpush1.msra.mxu0 0.0
  %1790 = vmatprep.subr.mxu0 0.0
  %1791 = vmatpush1.msra.mxu0 0.0
  %1792 = vmatprep.subr.mxu0 0.0
  %1793 = vmatpush1.msra.mxu0 0.0
  %1794 = vmatprep.mubr.f32.mxu0 0.0
  %1795 = vmatmul.mubr.f32.gmra.mrb[0].mxu0 %v1728
  %v1796 = vpop.f32.mrb[0].mxu0
  %v1797 = vadd.f32 0.0, %v1796
  %v1798 = vpop.f32.mrb[0].mxu0
  %1799 = vdwg.mxu0
  %v1800 = vadd.f32 %v1721, %v1797
  %v1801 = vld [vmem:[#allocation5] sm:$0xff]
  %v1802 = vxor.u32 %v1800, 2147483648
  %v1803 = vmul.f32 %v1802, 1.442695
  %v1804 = vpow.pop %v1803
  %v1805 = vadd.f32 %v1804, 1.0
  %v1806 = vrcp.pop %v1805
  %v1807 = vmul.f32 1.0, %v1806
  %v1808 = vtanh.pop %v1800
  %1810 = vrot.lane.b32.xlu0 %v1801, 32
  %v1811 = vpop.permute.xlu0 %1810
  %v1813 = vmul.f32 %v1807, %v1811
  %1815 = vrot.lane.b32.xlu0 %v1808, 64
  %v1816 = vpop.permute.xlu0 %1815
  %v1818 = vmul.f32 %v1807, %v1816
  %1820 = vrot.lane.b32.xlu0 %v1818, 32
  %v1821 = vpop.permute.xlu0 %1820
  %v1823 = vadd.f32 %v1813, %v1821
  %v1824 = vtanh.pop %v1823
  %1826 = vrot.lane.b32.xlu0 %v1824, 64
  %v1827 = vpop.permute.xlu0 %1826
  %v1829 = vmul.f32 %v1807, %v1827
  %1831 = vrot.lane.b32.xlu0 %v1829, 32
  %v1832 = vpop.permute.xlu0 %1831
  %1834 = vst.msk [vmem:[#allocation4] sm:$0xff] %vm187, %v1832
  %1836 = vrot.lane.b32.xlu0 %v1823, 96
  %v1837 = vpop.permute.xlu0 %1836
  %1839 = vst.msk [vmem:[#allocation5] sm:$0xff] %vm187, %v1837
  %v1840 = vld [vmem:[#allocation6] sm:$0xff]
  %s1841 = scalar_lea.vmem %s7, 64
  %v1842 = vld [vmem:[%s1841] sm:$0xff]
  %v1843 = vld [vmem:[%s1841 + $0x8] sm:$0xff]
  %v1844 = vld [vmem:[%s1841 + $0x10] sm:$0xff]
  %v1845 = vld [vmem:[%s1841 + $0x18] sm:$0xff]
  %v1846 = vsel %vm187, %v1832, 0
  %1848 = vmatprep.subr.mxu0 0.0
  %1849 = vmatpush1.msra.mxu0 %v1842
  %1850 = vmatprep.subr.mxu0 0.0
  %1851 = vmatpush1.msra.mxu0 %v1843
  %1852 = vmatprep.subr.mxu0 0.0
  %1853 = vmatpush1.msra.mxu0 %v1844
  %1854 = vmatprep.subr.mxu0 0.0
  %1855 = vmatpush1.msra.mxu0 %v1845
  %1856 = vmatprep.subr.mxu0 0.0
  %1857 = vmatpush1.msra.mxu0 0.0
  %1858 = vmatprep.subr.mxu0 0.0
  %1859 = vmatpush1.msra.mxu0 0.0
  %1860 = vmatprep.subr.mxu0 0.0
  %1861 = vmatpush1.msra.mxu0 0.0
  %1862 = vmatprep.subr.mxu0 0.0
  %1863 = vmatpush1.msra.mxu0 0.0
  %1864 = vmatprep.subr.mxu0 0.0
  %1865 = vmatpush1.msra.mxu0 0.0
  %1866 = vmatprep.subr.mxu0 0.0
  %1867 = vmatpush1.msra.mxu0 0.0
  %1868 = vmatprep.subr.mxu0 0.0
  %1869 = vmatpush1.msra.mxu0 0.0
  %1870 = vmatprep.subr.mxu0 0.0
  %1871 = vmatpush1.msra.mxu0 0.0
  %1872 = vmatprep.subr.mxu0 0.0
  %1873 = vmatpush1.msra.mxu0 0.0
  %1874 = vmatprep.subr.mxu0 0.0
  %1875 = vmatpush1.msra.mxu0 0.0
  %1876 = vmatprep.subr.mxu0 0.0
  %1877 = vmatpush1.msra.mxu0 0.0
  %1878 = vmatprep.subr.mxu0 0.0
  %1879 = vmatpush1.msra.mxu0 0.0
  %1880 = vmatprep.subr.mxu0 0.0
  %1881 = vmatpush1.msra.mxu0 0.0
  %1882 = vmatprep.subr.mxu0 0.0
  %1883 = vmatpush1.msra.mxu0 0.0
  %1884 = vmatprep.subr.mxu0 0.0
  %1885 = vmatpush1.msra.mxu0 0.0
  %1886 = vmatprep.subr.mxu0 0.0
  %1887 = vmatpush1.msra.mxu0 0.0
  %1888 = vmatprep.subr.mxu0 0.0
  %1889 = vmatpush1.msra.mxu0 0.0
  %1890 = vmatprep.subr.mxu0 0.0
  %1891 = vmatpush1.msra.mxu0 0.0
  %1892 = vmatprep.subr.mxu0 0.0
  %1893 = vmatpush1.msra.mxu0 0.0
  %1894 = vmatprep.subr.mxu0 0.0
  %1895 = vmatpush1.msra.mxu0 0.0
  %1896 = vmatprep.subr.mxu0 0.0
  %1897 = vmatpush1.msra.mxu0 0.0
  %1898 = vmatprep.subr.mxu0 0.0
  %1899 = vmatpush1.msra.mxu0 0.0
  %1900 = vmatprep.subr.mxu0 0.0
  %1901 = vmatpush1.msra.mxu0 0.0
  %1902 = vmatprep.subr.mxu0 0.0
  %1903 = vmatpush1.msra.mxu0 0.0
  %1904 = vmatprep.subr.mxu0 0.0
  %1905 = vmatpush1.msra.mxu0 0.0
  %1906 = vmatprep.subr.mxu0 0.0
  %1907 = vmatpush1.msra.mxu0 0.0
  %1908 = vmatprep.subr.mxu0 0.0
  %1909 = vmatpush1.msra.mxu0 0.0
  %1910 = vmatprep.subr.mxu0 0.0
  %1911 = vmatpush1.msra.mxu0 0.0
  %1912 = vmatprep.mubr.f32.mxu0 0.0
  %1913 = vmatmul.mubr.f32.gmra.mrb[0].mxu0 %v1846
  %v1914 = vpop.f32.mrb[0].mxu0
  %v1915 = vadd.f32 0.0, %v1914
  %v1916 = vpop.f32.mrb[0].mxu0
  %1917 = vdwg.mxu0
  %v1918 = vadd.f32 %v1840, %v1915
  %1919 = vst.msk [vmem:[#allocation6] sm:$0xff] %vm1322, %v1918
  %v1920 = vld [vmem:[%s554] sm:$0xff]
  %v1921 = vld [vmem:[#allocation4] sm:$0xff]
  %v1922 = vld [vmem:[%s5] sm:$0xff]
  %v1923 = vld [vmem:[%s5 + $0x8] sm:$0xff]
  %v1924 = vld [vmem:[%s5 + $0x10] sm:$0xff]
  %v1925 = vld [vmem:[%s5 + $0x18] sm:$0xff]
  %v1927 = vsel %vm187, %v1921, 0
  %1929 = vmatprep.subr.mxu0 0.0
  %1930 = vmatpush1.msra.mxu0 %v1922
  %1931 = vmatprep.subr.mxu0 0.0
  %1932 = vmatpush1.msra.mxu0 %v1923
  %1933 = vmatprep.subr.mxu0 0.0
  %1934 = vmatpush1.msra.mxu0 %v1924
  %1935 = vmatprep.subr.mxu0 0.0
  %1936 = vmatpush1.msra.mxu0 %v1925
  %1937 = vmatprep.subr.mxu0 0.0
  %1938 = vmatpush1.msra.mxu0 0.0
  %1939 = vmatprep.subr.mxu0 0.0
  %1940 = vmatpush1.msra.mxu0 0.0
  %1941 = vmatprep.subr.mxu0 0.0
  %1942 = vmatpush1.msra.mxu0 0.0
  %1943 = vmatprep.subr.mxu0 0.0
  %1944 = vmatpush1.msra.mxu0 0.0
  %1945 = vmatprep.subr.mxu0 0.0
  %1946 = vmatpush1.msra.mxu0 0.0
  %1947 = vmatprep.subr.mxu0 0.0
  %1948 = vmatpush1.msra.mxu0 0.0
  %1949 = vmatprep.subr.mxu0 0.0
  %1950 = vmatpush1.msra.mxu0 0.0
  %1951 = vmatprep.subr.mxu0 0.0
  %1952 = vmatpush1.msra.mxu0 0.0
  %1953 = vmatprep.subr.mxu0 0.0
  %1954 = vmatpush1.msra.mxu0 0.0
  %1955 = vmatprep.subr.mxu0 0.0
  %1956 = vmatpush1.msra.mxu0 0.0
  %1957 = vmatprep.subr.mxu0 0.0
  %1958 = vmatpush1.msra.mxu0 0.0
  %1959 = vmatprep.subr.mxu0 0.0
  %1960 = vmatpush1.msra.mxu0 0.0
  %1961 = vmatprep.subr.mxu0 0.0
  %1962 = vmatpush1.msra.mxu0 0.0
  %1963 = vmatprep.subr.mxu0 0.0
  %1964 = vmatpush1.msra.mxu0 0.0
  %1965 = vmatprep.subr.mxu0 0.0
  %1966 = vmatpush1.msra.mxu0 0.0
  %1967 = vmatprep.subr.mxu0 0.0
  %1968 = vmatpush1.msra.mxu0 0.0
  %1969 = vmatprep.subr.mxu0 0.0
  %1970 = vmatpush1.msra.mxu0 0.0
  %1971 = vmatprep.subr.mxu0 0.0
  %1972 = vmatpush1.msra.mxu0 0.0
  %1973 = vmatprep.subr.mxu0 0.0
  %1974 = vmatpush1.msra.mxu0 0.0
  %1975 = vmatprep.subr.mxu0 0.0
  %1976 = vmatpush1.msra.mxu0 0.0
  %1977 = vmatprep.subr.mxu0 0.0
  %1978 = vmatpush1.msra.mxu0 0.0
  %1979 = vmatprep.subr.mxu0 0.0
  %1980 = vmatpush1.msra.mxu0 0.0
  %1981 = vmatprep.subr.mxu0 0.0
  %1982 = vmatpush1.msra.mxu0 0.0
  %1983 = vmatprep.subr.mxu0 0.0
  %1984 = vmatpush1.msra.mxu0 0.0
  %1985 = vmatprep.subr.mxu0 0.0
  %1986 = vmatpush1.msra.mxu0 0.0
  %1987 = vmatprep.subr.mxu0 0.0
  %1988 = vmatpush1.msra.mxu0 0.0
  %1989 = vmatprep.subr.mxu0 0.0
  %1990 = vmatpush1.msra.mxu0 0.0
  %1991 = vmatprep.subr.mxu0 0.0
  %1992 = vmatpush1.msra.mxu0 0.0
  %1993 = vmatprep.mubr.f32.mxu0 0.0
  %1994 = vmatmul.mubr.f32.gmra.mrb[0].mxu0 %v1927
  %v1995 = vpop.f32.mrb[0].mxu0
  %v1996 = vadd.f32 0.0, %v1995
  %v1997 = vpop.f32.mrb[0].mxu0
  %1998 = vdwg.mxu0
  %v1999 = vadd.f32 %v1920, %v1996
  %v2000 = vld [vmem:[#allocation5] sm:$0xff]
  %v2001 = vxor.u32 %v1999, 2147483648
  %v2002 = vmul.f32 %v2001, 1.442695
  %v2003 = vpow.pop %v2002
  %v2004 = vadd.f32 %v2003, 1.0
  %v2005 = vrcp.pop %v2004
  %v2006 = vmul.f32 1.0, %v2005
  %v2007 = vtanh.pop %v1999
  %2009 = vrot.lane.b32.xlu0 %v2000, 32
  %v2010 = vpop.permute.xlu0 %2009
  %v2012 = vmul.f32 %v2006, %v2010
  %2014 = vrot.lane.b32.xlu0 %v2007, 64
  %v2015 = vpop.permute.xlu0 %2014
  %v2017 = vmul.f32 %v2006, %v2015
  %2019 = vrot.lane.b32.xlu0 %v2017, 32
  %v2020 = vpop.permute.xlu0 %2019
  %v2022 = vadd.f32 %v2012, %v2020
  %v2023 = vtanh.pop %v2022
  %2025 = vrot.lane.b32.xlu0 %v2023, 64
  %v2026 = vpop.permute.xlu0 %2025
  %v2028 = vmul.f32 %v2006, %v2026
  %2030 = vrot.lane.b32.xlu0 %v2028, 32
  %v2031 = vpop.permute.xlu0 %2030
  %2033 = vst.msk [vmem:[#allocation4] sm:$0xff] %vm187, %v2031
  %2035 = vrot.lane.b32.xlu0 %v2022, 96
  %v2036 = vpop.permute.xlu0 %2035
  %2038 = vst.msk [vmem:[#allocation5] sm:$0xff] %vm187, %v2036
  %v2039 = vld [vmem:[#allocation6] sm:$0xff]
  %s2040 = scalar_lea.vmem %s7, 96
  %v2041 = vld [vmem:[%s2040] sm:$0xff]
  %v2042 = vld [vmem:[%s2040 + $0x8] sm:$0xff]
  %v2043 = vld [vmem:[%s2040 + $0x10] sm:$0xff]
  %v2044 = vld [vmem:[%s2040 + $0x18] sm:$0xff]
  %v2045 = vsel %vm187, %v2031, 0
  %2047 = vmatprep.subr.mxu0 0.0
  %2048 = vmatpush1.msra.mxu0 %v2041
  %2049 = vmatprep.subr.mxu0 0.0
  %2050 = vmatpush1.msra.mxu0 %v2042
  %2051 = vmatprep.subr.mxu0 0.0
  %2052 = vmatpush1.msra.mxu0 %v2043
  %2053 = vmatprep.subr.mxu0 0.0
  %2054 = vmatpush1.msra.mxu0 %v2044
  %2055 = vmatprep.subr.mxu0 0.0
  %2056 = vmatpush1.msra.mxu0 0.0
  %2057 = vmatprep.subr.mxu0 0.0
  %2058 = vmatpush1.msra.mxu0 0.0
  %2059 = vmatprep.subr.mxu0 0.0
  %2060 = vmatpush1.msra.mxu0 0.0
  %2061 = vmatprep.subr.mxu0 0.0
  %2062 = vmatpush1.msra.mxu0 0.0
  %2063 = vmatprep.subr.mxu0 0.0
  %2064 = vmatpush1.msra.mxu0 0.0
  %2065 = vmatprep.subr.mxu0 0.0
  %2066 = vmatpush1.msra.mxu0 0.0
  %2067 = vmatprep.subr.mxu0 0.0
  %2068 = vmatpush1.msra.mxu0 0.0
  %2069 = vmatprep.subr.mxu0 0.0
  %2070 = vmatpush1.msra.mxu0 0.0
  %2071 = vmatprep.subr.mxu0 0.0
  %2072 = vmatpush1.msra.mxu0 0.0
  %2073 = vmatprep.subr.mxu0 0.0
  %2074 = vmatpush1.msra.mxu0 0.0
  %2075 = vmatprep.subr.mxu0 0.0
  %2076 = vmatpush1.msra.mxu0 0.0
  %2077 = vmatprep.subr.mxu0 0.0
  %2078 = vmatpush1.msra.mxu0 0.0
  %2079 = vmatprep.subr.mxu0 0.0
  %2080 = vmatpush1.msra.mxu0 0.0
  %2081 = vmatprep.subr.mxu0 0.0
  %2082 = vmatpush1.msra.mxu0 0.0
  %2083 = vmatprep.subr.mxu0 0.0
  %2084 = vmatpush1.msra.mxu0 0.0
  %2085 = vmatprep.subr.mxu0 0.0
  %2086 = vmatpush1.msra.mxu0 0.0
  %2087 = vmatprep.subr.mxu0 0.0
  %2088 = vmatpush1.msra.mxu0 0.0
  %2089 = vmatprep.subr.mxu0 0.0
  %2090 = vmatpush1.msra.mxu0 0.0
  %2091 = vmatprep.subr.mxu0 0.0
  %2092 = vmatpush1.msra.mxu0 0.0
  %2093 = vmatprep.subr.mxu0 0.0
  %2094 = vmatpush1.msra.mxu0 0.0
  %2095 = vmatprep.subr.mxu0 0.0
  %2096 = vmatpush1.msra.mxu0 0.0
  %2097 = vmatprep.subr.mxu0 0.0
  %2098 = vmatpush1.msra.mxu0 0.0
  %2099 = vmatprep.subr.mxu0 0.0
  %2100 = vmatpush1.msra.mxu0 0.0
  %2101 = vmatprep.subr.mxu0 0.0
  %2102 = vmatpush1.msra.mxu0 0.0
  %2103 = vmatprep.subr.mxu0 0.0
  %2104 = vmatpush1.msra.mxu0 0.0
  %2105 = vmatprep.subr.mxu0 0.0
  %2106 = vmatpush1.msra.mxu0 0.0
  %2107 = vmatprep.subr.mxu0 0.0
  %2108 = vmatpush1.msra.mxu0 0.0
  %2109 = vmatprep.subr.mxu0 0.0
  %2110 = vmatpush1.msra.mxu0 0.0
  %2111 = vmatprep.mubr.f32.mxu0 0.0
  %2112 = vmatmul.mubr.f32.gmra.mrb[0].mxu0 %v2045
  %v2113 = vpop.f32.mrb[0].mxu0
  %v2114 = vadd.f32 0.0, %v2113
  %v2115 = vpop.f32.mrb[0].mxu0
  %2116 = vdwg.mxu0
  %v2117 = vadd.f32 %v2039, %v2114
  %2118 = vst.msk [vmem:[#allocation6] sm:$0xff] %vm1322, %v2117
  %v2119 = vld [vmem:[%s676] sm:$0xff]
  %v2120 = vld [vmem:[#allocation4] sm:$0xff]
  %v2121 = vld [vmem:[%s5] sm:$0xff]
  %v2122 = vld [vmem:[%s5 + $0x8] sm:$0xff]
  %v2123 = vld [vmem:[%s5 + $0x10] sm:$0xff]
  %v2124 = vld [vmem:[%s5 + $0x18] sm:$0xff]
  %v2126 = vsel %vm187, %v2120, 0
  %2128 = vmatprep.subr.mxu0 0.0
  %2129 = vmatpush1.msra.mxu0 %v2121
  %2130 = vmatprep.subr.mxu0 0.0
  %2131 = vmatpush1.msra.mxu0 %v2122
  %2132 = vmatprep.subr.mxu0 0.0
  %2133 = vmatpush1.msra.mxu0 %v2123
  %2134 = vmatprep.subr.mxu0 0.0
  %2135 = vmatpush1.msra.mxu0 %v2124
  %2136 = vmatprep.subr.mxu0 0.0
  %2137 = vmatpush1.msra.mxu0 0.0
  %2138 = vmatprep.subr.mxu0 0.0
  %2139 = vmatpush1.msra.mxu0 0.0
  %2140 = vmatprep.subr.mxu0 0.0
  %2141 = vmatpush1.msra.mxu0 0.0
  %2142 = vmatprep.subr.mxu0 0.0
  %2143 = vmatpush1.msra.mxu0 0.0
  %2144 = vmatprep.subr.mxu0 0.0
  %2145 = vmatpush1.msra.mxu0 0.0
  %2146 = vmatprep.subr.mxu0 0.0
  %2147 = vmatpush1.msra.mxu0 0.0
  %2148 = vmatprep.subr.mxu0 0.0
  %2149 = vmatpush1.msra.mxu0 0.0
  %2150 = vmatprep.subr.mxu0 0.0
  %2151 = vmatpush1.msra.mxu0 0.0
  %2152 = vmatprep.subr.mxu0 0.0
  %2153 = vmatpush1.msra.mxu0 0.0
  %2154 = vmatprep.subr.mxu0 0.0
  %2155 = vmatpush1.msra.mxu0 0.0
  %2156 = vmatprep.subr.mxu0 0.0
  %2157 = vmatpush1.msra.mxu0 0.0
  %2158 = vmatprep.subr.mxu0 0.0
  %2159 = vmatpush1.msra.mxu0 0.0
  %2160 = vmatprep.subr.mxu0 0.0
  %2161 = vmatpush1.msra.mxu0 0.0
  %2162 = vmatprep.subr.mxu0 0.0
  %2163 = vmatpush1.msra.mxu0 0.0
  %2164 = vmatprep.subr.mxu0 0.0
  %2165 = vmatpush1.msra.mxu0 0.0
  %2166 = vmatprep.subr.mxu0 0.0
  %2167 = vmatpush1.msra.mxu0 0.0
  %2168 = vmatprep.subr.mxu0 0.0
  %2169 = vmatpush1.msra.mxu0 0.0
  %2170 = vmatprep.subr.mxu0 0.0
  %2171 = vmatpush1.msra.mxu0 0.0
  %2172 = vmatprep.subr.mxu0 0.0
  %2173 = vmatpush1.msra.mxu0 0.0
  %2174 = vmatprep.subr.mxu0 0.0
  %2175 = vmatpush1.msra.mxu0 0.0
  %2176 = vmatprep.subr.mxu0 0.0
  %2177 = vmatpush1.msra.mxu0 0.0
  %2178 = vmatprep.subr.mxu0 0.0
  %2179 = vmatpush1.msra.mxu0 0.0
  %2180 = vmatprep.subr.mxu0 0.0
  %2181 = vmatpush1.msra.mxu0 0.0
  %2182 = vmatprep.subr.mxu0 0.0
  %2183 = vmatpush1.msra.mxu0 0.0
  %2184 = vmatprep.subr.mxu0 0.0
  %2185 = vmatpush1.msra.mxu0 0.0
  %2186 = vmatprep.subr.mxu0 0.0
  %2187 = vmatpush1.msra.mxu0 0.0
  %2188 = vmatprep.subr.mxu0 0.0
  %2189 = vmatpush1.msra.mxu0 0.0
  %2190 = vmatprep.subr.mxu0 0.0
  %2191 = vmatpush1.msra.mxu0 0.0
  %2192 = vmatprep.mubr.f32.mxu0 0.0
  %2193 = vmatmul.mubr.f32.gmra.mrb[0].mxu0 %v2126
  %v2194 = vpop.f32.mrb[0].mxu0
  %v2195 = vadd.f32 0.0, %v2194
  %v2196 = vpop.f32.mrb[0].mxu0
  %2197 = vdwg.mxu0
  %v2198 = vadd.f32 %v2119, %v2195
  %v2199 = vld [vmem:[#allocation5] sm:$0xff]
  %v2200 = vxor.u32 %v2198, 2147483648
  %v2201 = vmul.f32 %v2200, 1.442695
  %v2202 = vpow.pop %v2201
  %v2203 = vadd.f32 %v2202, 1.0
  %v2204 = vrcp.pop %v2203
  %v2205 = vmul.f32 1.0, %v2204
  %v2206 = vtanh.pop %v2198
  %2208 = vrot.lane.b32.xlu0 %v2199, 32
  %v2209 = vpop.permute.xlu0 %2208
  %v2211 = vmul.f32 %v2205, %v2209
  %2213 = vrot.lane.b32.xlu0 %v2206, 64
  %v2214 = vpop.permute.xlu0 %2213
  %v2216 = vmul.f32 %v2205, %v2214
  %2218 = vrot.lane.b32.xlu0 %v2216, 32
  %v2219 = vpop.permute.xlu0 %2218
  %v2221 = vadd.f32 %v2211, %v2219
  %v2222 = vtanh.pop %v2221
  %2224 = vrot.lane.b32.xlu0 %v2222, 64
  %v2225 = vpop.permute.xlu0 %2224
  %v2227 = vmul.f32 %v2205, %v2225
  %2229 = vrot.lane.b32.xlu0 %v2227, 32
  %v2230 = vpop.permute.xlu0 %2229
  %2232 = vst.msk [vmem:[#allocation4] sm:$0xff] %vm187, %v2230
  %2234 = vrot.lane.b32.xlu0 %v2221, 96
  %v2235 = vpop.permute.xlu0 %2234
  %2237 = vst.msk [vmem:[#allocation5] sm:$0xff] %vm187, %v2235
  %v2238 = vld [vmem:[#allocation6] sm:$0xff]
  %s2239 = scalar_lea.vmem %s7, 128
  %v2240 = vld [vmem:[%s2239] sm:$0xff]
  %v2241 = vld [vmem:[%s2239 + $0x8] sm:$0xff]
  %v2242 = vld [vmem:[%s2239 + $0x10] sm:$0xff]
  %v2243 = vld [vmem:[%s2239 + $0x18] sm:$0xff]
  %v2244 = vsel %vm187, %v2230, 0
  %2246 = vmatprep.subr.mxu0 0.0
  %2247 = vmatpush1.msra.mxu0 %v2240
  %2248 = vmatprep.subr.mxu0 0.0
  %2249 = vmatpush1.msra.mxu0 %v2241
  %2250 = vmatprep.subr.mxu0 0.0
  %2251 = vmatpush1.msra.mxu0 %v2242
  %2252 = vmatprep.subr.mxu0 0.0
  %2253 = vmatpush1.msra.mxu0 %v2243
  %2254 = vmatprep.subr.mxu0 0.0
  %2255 = vmatpush1.msra.mxu0 0.0
  %2256 = vmatprep.subr.mxu0 0.0
  %2257 = vmatpush1.msra.mxu0 0.0
  %2258 = vmatprep.subr.mxu0 0.0
  %2259 = vmatpush1.msra.mxu0 0.0
  %2260 = vmatprep.subr.mxu0 0.0
  %2261 = vmatpush1.msra.mxu0 0.0
  %2262 = vmatprep.subr.mxu0 0.0
  %2263 = vmatpush1.msra.mxu0 0.0
  %2264 = vmatprep.subr.mxu0 0.0
  %2265 = vmatpush1.msra.mxu0 0.0
  %2266 = vmatprep.subr.mxu0 0.0
  %2267 = vmatpush1.msra.mxu0 0.0
  %2268 = vmatprep.subr.mxu0 0.0
  %2269 = vmatpush1.msra.mxu0 0.0
  %2270 = vmatprep.subr.mxu0 0.0
  %2271 = vmatpush1.msra.mxu0 0.0
  %2272 = vmatprep.subr.mxu0 0.0
  %2273 = vmatpush1.msra.mxu0 0.0
  %2274 = vmatprep.subr.mxu0 0.0
  %2275 = vmatpush1.msra.mxu0 0.0
  %2276 = vmatprep.subr.mxu0 0.0
  %2277 = vmatpush1.msra.mxu0 0.0
  %2278 = vmatprep.subr.mxu0 0.0
  %2279 = vmatpush1.msra.mxu0 0.0
  %2280 = vmatprep.subr.mxu0 0.0
  %2281 = vmatpush1.msra.mxu0 0.0
  %2282 = vmatprep.subr.mxu0 0.0
  %2283 = vmatpush1.msra.mxu0 0.0
  %2284 = vmatprep.subr.mxu0 0.0
  %2285 = vmatpush1.msra.mxu0 0.0
  %2286 = vmatprep.subr.mxu0 0.0
  %2287 = vmatpush1.msra.mxu0 0.0
  %2288 = vmatprep.subr.mxu0 0.0
  %2289 = vmatpush1.msra.mxu0 0.0
  %2290 = vmatprep.subr.mxu0 0.0
  %2291 = vmatpush1.msra.mxu0 0.0
  %2292 = vmatprep.subr.mxu0 0.0
  %2293 = vmatpush1.msra.mxu0 0.0
  %2294 = vmatprep.subr.mxu0 0.0
  %2295 = vmatpush1.msra.mxu0 0.0
  %2296 = vmatprep.subr.mxu0 0.0
  %2297 = vmatpush1.msra.mxu0 0.0
  %2298 = vmatprep.subr.mxu0 0.0
  %2299 = vmatpush1.msra.mxu0 0.0
  %2300 = vmatprep.subr.mxu0 0.0
  %2301 = vmatpush1.msra.mxu0 0.0
  %2302 = vmatprep.subr.mxu0 0.0
  %2303 = vmatpush1.msra.mxu0 0.0
  %2304 = vmatprep.subr.mxu0 0.0
  %2305 = vmatpush1.msra.mxu0 0.0
  %2306 = vmatprep.subr.mxu0 0.0
  %2307 = vmatpush1.msra.mxu0 0.0
  %2308 = vmatprep.subr.mxu0 0.0
  %2309 = vmatpush1.msra.mxu0 0.0
  %2310 = vmatprep.mubr.f32.mxu0 0.0
  %2311 = vmatmul.mubr.f32.gmra.mrb[0].mxu0 %v2244
  %v2312 = vpop.f32.mrb[0].mxu0
  %v2313 = vadd.f32 0.0, %v2312
  %v2314 = vpop.f32.mrb[0].mxu0
  %2315 = vdwg.mxu0
  %v2316 = vadd.f32 %v2238, %v2313
  %2317 = vst.msk [vmem:[#allocation6] sm:$0xff] %vm1322, %v2316
  %v2318 = vld [vmem:[%s798] sm:$0xff]
  %v2319 = vld [vmem:[#allocation4] sm:$0xff]
  %v2320 = vld [vmem:[%s5] sm:$0xff]
  %v2321 = vld [vmem:[%s5 + $0x8] sm:$0xff]
  %v2322 = vld [vmem:[%s5 + $0x10] sm:$0xff]
  %v2323 = vld [vmem:[%s5 + $0x18] sm:$0xff]
  %v2325 = vsel %vm187, %v2319, 0
  %2327 = vmatprep.subr.mxu0 0.0
  %2328 = vmatpush1.msra.mxu0 %v2320
  %2329 = vmatprep.subr.mxu0 0.0
  %2330 = vmatpush1.msra.mxu0 %v2321
  %2331 = vmatprep.subr.mxu0 0.0
  %2332 = vmatpush1.msra.mxu0 %v2322
  %2333 = vmatprep.subr.mxu0 0.0
  %2334 = vmatpush1.msra.mxu0 %v2323
  %2335 = vmatprep.subr.mxu0 0.0
  %2336 = vmatpush1.msra.mxu0 0.0
  %2337 = vmatprep.subr.mxu0 0.0
  %2338 = vmatpush1.msra.mxu0 0.0
  %2339 = vmatprep.subr.mxu0 0.0
  %2340 = vmatpush1.msra.mxu0 0.0
  %2341 = vmatprep.subr.mxu0 0.0
  %2342 = vmatpush1.msra.mxu0 0.0
  %2343 = vmatprep.subr.mxu0 0.0
  %2344 = vmatpush1.msra.mxu0 0.0
  %2345 = vmatprep.subr.mxu0 0.0
  %2346 = vmatpush1.msra.mxu0 0.0
  %2347 = vmatprep.subr.mxu0 0.0
  %2348 = vmatpush1.msra.mxu0 0.0
  %2349 = vmatprep.subr.mxu0 0.0
  %2350 = vmatpush1.msra.mxu0 0.0
  %2351 = vmatprep.subr.mxu0 0.0
  %2352 = vmatpush1.msra.mxu0 0.0
  %2353 = vmatprep.subr.mxu0 0.0
  %2354 = vmatpush1.msra.mxu0 0.0
  %2355 = vmatprep.subr.mxu0 0.0
  %2356 = vmatpush1.msra.mxu0 0.0
  %2357 = vmatprep.subr.mxu0 0.0
  %2358 = vmatpush1.msra.mxu0 0.0
  %2359 = vmatprep.subr.mxu0 0.0
  %2360 = vmatpush1.msra.mxu0 0.0
  %2361 = vmatprep.subr.mxu0 0.0
  %2362 = vmatpush1.msra.mxu0 0.0
  %2363 = vmatprep.subr.mxu0 0.0
  %2364 = vmatpush1.msra.mxu0 0.0
  %2365 = vmatprep.subr.mxu0 0.0
  %2366 = vmatpush1.msra.mxu0 0.0
  %2367 = vmatprep.subr.mxu0 0.0
  %2368 = vmatpush1.msra.mxu0 0.0
  %2369 = vmatprep.subr.mxu0 0.0
  %2370 = vmatpush1.msra.mxu0 0.0
  %2371 = vmatprep.subr.mxu0 0.0
  %2372 = vmatpush1.msra.mxu0 0.0
  %2373 = vmatprep.subr.mxu0 0.0
  %2374 = vmatpush1.msra.mxu0 0.0
  %2375 = vmatprep.subr.mxu0 0.0
  %2376 = vmatpush1.msra.mxu0 0.0
  %2377 = vmatprep.subr.mxu0 0.0
  %2378 = vmatpush1.msra.mxu0 0.0
  %2379 = vmatprep.subr.mxu0 0.0
  %2380 = vmatpush1.msra.mxu0 0.0
  %2381 = vmatprep.subr.mxu0 0.0
  %2382 = vmatpush1.msra.mxu0 0.0
  %2383 = vmatprep.subr.mxu0 0.0
  %2384 = vmatpush1.msra.mxu0 0.0
  %2385 = vmatprep.subr.mxu0 0.0
  %2386 = vmatpush1.msra.mxu0 0.0
  %2387 = vmatprep.subr.mxu0 0.0
  %2388 = vmatpush1.msra.mxu0 0.0
  %2389 = vmatprep.subr.mxu0 0.0
  %2390 = vmatpush1.msra.mxu0 0.0
  %2391 = vmatprep.mubr.f32.mxu0 0.0
  %2392 = vmatmul.mubr.f32.gmra.mrb[0].mxu0 %v2325
  %v2393 = vpop.f32.mrb[0].mxu0
  %v2394 = vadd.f32 0.0, %v2393
  %v2395 = vpop.f32.mrb[0].mxu0
  %2396 = vdwg.mxu0
  %v2397 = vadd.f32 %v2318, %v2394
  %v2398 = vld [vmem:[#allocation5] sm:$0xff]
  %v2399 = vxor.u32 %v2397, 2147483648
  %v2400 = vmul.f32 %v2399, 1.442695
  %v2401 = vpow.pop %v2400
  %v2402 = vadd.f32 %v2401, 1.0
  %v2403 = vrcp.pop %v2402
  %v2404 = vmul.f32 1.0, %v2403
  %v2405 = vtanh.pop %v2397
  %2407 = vrot.lane.b32.xlu0 %v2398, 32
  %v2408 = vpop.permute.xlu0 %2407
  %v2410 = vmul.f32 %v2404, %v2408
  %2412 = vrot.lane.b32.xlu0 %v2405, 64
  %v2413 = vpop.permute.xlu0 %2412
  %v2415 = vmul.f32 %v2404, %v2413
  %2417 = vrot.lane.b32.xlu0 %v2415, 32
  %v2418 = vpop.permute.xlu0 %2417
  %v2420 = vadd.f32 %v2410, %v2418
  %v2421 = vtanh.pop %v2420
  %2423 = vrot.lane.b32.xlu0 %v2421, 64
  %v2424 = vpop.permute.xlu0 %2423
  %v2426 = vmul.f32 %v2404, %v2424
  %2428 = vrot.lane.b32.xlu0 %v2426, 32
  %v2429 = vpop.permute.xlu0 %2428
  %2431 = vst.msk [vmem:[#allocation4] sm:$0xff] %vm187, %v2429
  %2433 = vrot.lane.b32.xlu0 %v2420, 96
  %v2434 = vpop.permute.xlu0 %2433
  %2436 = vst.msk [vmem:[#allocation5] sm:$0xff] %vm187, %v2434
  %v2437 = vld [vmem:[#allocation6] sm:$0xff]
  %s2438 = scalar_lea.vmem %s7, 160
  %v2439 = vld [vmem:[%s2438] sm:$0xff]
  %v2440 = vld [vmem:[%s2438 + $0x8] sm:$0xff]
  %v2441 = vld [vmem:[%s2438 + $0x10] sm:$0xff]
  %v2442 = vld [vmem:[%s2438 + $0x18] sm:$0xff]
  %v2443 = vsel %vm187, %v2429, 0
  %2445 = vmatprep.subr.mxu0 0.0
  %2446 = vmatpush1.msra.mxu0 %v2439
  %2447 = vmatprep.subr.mxu0 0.0
  %2448 = vmatpush1.msra.mxu0 %v2440
  %2449 = vmatprep.subr.mxu0 0.0
  %2450 = vmatpush1.msra.mxu0 %v2441
  %2451 = vmatprep.subr.mxu0 0.0
  %2452 = vmatpush1.msra.mxu0 %v2442
  %2453 = vmatprep.subr.mxu0 0.0
  %2454 = vmatpush1.msra.mxu0 0.0
  %2455 = vmatprep.subr.mxu0 0.0
  %2456 = vmatpush1.msra.mxu0 0.0
  %2457 = vmatprep.subr.mxu0 0.0
  %2458 = vmatpush1.msra.mxu0 0.0
  %2459 = vmatprep.subr.mxu0 0.0
  %2460 = vmatpush1.msra.mxu0 0.0
  %2461 = vmatprep.subr.mxu0 0.0
  %2462 = vmatpush1.msra.mxu0 0.0
  %2463 = vmatprep.subr.mxu0 0.0
  %2464 = vmatpush1.msra.mxu0 0.0
  %2465 = vmatprep.subr.mxu0 0.0
  %2466 = vmatpush1.msra.mxu0 0.0
  %2467 = vmatprep.subr.mxu0 0.0
  %2468 = vmatpush1.msra.mxu0 0.0
  %2469 = vmatprep.subr.mxu0 0.0
  %2470 = vmatpush1.msra.mxu0 0.0
  %2471 = vmatprep.subr.mxu0 0.0
  %2472 = vmatpush1.msra.mxu0 0.0
  %2473 = vmatprep.subr.mxu0 0.0
  %2474 = vmatpush1.msra.mxu0 0.0
  %2475 = vmatprep.subr.mxu0 0.0
  %2476 = vmatpush1.msra.mxu0 0.0
  %2477 = vmatprep.subr.mxu0 0.0
  %2478 = vmatpush1.msra.mxu0 0.0
  %2479 = vmatprep.subr.mxu0 0.0
  %2480 = vmatpush1.msra.mxu0 0.0
  %2481 = vmatprep.subr.mxu0 0.0
  %2482 = vmatpush1.msra.mxu0 0.0
  %2483 = vmatprep.subr.mxu0 0.0
  %2484 = vmatpush1.msra.mxu0 0.0
  %2485 = vmatprep.subr.mxu0 0.0
  %2486 = vmatpush1.msra.mxu0 0.0
  %2487 = vmatprep.subr.mxu0 0.0
  %2488 = vmatpush1.msra.mxu0 0.0
  %2489 = vmatprep.subr.mxu0 0.0
  %2490 = vmatpush1.msra.mxu0 0.0
  %2491 = vmatprep.subr.mxu0 0.0
  %2492 = vmatpush1.msra.mxu0 0.0
  %2493 = vmatprep.subr.mxu0 0.0
  %2494 = vmatpush1.msra.mxu0 0.0
  %2495 = vmatprep.subr.mxu0 0.0
  %2496 = vmatpush1.msra.mxu0 0.0
  %2497 = vmatprep.subr.mxu0 0.0
  %2498 = vmatpush1.msra.mxu0 0.0
  %2499 = vmatprep.subr.mxu0 0.0
  %2500 = vmatpush1.msra.mxu0 0.0
  %2501 = vmatprep.subr.mxu0 0.0
  %2502 = vmatpush1.msra.mxu0 0.0
  %2503 = vmatprep.subr.mxu0 0.0
  %2504 = vmatpush1.msra.mxu0 0.0
  %2505 = vmatprep.subr.mxu0 0.0
  %2506 = vmatpush1.msra.mxu0 0.0
  %2507 = vmatprep.subr.mxu0 0.0
  %2508 = vmatpush1.msra.mxu0 0.0
  %2509 = vmatprep.mubr.f32.mxu0 0.0
  %2510 = vmatmul.mubr.f32.gmra.mrb[0].mxu0 %v2443
  %v2511 = vpop.f32.mrb[0].mxu0
  %v2512 = vadd.f32 0.0, %v2511
  %v2513 = vpop.f32.mrb[0].mxu0
  %2514 = vdwg.mxu0
  %v2515 = vadd.f32 %v2437, %v2512
  %2516 = vst.msk [vmem:[#allocation6] sm:$0xff] %vm1322, %v2515
  %v2517 = vld [vmem:[%s920] sm:$0xff]
  %v2518 = vld [vmem:[#allocation4] sm:$0xff]
  %v2519 = vld [vmem:[%s5] sm:$0xff]
  %v2520 = vld [vmem:[%s5 + $0x8] sm:$0xff]
  %v2521 = vld [vmem:[%s5 + $0x10] sm:$0xff]
  %v2522 = vld [vmem:[%s5 + $0x18] sm:$0xff]
  %v2524 = vsel %vm187, %v2518, 0
  %2526 = vmatprep.subr.mxu0 0.0
  %2527 = vmatpush1.msra.mxu0 %v2519
  %2528 = vmatprep.subr.mxu0 0.0
  %2529 = vmatpush1.msra.mxu0 %v2520
  %2530 = vmatprep.subr.mxu0 0.0
  %2531 = vmatpush1.msra.mxu0 %v2521
  %2532 = vmatprep.subr.mxu0 0.0
  %2533 = vmatpush1.msra.mxu0 %v2522
  %2534 = vmatprep.subr.mxu0 0.0
  %2535 = vmatpush1.msra.mxu0 0.0
  %2536 = vmatprep.subr.mxu0 0.0
  %2537 = vmatpush1.msra.mxu0 0.0
  %2538 = vmatprep.subr.mxu0 0.0
  %2539 = vmatpush1.msra.mxu0 0.0
  %2540 = vmatprep.subr.mxu0 0.0
  %2541 = vmatpush1.msra.mxu0 0.0
  %2542 = vmatprep.subr.mxu0 0.0
  %2543 = vmatpush1.msra.mxu0 0.0
  %2544 = vmatprep.subr.mxu0 0.0
  %2545 = vmatpush1.msra.mxu0 0.0
  %2546 = vmatprep.subr.mxu0 0.0
  %2547 = vmatpush1.msra.mxu0 0.0
  %2548 = vmatprep.subr.mxu0 0.0
  %2549 = vmatpush1.msra.mxu0 0.0
  %2550 = vmatprep.subr.mxu0 0.0
  %2551 = vmatpush1.msra.mxu0 0.0
  %2552 = vmatprep.subr.mxu0 0.0
  %2553 = vmatpush1.msra.mxu0 0.0
  %2554 = vmatprep.subr.mxu0 0.0
  %2555 = vmatpush1.msra.mxu0 0.0
  %2556 = vmatprep.subr.mxu0 0.0
  %2557 = vmatpush1.msra.mxu0 0.0
  %2558 = vmatprep.subr.mxu0 0.0
  %2559 = vmatpush1.msra.mxu0 0.0
  %2560 = vmatprep.subr.mxu0 0.0
  %2561 = vmatpush1.msra.mxu0 0.0
  %2562 = vmatprep.subr.mxu0 0.0
  %2563 = vmatpush1.msra.mxu0 0.0
  %2564 = vmatprep.subr.mxu0 0.0
  %2565 = vmatpush1.msra.mxu0 0.0
  %2566 = vmatprep.subr.mxu0 0.0
  %2567 = vmatpush1.msra.mxu0 0.0
  %2568 = vmatprep.subr.mxu0 0.0
  %2569 = vmatpush1.msra.mxu0 0.0
  %2570 = vmatprep.subr.mxu0 0.0
  %2571 = vmatpush1.msra.mxu0 0.0
  %2572 = vmatprep.subr.mxu0 0.0
  %2573 = vmatpush1.msra.mxu0 0.0
  %2574 = vmatprep.subr.mxu0 0.0
  %2575 = vmatpush1.msra.mxu0 0.0
  %2576 = vmatprep.subr.mxu0 0.0
  %2577 = vmatpush1.msra.mxu0 0.0
  %2578 = vmatprep.subr.mxu0 0.0
  %2579 = vmatpush1.msra.mxu0 0.0
  %2580 = vmatprep.subr.mxu0 0.0
  %2581 = vmatpush1.msra.mxu0 0.0
  %2582 = vmatprep.subr.mxu0 0.0
  %2583 = vmatpush1.msra.mxu0 0.0
  %2584 = vmatprep.subr.mxu0 0.0
  %2585 = vmatpush1.msra.mxu0 0.0
  %2586 = vmatprep.subr.mxu0 0.0
  %2587 = vmatpush1.msra.mxu0 0.0
  %2588 = vmatprep.subr.mxu0 0.0
  %2589 = vmatpush1.msra.mxu0 0.0
  %2590 = vmatprep.mubr.f32.mxu0 0.0
  %2591 = vmatmul.mubr.f32.gmra.mrb[0].mxu0 %v2524
  %v2592 = vpop.f32.mrb[0].mxu0
  %v2593 = vadd.f32 0.0, %v2592
  %v2594 = vpop.f32.mrb[0].mxu0
  %2595 = vdwg.mxu0
  %v2596 = vadd.f32 %v2517, %v2593
  %v2597 = vld [vmem:[#allocation5] sm:$0xff]
  %v2598 = vxor.u32 %v2596, 2147483648
  %v2599 = vmul.f32 %v2598, 1.442695
  %v2600 = vpow.pop %v2599
  %v2601 = vadd.f32 %v2600, 1.0
  %v2602 = vrcp.pop %v2601
  %v2603 = vmul.f32 1.0, %v2602
  %v2604 = vtanh.pop %v2596
  %2606 = vrot.lane.b32.xlu0 %v2597, 32
  %v2607 = vpop.permute.xlu0 %2606
  %v2609 = vmul.f32 %v2603, %v2607
  %2611 = vrot.lane.b32.xlu0 %v2604, 64
  %v2612 = vpop.permute.xlu0 %2611
  %v2614 = vmul.f32 %v2603, %v2612
  %2616 = vrot.lane.b32.xlu0 %v2614, 32
  %v2617 = vpop.permute.xlu0 %2616
  %v2619 = vadd.f32 %v2609, %v2617
  %v2620 = vtanh.pop %v2619
  %2622 = vrot.lane.b32.xlu0 %v2620, 64
  %v2623 = vpop.permute.xlu0 %2622
  %v2625 = vmul.f32 %v2603, %v2623
  %2627 = vrot.lane.b32.xlu0 %v2625, 32
  %v2628 = vpop.permute.xlu0 %2627
  %2630 = vst.msk [vmem:[#allocation4] sm:$0xff] %vm187, %v2628
  %2632 = vrot.lane.b32.xlu0 %v2619, 96
  %v2633 = vpop.permute.xlu0 %2632
  %2635 = vst.msk [vmem:[#allocation5] sm:$0xff] %vm187, %v2633
  %v2636 = vld [vmem:[#allocation6] sm:$0xff]
  %s2637 = scalar_lea.vmem %s7, 192
  %v2638 = vld [vmem:[%s2637] sm:$0xff]
  %v2639 = vld [vmem:[%s2637 + $0x8] sm:$0xff]
  %v2640 = vld [vmem:[%s2637 + $0x10] sm:$0xff]
  %v2641 = vld [vmem:[%s2637 + $0x18] sm:$0xff]
  %v2642 = vsel %vm187, %v2628, 0
  %2644 = vmatprep.subr.mxu0 0.0
  %2645 = vmatpush1.msra.mxu0 %v2638
  %2646 = vmatprep.subr.mxu0 0.0
  %2647 = vmatpush1.msra.mxu0 %v2639
  %2648 = vmatprep.subr.mxu0 0.0
  %2649 = vmatpush1.msra.mxu0 %v2640
  %2650 = vmatprep.subr.mxu0 0.0
  %2651 = vmatpush1.msra.mxu0 %v2641
  %2652 = vmatprep.subr.mxu0 0.0
  %2653 = vmatpush1.msra.mxu0 0.0
  %2654 = vmatprep.subr.mxu0 0.0
  %2655 = vmatpush1.msra.mxu0 0.0
  %2656 = vmatprep.subr.mxu0 0.0
  %2657 = vmatpush1.msra.mxu0 0.0
  %2658 = vmatprep.subr.mxu0 0.0
  %2659 = vmatpush1.msra.mxu0 0.0
  %2660 = vmatprep.subr.mxu0 0.0
  %2661 = vmatpush1.msra.mxu0 0.0
  %2662 = vmatprep.subr.mxu0 0.0
  %2663 = vmatpush1.msra.mxu0 0.0
  %2664 = vmatprep.subr.mxu0 0.0
  %2665 = vmatpush1.msra.mxu0 0.0
  %2666 = vmatprep.subr.mxu0 0.0
  %2667 = vmatpush1.msra.mxu0 0.0
  %2668 = vmatprep.subr.mxu0 0.0
  %2669 = vmatpush1.msra.mxu0 0.0
  %2670 = vmatprep.subr.mxu0 0.0
  %2671 = vmatpush1.msra.mxu0 0.0
  %2672 = vmatprep.subr.mxu0 0.0
  %2673 = vmatpush1.msra.mxu0 0.0
  %2674 = vmatprep.subr.mxu0 0.0
  %2675 = vmatpush1.msra.mxu0 0.0
  %2676 = vmatprep.subr.mxu0 0.0
  %2677 = vmatpush1.msra.mxu0 0.0
  %2678 = vmatprep.subr.mxu0 0.0
  %2679 = vmatpush1.msra.mxu0 0.0
  %2680 = vmatprep.subr.mxu0 0.0
  %2681 = vmatpush1.msra.mxu0 0.0
  %2682 = vmatprep.subr.mxu0 0.0
  %2683 = vmatpush1.msra.mxu0 0.0
  %2684 = vmatprep.subr.mxu0 0.0
  %2685 = vmatpush1.msra.mxu0 0.0
  %2686 = vmatprep.subr.mxu0 0.0
  %2687 = vmatpush1.msra.mxu0 0.0
  %2688 = vmatprep.subr.mxu0 0.0
  %2689 = vmatpush1.msra.mxu0 0.0
  %2690 = vmatprep.subr.mxu0 0.0
  %2691 = vmatpush1.msra.mxu0 0.0
  %2692 = vmatprep.subr.mxu0 0.0
  %2693 = vmatpush1.msra.mxu0 0.0
  %2694 = vmatprep.subr.mxu0 0.0
  %2695 = vmatpush1.msra.mxu0 0.0
  %2696 = vmatprep.subr.mxu0 0.0
  %2697 = vmatpush1.msra.mxu0 0.0
  %2698 = vmatprep.subr.mxu0 0.0
  %2699 = vmatpush1.msra.mxu0 0.0
  %2700 = vmatprep.subr.mxu0 0.0
  %2701 = vmatpush1.msra.mxu0 0.0
  %2702 = vmatprep.subr.mxu0 0.0
  %2703 = vmatpush1.msra.mxu0 0.0
  %2704 = vmatprep.subr.mxu0 0.0
  %2705 = vmatpush1.msra.mxu0 0.0
  %2706 = vmatprep.subr.mxu0 0.0
  %2707 = vmatpush1.msra.mxu0 0.0
  %2708 = vmatprep.mubr.f32.mxu0 0.0
  %2709 = vmatmul.mubr.f32.gmra.mrb[0].mxu0 %v2642
  %v2710 = vpop.f32.mrb[0].mxu0
  %v2711 = vadd.f32 0.0, %v2710
  %v2712 = vpop.f32.mrb[0].mxu0
  %2713 = vdwg.mxu0
  %v2714 = vadd.f32 %v2636, %v2711
  %2715 = vst.msk [vmem:[#allocation6] sm:$0xff] %vm1322, %v2714
  %v2716 = vld [vmem:[%s1042] sm:$0xff]
  %v2717 = vld [vmem:[#allocation4] sm:$0xff]
  %v2718 = vld [vmem:[%s5] sm:$0xff]
  %v2719 = vld [vmem:[%s5 + $0x8] sm:$0xff]
  %v2720 = vld [vmem:[%s5 + $0x10] sm:$0xff]
  %v2721 = vld [vmem:[%s5 + $0x18] sm:$0xff]
  %v2723 = vsel %vm187, %v2717, 0
  %2725 = vmatprep.subr.mxu0 0.0
  %2726 = vmatpush1.msra.mxu0 %v2718
  %2727 = vmatprep.subr.mxu0 0.0
  %2728 = vmatpush1.msra.mxu0 %v2719
  %2729 = vmatprep.subr.mxu0 0.0
  %2730 = vmatpush1.msra.mxu0 %v2720
  %2731 = vmatprep.subr.mxu0 0.0
  %2732 = vmatpush1.msra.mxu0 %v2721
  %2733 = vmatprep.subr.mxu0 0.0
  %2734 = vmatpush1.msra.mxu0 0.0
  %2735 = vmatprep.subr.mxu0 0.0
  %2736 = vmatpush1.msra.mxu0 0.0
  %2737 = vmatprep.subr.mxu0 0.0
  %2738 = vmatpush1.msra.mxu0 0.0
  %2739 = vmatprep.subr.mxu0 0.0
  %2740 = vmatpush1.msra.mxu0 0.0
  %2741 = vmatprep.subr.mxu0 0.0
  %2742 = vmatpush1.msra.mxu0 0.0
  %2743 = vmatprep.subr.mxu0 0.0
  %2744 = vmatpush1.msra.mxu0 0.0
  %2745 = vmatprep.subr.mxu0 0.0
  %2746 = vmatpush1.msra.mxu0 0.0
  %2747 = vmatprep.subr.mxu0 0.0
  %2748 = vmatpush1.msra.mxu0 0.0
  %2749 = vmatprep.subr.mxu0 0.0
  %2750 = vmatpush1.msra.mxu0 0.0
  %2751 = vmatprep.subr.mxu0 0.0
  %2752 = vmatpush1.msra.mxu0 0.0
  %2753 = vmatprep.subr.mxu0 0.0
  %2754 = vmatpush1.msra.mxu0 0.0
  %2755 = vmatprep.subr.mxu0 0.0
  %2756 = vmatpush1.msra.mxu0 0.0
  %2757 = vmatprep.subr.mxu0 0.0
  %2758 = vmatpush1.msra.mxu0 0.0
  %2759 = vmatprep.subr.mxu0 0.0
  %2760 = vmatpush1.msra.mxu0 0.0
  %2761 = vmatprep.subr.mxu0 0.0
  %2762 = vmatpush1.msra.mxu0 0.0
  %2763 = vmatprep.subr.mxu0 0.0
  %2764 = vmatpush1.msra.mxu0 0.0
  %2765 = vmatprep.subr.mxu0 0.0
  %2766 = vmatpush1.msra.mxu0 0.0
  %2767 = vmatprep.subr.mxu0 0.0
  %2768 = vmatpush1.msra.mxu0 0.0
  %2769 = vmatprep.subr.mxu0 0.0
  %2770 = vmatpush1.msra.mxu0 0.0
  %2771 = vmatprep.subr.mxu0 0.0
  %2772 = vmatpush1.msra.mxu0 0.0
  %2773 = vmatprep.subr.mxu0 0.0
  %2774 = vmatpush1.msra.mxu0 0.0
  %2775 = vmatprep.subr.mxu0 0.0
  %2776 = vmatpush1.msra.mxu0 0.0
  %2777 = vmatprep.subr.mxu0 0.0
  %2778 = vmatpush1.msra.mxu0 0.0
  %2779 = vmatprep.subr.mxu0 0.0
  %2780 = vmatpush1.msra.mxu0 0.0
  %2781 = vmatprep.subr.mxu0 0.0
  %2782 = vmatpush1.msra.mxu0 0.0
  %2783 = vmatprep.subr.mxu0 0.0
  %2784 = vmatpush1.msra.mxu0 0.0
  %2785 = vmatprep.subr.mxu0 0.0
  %2786 = vmatpush1.msra.mxu0 0.0
  %2787 = vmatprep.subr.mxu0 0.0
  %2788 = vmatpush1.msra.mxu0 0.0
  %2789 = vmatprep.mubr.f32.mxu0 0.0
  %2790 = vmatmul.mubr.f32.gmra.mrb[0].mxu0 %v2723
  %v2791 = vpop.f32.mrb[0].mxu0
  %v2792 = vadd.f32 0.0, %v2791
  %v2793 = vpop.f32.mrb[0].mxu0
  %2794 = vdwg.mxu0
  %v2795 = vadd.f32 %v2716, %v2792
  %v2796 = vld [vmem:[#allocation5] sm:$0xff]
  %v2797 = vxor.u32 %v2795, 2147483648
  %v2798 = vmul.f32 %v2797, 1.442695
  %v2799 = vpow.pop %v2798
  %v2800 = vadd.f32 %v2799, 1.0
  %v2801 = vrcp.pop %v2800
  %v2802 = vmul.f32 1.0, %v2801
  %v2803 = vtanh.pop %v2795
  %2805 = vrot.lane.b32.xlu0 %v2796, 32
  %v2806 = vpop.permute.xlu0 %2805
  %v2808 = vmul.f32 %v2802, %v2806
  %2810 = vrot.lane.b32.xlu0 %v2803, 64
  %v2811 = vpop.permute.xlu0 %2810
  %v2813 = vmul.f32 %v2802, %v2811
  %2815 = vrot.lane.b32.xlu0 %v2813, 32
  %v2816 = vpop.permute.xlu0 %2815
  %v2818 = vadd.f32 %v2808, %v2816
  %v2819 = vtanh.pop %v2818
  %2821 = vrot.lane.b32.xlu0 %v2819, 64
  %v2822 = vpop.permute.xlu0 %2821
  %v2824 = vmul.f32 %v2802, %v2822
  %2826 = vrot.lane.b32.xlu0 %v2824, 32
  %v2827 = vpop.permute.xlu0 %2826
  %2829 = vst.msk [vmem:[#allocation4] sm:$0xff] %vm187, %v2827
  %2831 = vrot.lane.b32.xlu0 %v2818, 96
  %v2832 = vpop.permute.xlu0 %2831
  %2834 = vst.msk [vmem:[#allocation5] sm:$0xff] %vm187, %v2832
  %v2835 = vld [vmem:[#allocation6] sm:$0xff]
  %s2836 = scalar_lea.vmem %s7, 224
  %v2837 = vld [vmem:[%s2836] sm:$0xff]
  %v2838 = vld [vmem:[%s2836 + $0x8] sm:$0xff]
  %v2839 = vld [vmem:[%s2836 + $0x10] sm:$0xff]
  %v2840 = vld [vmem:[%s2836 + $0x18] sm:$0xff]
  %v2841 = vsel %vm187, %v2827, 0
  %2843 = vmatprep.subr.mxu0 0.0
  %2844 = vmatpush1.msra.mxu0 %v2837
  %2845 = vmatprep.subr.mxu0 0.0
  %2846 = vmatpush1.msra.mxu0 %v2838
  %2847 = vmatprep.subr.mxu0 0.0
  %2848 = vmatpush1.msra.mxu0 %v2839
  %2849 = vmatprep.subr.mxu0 0.0
  %2850 = vmatpush1.msra.mxu0 %v2840
  %2851 = vmatprep.subr.mxu0 0.0
  %2852 = vmatpush1.msra.mxu0 0.0
  %2853 = vmatprep.subr.mxu0 0.0
  %2854 = vmatpush1.msra.mxu0 0.0
  %2855 = vmatprep.subr.mxu0 0.0
  %2856 = vmatpush1.msra.mxu0 0.0
  %2857 = vmatprep.subr.mxu0 0.0
  %2858 = vmatpush1.msra.mxu0 0.0
  %2859 = vmatprep.subr.mxu0 0.0
  %2860 = vmatpush1.msra.mxu0 0.0
  %2861 = vmatprep.subr.mxu0 0.0
  %2862 = vmatpush1.msra.mxu0 0.0
  %2863 = vmatprep.subr.mxu0 0.0
  %2864 = vmatpush1.msra.mxu0 0.0
  %2865 = vmatprep.subr.mxu0 0.0
  %2866 = vmatpush1.msra.mxu0 0.0
  %2867 = vmatprep.subr.mxu0 0.0
  %2868 = vmatpush1.msra.mxu0 0.0
  %2869 = vmatprep.subr.mxu0 0.0
  %2870 = vmatpush1.msra.mxu0 0.0
  %2871 = vmatprep.subr.mxu0 0.0
  %2872 = vmatpush1.msra.mxu0 0.0
  %2873 = vmatprep.subr.mxu0 0.0
  %2874 = vmatpush1.msra.mxu0 0.0
  %2875 = vmatprep.subr.mxu0 0.0
  %2876 = vmatpush1.msra.mxu0 0.0
  %2877 = vmatprep.subr.mxu0 0.0
  %2878 = vmatpush1.msra.mxu0 0.0
  %2879 = vmatprep.subr.mxu0 0.0
  %2880 = vmatpush1.msra.mxu0 0.0
  %2881 = vmatprep.subr.mxu0 0.0
  %2882 = vmatpush1.msra.mxu0 0.0
  %2883 = vmatprep.subr.mxu0 0.0
  %2884 = vmatpush1.msra.mxu0 0.0
  %2885 = vmatprep.subr.mxu0 0.0
  %2886 = vmatpush1.msra.mxu0 0.0
  %2887 = vmatprep.subr.mxu0 0.0
  %2888 = vmatpush1.msra.mxu0 0.0
  %2889 = vmatprep.subr.mxu0 0.0
  %2890 = vmatpush1.msra.mxu0 0.0
  %2891 = vmatprep.subr.mxu0 0.0
  %2892 = vmatpush1.msra.mxu0 0.0
  %2893 = vmatprep.subr.mxu0 0.0
  %2894 = vmatpush1.msra.mxu0 0.0
  %2895 = vmatprep.subr.mxu0 0.0
  %2896 = vmatpush1.msra.mxu0 0.0
  %2897 = vmatprep.subr.mxu0 0.0
  %2898 = vmatpush1.msra.mxu0 0.0
  %2899 = vmatprep.subr.mxu0 0.0
  %2900 = vmatpush1.msra.mxu0 0.0
  %2901 = vmatprep.subr.mxu0 0.0
  %2902 = vmatpush1.msra.mxu0 0.0
  %2903 = vmatprep.subr.mxu0 0.0
  %2904 = vmatpush1.msra.mxu0 0.0
  %2905 = vmatprep.subr.mxu0 0.0
  %2906 = vmatpush1.msra.mxu0 0.0
  %2907 = vmatprep.mubr.f32.mxu0 0.0
  %2908 = vmatmul.mubr.f32.gmra.mrb[0].mxu0 %v2841
  %v2909 = vpop.f32.mrb[0].mxu0
  %v2910 = vadd.f32 0.0, %v2909
  %v2911 = vpop.f32.mrb[0].mxu0
  %2912 = vdwg.mxu0
  %v2913 = vadd.f32 %v2835, %v2910
  %2914 = vst.msk [vmem:[#allocation6] sm:$0xff] %vm1322, %v2913
  %v2915 = vld [vmem:[#allocation6] sm:$0xff]
  %v2916 = vld [vmem:[%s8] sm:$0x1]
  %v2918 = vlaneseq
  %v2919 = vshrl.u32 %v2918, 7
  %v2920 = vsub.s32 0, %v2919
  %v2921 = vrot.slane %v2916, %v2920
  %v2923 = vadd.f32 %v2915, %v2921
  %2924 = vst.msk [vmem:[%s9] sm:$0xff] %vm1322, %v2923
  // Predicated region
  $region38: #{rnn_forward.1} parent=0 // pred_check
    _
  $region39: #{rnn_forward.1} parent=0 // pred_check_branch
    %2926 = sbr.rel (0) target = $region41
  $region40: #{rnn_forward.1} parent=0 // pred_region
    _
  $region41: #{rnn_forward.1} parent=0 // pred_fallthru
    _
  // Predicated region
  $region42: #{rnn_forward.1} parent=0 // pred_check
    _
  $region43: #{rnn_forward.1} parent=0 // pred_check_branch
    %2928 = sbr.rel (0) target = $region45
  $region44: #{rnn_forward.1} parent=0 // pred_region
    _
  $region45: #{rnn_forward.1} parent=0 // pred_fallthru
    _

</llo_original>
